<compile_context>
chip_gen: v7x
topology: tpu7x:2x2x1
jax: 0.10.0
libtpu: 0.0.40
codegen_flags: <defaults>
</compile_context>

<pallas_src>
import functools

import jax
import jax.numpy as jnp
from jax.experimental import pallas as pl
from jax.experimental.pallas import tpu as pltpu

EPS = 1e-5


def _round_up(v, m):
    return (v + m - 1) // m * m


def _vmem_limit_bytes():
    # ~96 MiB on v5e/v6e (128 MiB physical), ~48 MiB on v7x (64 MiB physical),
    # instead of relying on the 32 MiB scoped default.
    try:
        phys = pltpu.get_tpu_info().vmem_capacity_bytes
    except Exception:
        phys = 128 * 1024 * 1024
    return int(min(phys * 3 // 4, 100 * 1024 * 1024))


# ---------------------------------------------------------------------------
# Fused Bottleneck kernel: one grid step == one image (HW rows).
# ---------------------------------------------------------------------------
def _bottleneck_kernel(x_ref, w1_ref, b1_ref, w2_ref, b2_ref, w3_ref, b3_ref,
                       o_ref, o1p_ref, patch_ref, *, H, W, PAD):
    HW = H * W
    width = w1_ref.shape[1]

    # ---- conv1 (1x1) + bn1 (scale folded into w1) + relu -------------------
    # x_ref is bf16; read it here and again in the epilogue instead of keeping
    # a materialized copy live across the whole kernel (VMEM pressure).
    y1 = jnp.dot(x_ref[...], w1_ref[...], preferred_element_type=jnp.float32)
    o1 = jnp.maximum(y1 + b1_ref[...], 0.0)                    # (HW, width) f32

    # ---- stage o1 (bf16) into a zero row-padded VMEM scratch ---------------
    # (pads re-zeroed every step: scratch is persistent, cannot rely on step 0)
    o1p_ref[pl.ds(0, PAD), :] = jnp.zeros((PAD, width), jnp.bfloat16)
    o1p_ref[pl.ds(PAD + HW, PAD), :] = jnp.zeros((PAD, width), jnp.bfloat16)
    o1p_ref[pl.ds(PAD, HW), :] = o1.astype(jnp.bfloat16)

    # ---- conv2 (3x3, stride 1, pad 1) as ONE K = 9*width matmul ------------
    # Flat-row shift (dy-1)*W + (dx-1); zero row-pads handle the H boundary,
    # two pre-broadcast lane masks handle the left/right column wrap.
    col = jax.lax.broadcasted_iota(jnp.int32, (HW, 1), 0) % W
    not_left = jnp.broadcast_to(col != 0, (HW, width))          # built once
    not_right = jnp.broadcast_to(col != (W - 1), (HW, width))   # built once

    for dy in range(3):
        for dx in range(3):
            off = (dy - 1) * W + (dx - 1)
            tap = o1p_ref[pl.ds(PAD + off, HW), :]               # bf16 view
            if dx == 0:
                tap = jnp.where(not_left, tap, 0)
            elif dx == 2:
                tap = jnp.where(not_right, tap, 0)
            patch_ref[:, pl.ds((dy * 3 + dx) * width, width)] = tap

    acc = jnp.dot(patch_ref[...], w2_ref[...],
                  preferred_element_type=jnp.float32)            # single MXU dot
    o2 = jnp.maximum(acc + b2_ref[...], 0.0)                     # (HW, width) f32

    # ---- conv3 (1x1) + bn3 + residual add + relu ---------------------------
    y3 = jnp.dot(o2.astype(jnp.bfloat16), w3_ref[...],
                 preferred_element_type=jnp.float32)
    out = jnp.maximum(y3 + b3_ref[...] + x_ref[...].astype(jnp.float32), 0.0)
    o_ref[...] = out.astype(o_ref.dtype)                         # lane-dense bf16 store


# ---------------------------------------------------------------------------
# Wrapper: BN folding, weight layout, pallas_call.
# ---------------------------------------------------------------------------
def _fold_bn(gamma, beta, mean, var):
    scale = gamma / jnp.sqrt(var + EPS)
    bias = beta - mean * scale
    return scale, bias


def _const_spec(shape):
    """Constant-index (weight/bias) spec: single-buffered to save VMEM."""
    zeros = (0,) * len(shape)
    index_map = lambda i: zeros
    try:
        return pl.BlockSpec(shape, index_map, pipeline_mode=pl.Buffered(1))
    except (AttributeError, TypeError):
        return pl.BlockSpec(shape, index_map)


def bottleneck_rows(x_rows, p, h, w):
    """Bottleneck forward on flattened NHWC-rows input (N, H*W, Cin) -> bf16 out."""
    n, hw, c_in = x_rows.shape
    width = p["w1"].shape[0]
    c_out = p["w3"].shape[0]
    assert c_in == c_out, "stride=1 / downsample=None requires inplanes == 4*planes"

    s1, b1 = _fold_bn(p["g1"], p["b1"], p["m1"], p["v1"])
    s2, b2 = _fold_bn(p["g2"], p["b2"], p["m2"], p["v2"])
    s3, b3 = _fold_bn(p["g3"], p["b3"], p["m3"], p["v3"])

    # Fold BN scale into the conv weights (one-time transform), cast to bf16.
    w1 = (p["w1"][:, :, 0, 0].T * s1[None, :]).astype(jnp.bfloat16)          # (Cin, width)
    w2 = (jnp.transpose(p["w2"], (2, 3, 1, 0)).reshape(9, width, width)
          * s2[None, None, :]).reshape(9 * width, width).astype(jnp.bfloat16)  # (9*width, width)
    w3 = (p["w3"][:, :, 0, 0].T * s3[None, :]).astype(jnp.bfloat16)           # (width, Cout)
    b1 = b1.reshape(1, width).astype(jnp.float32)
    b2 = b2.reshape(1, width).astype(jnp.float32)
    b3 = b3.reshape(1, c_out).astype(jnp.float32)

    # bf16 activation I/O: halves the only two HBM streams of the kernel.
    x_rows = x_rows.astype(jnp.bfloat16)

    pad = _round_up(w + 1, 8)   # zero row-padding for the 3x3 flat-row shifts
    kernel = functools.partial(_bottleneck_kernel, H=h, W=w, PAD=pad)

    return pl.pallas_call(
        kernel,
        out_shape=jax.ShapeDtypeStruct((n, hw, c_out), jnp.bfloat16),
        grid_spec=pltpu.PrefetchScalarGridSpec(
            num_scalar_prefetch=0,
            grid=(n,),
            in_specs=[
                pl.BlockSpec((None, hw, c_in), lambda i: (i, 0, 0)),   # x (one image)
                _const_spec((c_in, width)),                            # w1
                _const_spec((1, width)),                               # b1
                _const_spec((9 * width, width)),                       # w2 (flattened taps)
                _const_spec((1, width)),                               # b2
                _const_spec((width, c_out)),                           # w3
                _const_spec((1, c_out)),                               # b3
            ],
            out_specs=pl.BlockSpec((None, hw, c_out), lambda i: (i, 0, 0)),
            scratch_shapes=[
                pltpu.VMEM((hw + 2 * pad, width), jnp.bfloat16),   # o1, row-padded
                pltpu.VMEM((hw, 9 * width), jnp.bfloat16),         # im2col patches
            ],
        ),
        compiler_params=pltpu.CompilerParams(
            dimension_semantics=("parallel",),       # batch grid -> both TCs on v7x
            vmem_limit_bytes=_vmem_limit_bytes(),
        ),
    )(x_rows, w1, b1, w2, b2, w3, b3)


def bottleneck_forward(x_nchw, p):
    """PyTorch-layout (NCHW) entry point matching Bottleneck.forward (bf16 out)."""
    n, c_in, h, w = x_nchw.shape
    x_rows = jnp.transpose(x_nchw, (0, 2, 3, 1)).reshape(n, h * w, c_in)
    out_rows = bottleneck_rows(x_rows, p, h, w)
    c_out = out_rows.shape[-1]
    return jnp.transpose(out_rows.reshape(n, h, w, c_out), (0, 3, 1, 2))


# ---------------------------------------------------------------------------
# Pure-JAX reference (XLA conv, f32) for correctness check
# ---------------------------------------------------------------------------
def bottleneck_reference(x, p):
    def conv(x, w, pad):
        return jax.lax.conv_general_dilated(
            x, w, (1, 1), [(pad, pad), (pad, pad)],
            dimension_numbers=("NCHW", "OIHW", "NCHW"))

    def bn(x, g, b, m, v):
        sh = (1, -1, 1, 1)
        return (x - m.reshape(sh)) / jnp.sqrt(v.reshape(sh) + EPS) * g.reshape(sh) + b.reshape(sh)

    out = jax.nn.relu(bn(conv(x, p["w1"], 0), p["g1"], p["b1"], p["m1"], p["v1"]))
    out = jax.nn.relu(bn(conv(out, p["w2"], 1), p["g2"], p["b2"], p["m2"], p["v2"]))
    out = bn(conv(out, p["w3"], 0), p["g3"], p["b3"], p["m3"], p["v3"])
    return jax.nn.relu(out + x)


# ---------------------------------------------------------------------------
if __name__ == "__main__":
    # Bottleneck(inplanes=128, planes=32): width=32, c_out=128 (lane-dense out),
    # identity add requires inplanes == 4*planes.  Small spatial/batch.
    inplanes, planes = 128, 32
    width = planes               # base_width=64, groups=1
    c_out = planes * 4           # expansion
    N, H, W = 2, 16, 16

    key = jax.random.PRNGKey(0)
    ks = jax.random.split(key, 16)

    params = {
        # conv weights in PyTorch OIHW layout
        "w1": 0.1 * jax.random.normal(ks[0], (width, inplanes, 1, 1), jnp.float32),
        "w2": 0.1 * jax.random.normal(ks[1], (width, width, 3, 3), jnp.float32),
        "w3": 0.1 * jax.random.normal(ks[2], (c_out, width, 1, 1), jnp.float32),
        # BN params / running stats (deterministic, nontrivial)
        "g1": 1.0 + 0.1 * jax.random.normal(ks[3], (width,), jnp.float32),
        "b1": 0.1 * jax.random.normal(ks[4], (width,), jnp.float32),
        "m1": 0.1 * jax.random.normal(ks[5], (width,), jnp.float32),
        "v1": 1.0 + 0.1 * jax.random.uniform(ks[6], (width,), jnp.float32),
        "g2": 1.0 + 0.1 * jax.random.normal(ks[7], (width,), jnp.float32),
        "b2": 0.1 * jax.random.normal(ks[8], (width,), jnp.float32),
        "m2": 0.1 * jax.random.normal(ks[9], (width,), jnp.float32),
        "v2": 1.0 + 0.1 * jax.random.uniform(ks[10], (width,), jnp.float32),
        "g3": 1.0 + 0.1 * jax.random.normal(ks[11], (c_out,), jnp.float32),
        "b3": 0.1 * jax.random.normal(ks[12], (c_out,), jnp.float32),
        "m3": 0.1 * jax.random.normal(ks[13], (c_out,), jnp.float32),
        "v3": 1.0 + 0.1 * jax.random.uniform(ks[14], (c_out,), jnp.float32),
    }

    x = jax.random.normal(ks[15], (N, inplanes, H, W), jnp.float32)  # NCHW like PyTorch

    fwd = jax.jit(bottleneck_forward)
    out = jax.block_until_ready(fwd(x, params))
    ref = jax.block_until_ready(bottleneck_reference(x, params))

    assert out.shape == (N, c_out, H, W)
    out_f32 = out.astype(jnp.float32)
    # Tolerance accounts for bf16 MXU inputs + bf16 activation I/O
    # (f32 accumulation and f32 epilogue in-kernel).
    max_err = float(jnp.max(jnp.abs(out_f32 - ref)))
    assert jnp.allclose(out_f32, ref, atol=5e-2, rtol=5e-2), max_err
    print("KERNEL_OK")
</pallas_src>

<mosaic_0001>
module attributes {stable_mosaic.version = 11 : i64} {
  func.func @_bottleneck_kernel(%arg0: i32, %arg1: memref<1x256x128xbf16, #tpu.memory_space<vmem>>, %arg2: memref<128x32xbf16, #tpu.memory_space<vmem>>, %arg3: memref<1x32xf32, #tpu.memory_space<vmem>>, %arg4: memref<288x32xbf16, #tpu.memory_space<vmem>>, %arg5: memref<1x32xf32, #tpu.memory_space<vmem>>, %arg6: memref<32x128xbf16, #tpu.memory_space<vmem>>, %arg7: memref<1x128xf32, #tpu.memory_space<vmem>>, %arg8: memref<1x256x128xbf16, #tpu.memory_space<vmem>>, %arg9: memref<304x32xbf16, #tpu.memory_space<vmem>>, %arg10: memref<256x288xbf16, #tpu.memory_space<vmem>>) attributes {dimension_semantics = [#tpu.dimension_semantics<parallel>], iteration_bounds = array<i64: 2>, scalar_prefetch = 0 : i64, scratch_operands = 2 : i64, tpu.core_type = #tpu.core_type<tc>, window_params = [{transform_indices = @transform_0, window_bounds = array<i64: 1, 256, 128>}, {pipeline_mode = #tpu.pipeline_mode<synchronous>, transform_indices = @transform_1, window_bounds = array<i64: 128, 32>}, {pipeline_mode = #tpu.pipeline_mode<synchronous>, transform_indices = @transform_2, window_bounds = array<i64: 1, 32>}, {pipeline_mode = #tpu.pipeline_mode<synchronous>, transform_indices = @transform_3, window_bounds = array<i64: 288, 32>}, {pipeline_mode = #tpu.pipeline_mode<synchronous>, transform_indices = @transform_4, window_bounds = array<i64: 1, 32>}, {pipeline_mode = #tpu.pipeline_mode<synchronous>, transform_indices = @transform_5, window_bounds = array<i64: 32, 128>}, {pipeline_mode = #tpu.pipeline_mode<synchronous>, transform_indices = @transform_6, window_bounds = array<i64: 1, 128>}, {transform_indices = @transform_7, window_bounds = array<i64: 1, 256, 128>}]} {
    %c0 = arith.constant 0 : index
    %c0_0 = arith.constant 0 : index
    %c0_1 = arith.constant 0 : index
    %0 = vector.load %arg1[%c0, %c0_0, %c0_1] : memref<1x256x128xbf16, #tpu.memory_space<vmem>>, vector<1x256x128xbf16>
    %1 = vector.shape_cast %0 : vector<1x256x128xbf16> to vector<256x128xbf16>
    %c0_2 = arith.constant 0 : index
    %c0_3 = arith.constant 0 : index
    %2 = vector.load %arg2[%c0_2, %c0_3] : memref<128x32xbf16, #tpu.memory_space<vmem>>, vector<128x32xbf16>
    %cst = arith.constant dense<0.000000e+00> : vector<256x32xf32>
    %3 = tpu.matmul %1, %2, %cst {dimension_numbers = #tpu.dot_dimension_numbers<[1], [0], [0], [1], [0, 0, 1, 1], [], []>} : vector<256x128xbf16>, vector<128x32xbf16>, vector<256x32xf32> -> vector<256x32xf32>
    %c0_4 = arith.constant 0 : index
    %c0_5 = arith.constant 0 : index
    %4 = vector.load %arg3[%c0_4, %c0_5] : memref<1x32xf32, #tpu.memory_space<vmem>>, vector<1x32xf32>
    %5 = vector.broadcast %4 : vector<1x32xf32> to vector<256x32xf32>
    %6 = arith.addf %3, %5 : vector<256x32xf32>
    %cst_6 = arith.constant 0.000000e+00 : f32
    %7 = vector.broadcast %cst_6 : f32 to vector<256x32xf32>
    %8 = arith.maximumf %6, %7 : vector<256x32xf32>
    %cst_7 = arith.constant 0.000000e+00 : bf16
    %9 = vector.broadcast %cst_7 : bf16 to vector<24x32xbf16>
    %c0_8 = arith.constant 0 : index
    %c0_9 = arith.constant 0 : index
    %10 = vector.load %arg9[%c0_8, %c0_9] : memref<304x32xbf16, #tpu.memory_space<vmem>>, vector<24x32xbf16>
    tpu.vector_store %arg9[%c0_8, %c0_9], %9 {strides = array<i32>} : memref<304x32xbf16, #tpu.memory_space<vmem>>, vector<24x32xbf16>,
    %cst_10 = arith.constant 0.000000e+00 : bf16
    %11 = vector.broadcast %cst_10 : bf16 to vector<24x32xbf16>
    %c280 = arith.constant 280 : index
    %c0_11 = arith.constant 0 : index
    %12 = vector.load %arg9[%c280, %c0_11] : memref<304x32xbf16, #tpu.memory_space<vmem>>, vector<24x32xbf16>
    tpu.vector_store %arg9[%c280, %c0_11], %11 {strides = array<i32>} : memref<304x32xbf16, #tpu.memory_space<vmem>>, vector<24x32xbf16>,
    %13 = arith.truncf %8 : vector<256x32xf32> to vector<256x32xbf16>
    %c24 = arith.constant 24 : index
    %c0_12 = arith.constant 0 : index
    %14 = vector.load %arg9[%c24, %c0_12] : memref<304x32xbf16, #tpu.memory_space<vmem>>, vector<256x32xbf16>
    tpu.vector_store %arg9[%c24, %c0_12], %13 {strides = array<i32>} : memref<304x32xbf16, #tpu.memory_space<vmem>>, vector<256x32xbf16>,
    %15 = tpu.iota {dimensions = array<i32: 0>} : vector<256x1xi32>
    %c16_i32 = arith.constant 16 : i32
    %c0_i32 = arith.constant 0 : i32
    %16 = arith.cmpi eq, %c16_i32, %c0_i32 : i32
    %c1_i32 = arith.constant 1 : i32
    %17 = arith.select %16, %c1_i32, %c16_i32 : i32
    %18 = vector.broadcast %17 : i32 to vector<256x1xi32>
    %19 = arith.remsi %15, %18 : vector<256x1xi32>
    %c0_i32_13 = arith.constant 0 : i32
    %20 = vector.broadcast %c0_i32_13 : i32 to vector<256x1xi32>
    %21 = arith.cmpi ne, %19, %20 : vector<256x1xi32>
    %c0_i32_14 = arith.constant 0 : i32
    %22 = vector.broadcast %c0_i32_14 : i32 to vector<256x1xi32>
    %23 = arith.cmpi slt, %19, %22 : vector<256x1xi32>
    %c0_i32_15 = arith.constant 0 : i32
    %24 = arith.cmpi slt, %17, %c0_i32_15 : i32
    %25 = vector.broadcast %24 : i1 to vector<256x1xi1>
    %26 = vector.broadcast %25 : vector<256x1xi1> to vector<256x1xi1>
    %27 = arith.xori %23, %26 : vector<256x1xi1>
    %28 = arith.andi %27, %21 : vector<256x1xi1>
    %29 = vector.broadcast %17 : i32 to vector<256x1xi32>
    %30 = arith.addi %19, %29 : vector<256x1xi32>
    %31 = arith.select %28, %30, %19 : vector<256x1xi1>, vector<256x1xi32>
    %c0_i32_16 = arith.constant 0 : i32
    %32 = vector.broadcast %c0_i32_16 : i32 to vector<256x1xi32>
    %33 = arith.cmpi ne, %31, %32 : vector<256x1xi32>
    %34 = vector.shape_cast %33 : vector<256x1xi1> to vector<256x1xi1>
    %35 = vector.broadcast %34 : vector<256x1xi1> to vector<256x32xi1>
    %c15_i32 = arith.constant 15 : i32
    %36 = vector.broadcast %c15_i32 : i32 to vector<256x1xi32>
    %37 = arith.cmpi ne, %31, %36 : vector<256x1xi32>
    %38 = vector.shape_cast %37 : vector<256x1xi1> to vector<256x1xi1>
    %39 = vector.broadcast %38 : vector<256x1xi1> to vector<256x32xi1>
    %c7 = arith.constant 7 : index
    %c0_17 = arith.constant 0 : index
    %40 = vector.load %arg9[%c7, %c0_17] : memref<304x32xbf16, #tpu.memory_space<vmem>>, vector<256x32xbf16>
    %c0_i32_18 = arith.constant 0 : i32
    %41 = arith.sitofp %c0_i32_18 : i32 to bf16
    %42 = vector.broadcast %41 : bf16 to vector<256x32xbf16>
    %43 = arith.select %35, %40, %42 : vector<256x32xi1>, vector<256x32xbf16>
    %c0_19 = arith.constant 0 : index
    %c0_20 = arith.constant 0 : index
    %44 = vector.load %arg10[%c0_19, %c0_20] : memref<256x288xbf16, #tpu.memory_space<vmem>>, vector<256x32xbf16>
    tpu.vector_store %arg10[%c0_19, %c0_20], %43 {strides = array<i32>} : memref<256x288xbf16, #tpu.memory_space<vmem>>, vector<256x32xbf16>,
    %c8 = arith.constant 8 : index
    %c0_21 = arith.constant 0 : index
    %45 = vector.load %arg9[%c8, %c0_21] : memref<304x32xbf16, #tpu.memory_space<vmem>>, vector<256x32xbf16>
    %c0_22 = arith.constant 0 : index
    %c32 = arith.constant 32 : index
    %46 = vector.load %arg10[%c0_22, %c32] : memref<256x288xbf16, #tpu.memory_space<vmem>>, vector<256x32xbf16>
    tpu.vector_store %arg10[%c0_22, %c32], %45 {strides = array<i32>} : memref<256x288xbf16, #tpu.memory_space<vmem>>, vector<256x32xbf16>,
    %c9 = arith.constant 9 : index
    %c0_23 = arith.constant 0 : index
    %47 = vector.load %arg9[%c9, %c0_23] : memref<304x32xbf16, #tpu.memory_space<vmem>>, vector<256x32xbf16>
    %c0_i32_24 = arith.constant 0 : i32
    %48 = arith.sitofp %c0_i32_24 : i32 to bf16
    %49 = vector.broadcast %48 : bf16 to vector<256x32xbf16>
    %50 = arith.select %39, %47, %49 : vector<256x32xi1>, vector<256x32xbf16>
    %c0_25 = arith.constant 0 : index
    %c64 = arith.constant 64 : index
    %51 = vector.load %arg10[%c0_25, %c64] : memref<256x288xbf16, #tpu.memory_space<vmem>>, vector<256x32xbf16>
    tpu.vector_store %arg10[%c0_25, %c64], %50 {strides = array<i32>} : memref<256x288xbf16, #tpu.memory_space<vmem>>, vector<256x32xbf16>,
    %c23 = arith.constant 23 : index
    %c0_26 = arith.constant 0 : index
    %52 = vector.load %arg9[%c23, %c0_26] : memref<304x32xbf16, #tpu.memory_space<vmem>>, vector<256x32xbf16>
    %c0_i32_27 = arith.constant 0 : i32
    %53 = arith.sitofp %c0_i32_27 : i32 to bf16
    %54 = vector.broadcast %53 : bf16 to vector<256x32xbf16>
    %55 = arith.select %35, %52, %54 : vector<256x32xi1>, vector<256x32xbf16>
    %c0_28 = arith.constant 0 : index
    %c96 = arith.constant 96 : index
    %56 = vector.load %arg10[%c0_28, %c96] : memref<256x288xbf16, #tpu.memory_space<vmem>>, vector<256x32xbf16>
    tpu.vector_store %arg10[%c0_28, %c96], %55 {strides = array<i32>} : memref<256x288xbf16, #tpu.memory_space<vmem>>, vector<256x32xbf16>,
    %c24_29 = arith.constant 24 : index
    %c0_30 = arith.constant 0 : index
    %57 = vector.load %arg9[%c24_29, %c0_30] : memref<304x32xbf16, #tpu.memory_space<vmem>>, vector<256x32xbf16>
    %c0_31 = arith.constant 0 : index
    %c128 = arith.constant 128 : index
    %58 = vector.load %arg10[%c0_31, %c128] : memref<256x288xbf16, #tpu.memory_space<vmem>>, vector<256x32xbf16>
    tpu.vector_store %arg10[%c0_31, %c128], %57 {strides = array<i32>} : memref<256x288xbf16, #tpu.memory_space<vmem>>, vector<256x32xbf16>,
    %c25 = arith.constant 25 : index
    %c0_32 = arith.constant 0 : index
    %59 = vector.load %arg9[%c25, %c0_32] : memref<304x32xbf16, #tpu.memory_space<vmem>>, vector<256x32xbf16>
    %c0_i32_33 = arith.constant 0 : i32
    %60 = arith.sitofp %c0_i32_33 : i32 to bf16
    %61 = vector.broadcast %60 : bf16 to vector<256x32xbf16>
    %62 = arith.select %39, %59, %61 : vector<256x32xi1>, vector<256x32xbf16>
    %c0_34 = arith.constant 0 : index
    %c160 = arith.constant 160 : index
    %63 = vector.load %arg10[%c0_34, %c160] : memref<256x288xbf16, #tpu.memory_space<vmem>>, vector<256x32xbf16>
    tpu.vector_store %arg10[%c0_34, %c160], %62 {strides = array<i32>} : memref<256x288xbf16, #tpu.memory_space<vmem>>, vector<256x32xbf16>,
    %c39 = arith.constant 39 : index
    %c0_35 = arith.constant 0 : index
    %64 = vector.load %arg9[%c39, %c0_35] : memref<304x32xbf16, #tpu.memory_space<vmem>>, vector<256x32xbf16>
    %c0_i32_36 = arith.constant 0 : i32
    %65 = arith.sitofp %c0_i32_36 : i32 to bf16
    %66 = vector.broadcast %65 : bf16 to vector<256x32xbf16>
    %67 = arith.select %35, %64, %66 : vector<256x32xi1>, vector<256x32xbf16>
    %c0_37 = arith.constant 0 : index
    %c192 = arith.constant 192 : index
    %68 = vector.load %arg10[%c0_37, %c192] : memref<256x288xbf16, #tpu.memory_space<vmem>>, vector<256x32xbf16>
    tpu.vector_store %arg10[%c0_37, %c192], %67 {strides = array<i32>} : memref<256x288xbf16, #tpu.memory_space<vmem>>, vector<256x32xbf16>,
    %c40 = arith.constant 40 : index
    %c0_38 = arith.constant 0 : index
    %69 = vector.load %arg9[%c40, %c0_38] : memref<304x32xbf16, #tpu.memory_space<vmem>>, vector<256x32xbf16>
    %c0_39 = arith.constant 0 : index
    %c224 = arith.constant 224 : index
    %70 = vector.load %arg10[%c0_39, %c224] : memref<256x288xbf16, #tpu.memory_space<vmem>>, vector<256x32xbf16>
    tpu.vector_store %arg10[%c0_39, %c224], %69 {strides = array<i32>} : memref<256x288xbf16, #tpu.memory_space<vmem>>, vector<256x32xbf16>,
    %c41 = arith.constant 41 : index
    %c0_40 = arith.constant 0 : index
    %71 = vector.load %arg9[%c41, %c0_40] : memref<304x32xbf16, #tpu.memory_space<vmem>>, vector<256x32xbf16>
    %c0_i32_41 = arith.constant 0 : i32
    %72 = arith.sitofp %c0_i32_41 : i32 to bf16
    %73 = vector.broadcast %72 : bf16 to vector<256x32xbf16>
    %74 = arith.select %39, %71, %73 : vector<256x32xi1>, vector<256x32xbf16>
    %c0_42 = arith.constant 0 : index
    %c256 = arith.constant 256 : index
    %75 = vector.load %arg10[%c0_42, %c256] : memref<256x288xbf16, #tpu.memory_space<vmem>>, vector<256x32xbf16>
    tpu.vector_store %arg10[%c0_42, %c256], %74 {strides = array<i32>} : memref<256x288xbf16, #tpu.memory_space<vmem>>, vector<256x32xbf16>,
    %c0_43 = arith.constant 0 : index
    %c0_44 = arith.constant 0 : index
    %76 = vector.load %arg10[%c0_43, %c0_44] : memref<256x288xbf16, #tpu.memory_space<vmem>>, vector<256x288xbf16>
    %c0_45 = arith.constant 0 : index
    %c0_46 = arith.constant 0 : index
    %77 = vector.load %arg4[%c0_45, %c0_46] : memref<288x32xbf16, #tpu.memory_space<vmem>>, vector<288x32xbf16>
    %cst_47 = arith.constant dense<0.000000e+00> : vector<256x32xf32>
    %78 = tpu.matmul %76, %77, %cst_47 {dimension_numbers = #tpu.dot_dimension_numbers<[1], [0], [0], [1], [0, 0, 1, 1], [], []>} : vector<256x288xbf16>, vector<288x32xbf16>, vector<256x32xf32> -> vector<256x32xf32>
    %c0_48 = arith.constant 0 : index
    %c0_49 = arith.constant 0 : index
    %79 = vector.load %arg5[%c0_48, %c0_49] : memref<1x32xf32, #tpu.memory_space<vmem>>, vector<1x32xf32>
    %80 = vector.broadcast %79 : vector<1x32xf32> to vector<256x32xf32>
    %81 = arith.addf %78, %80 : vector<256x32xf32>
    %cst_50 = arith.constant 0.000000e+00 : f32
    %82 = vector.broadcast %cst_50 : f32 to vector<256x32xf32>
    %83 = arith.maximumf %81, %82 : vector<256x32xf32>
    %84 = arith.truncf %83 : vector<256x32xf32> to vector<256x32xbf16>
    %c0_51 = arith.constant 0 : index
    %c0_52 = arith.constant 0 : index
    %85 = vector.load %arg6[%c0_51, %c0_52] : memref<32x128xbf16, #tpu.memory_space<vmem>>, vector<32x128xbf16>
    %cst_53 = arith.constant dense<0.000000e+00> : vector<256x128xf32>
    %86 = tpu.matmul %84, %85, %cst_53 {dimension_numbers = #tpu.dot_dimension_numbers<[1], [0], [0], [1], [0, 0, 1, 1], [], []>} : vector<256x32xbf16>, vector<32x128xbf16>, vector<256x128xf32> -> vector<256x128xf32>
    %c0_54 = arith.constant 0 : index
    %c0_55 = arith.constant 0 : index
    %87 = vector.load %arg7[%c0_54, %c0_55] : memref<1x128xf32, #tpu.memory_space<vmem>>, vector<1x128xf32>
    %88 = vector.broadcast %87 : vector<1x128xf32> to vector<256x128xf32>
    %89 = arith.addf %86, %88 : vector<256x128xf32>
    %c0_56 = arith.constant 0 : index
    %c0_57 = arith.constant 0 : index
    %c0_58 = arith.constant 0 : index
    %90 = vector.load %arg1[%c0_56, %c0_57, %c0_58] : memref<1x256x128xbf16, #tpu.memory_space<vmem>>, vector<1x256x128xbf16>
    %91 = vector.shape_cast %90 : vector<1x256x128xbf16> to vector<256x128xbf16>
    %92 = arith.extf %91 : vector<256x128xbf16> to vector<256x128xf32>
    %93 = arith.addf %89, %92 : vector<256x128xf32>
    %cst_59 = arith.constant 0.000000e+00 : f32
    %94 = vector.broadcast %cst_59 : f32 to vector<256x128xf32>
    %95 = arith.maximumf %93, %94 : vector<256x128xf32>
    %96 = arith.truncf %95 : vector<256x128xf32> to vector<256x128xbf16>
    %c0_60 = arith.constant 0 : index
    %c0_61 = arith.constant 0 : index
    %c0_62 = arith.constant 0 : index
    %97 = vector.load %arg8[%c0_60, %c0_61, %c0_62] : memref<1x256x128xbf16, #tpu.memory_space<vmem>>, vector<1x256x128xbf16>
    %98 = vector.shape_cast %97 : vector<1x256x128xbf16> to vector<256x128xbf16>
    %99 = vector.shape_cast %96 : vector<256x128xbf16> to vector<1x256x128xbf16>
    tpu.vector_store %arg8[%c0_60, %c0_61, %c0_62], %99 {strides = array<i32>} : memref<1x256x128xbf16, #tpu.memory_space<vmem>>, vector<1x256x128xbf16>,
    return
  }
  func.func @transform_0(%arg0: i32) -> (i32, i32, i32) {
    %c0_i32 = arith.constant 0 : i32
    %c0_i32_0 = arith.constant 0 : i32
    %c0_i32_1 = arith.constant 0 : i32
    return %arg0, %c0_i32, %c0_i32_0 : i32, i32, i32
  }
  func.func @transform_1(%arg0: i32) -> (i32, i32) {
    %c0_i32 = arith.constant 0 : i32
    %c0_i32_0 = arith.constant 0 : i32
    %c0_i32_1 = arith.constant 0 : i32
    return %c0_i32, %c0_i32_0 : i32, i32
  }
  func.func @transform_2(%arg0: i32) -> (i32, i32) {
    %c0_i32 = arith.constant 0 : i32
    %c0_i32_0 = arith.constant 0 : i32
    %c0_i32_1 = arith.constant 0 : i32
    return %c0_i32, %c0_i32_0 : i32, i32
  }
  func.func @transform_3(%arg0: i32) -> (i32, i32) {
    %c0_i32 = arith.constant 0 : i32
    %c0_i32_0 = arith.constant 0 : i32
    %c0_i32_1 = arith.constant 0 : i32
    return %c0_i32, %c0_i32_0 : i32, i32
  }
  func.func @transform_4(%arg0: i32) -> (i32, i32) {
    %c0_i32 = arith.constant 0 : i32
    %c0_i32_0 = arith.constant 0 : i32
    %c0_i32_1 = arith.constant 0 : i32
    return %c0_i32, %c0_i32_0 : i32, i32
  }
  func.func @transform_5(%arg0: i32) -> (i32, i32) {
    %c0_i32 = arith.constant 0 : i32
    %c0_i32_0 = arith.constant 0 : i32
    %c0_i32_1 = arith.constant 0 : i32
    return %c0_i32, %c0_i32_0 : i32, i32
  }
  func.func @transform_6(%arg0: i32) -> (i32, i32) {
    %c0_i32 = arith.constant 0 : i32
    %c0_i32_0 = arith.constant 0 : i32
    %c0_i32_1 = arith.constant 0 : i32
    return %c0_i32, %c0_i32_0 : i32, i32
  }
  func.func @transform_7(%arg0: i32) -> (i32, i32, i32) {
    %c0_i32 = arith.constant 0 : i32
    %c0_i32_0 = arith.constant 0 : i32
    %c0_i32_1 = arith.constant 0 : i32
    return %arg0, %c0_i32, %c0_i32_0 : i32, i32, i32
  }
}

</mosaic_0001>

<llo_original>
// kernel: bottleneck_forward.1
$region0: #{bottleneck_forward.1}
  #allocation0 [shape = 'u32[]', space=smem, size = 0x4, offset = 0x4, fixed_abs, tag = 'smem constant byte address 0x4 - core index']
  #allocation1 [shape = 'u32[144,128]{1,0:T(1,128)}', space=vmem, size = 0x12000, scoped, tag = 'internal scratch']
  #allocation2 [shape = 'bf16[304,32]{1,0:T(16,128)(2,1)}', space=vmem, size = 0x13000, scoped, tag = 'scratch operand']
  #allocation3 [shape = 'bf16[256,288]{1,0:T(16,128)(2,1)}', space=vmem, size = 0x30000, scoped, tag = 'scratch operand']
  %s0 = inlined_call_operand.hbm [shape: bf16[2,256,128], index: 0, kind: input, shape index: {}]
  %s1 = inlined_call_operand.hbm [shape: bf16[128,32], index: 1, kind: input, shape index: {}]
  %s2 = inlined_call_operand.hbm [shape: f32[1,32], index: 2, kind: input, shape index: {}]
  %s3 = inlined_call_operand.hbm [shape: bf16[288,32], index: 3, kind: input, shape index: {}]
  %s4 = inlined_call_operand.hbm [shape: f32[1,32], index: 4, kind: input, shape index: {}]
  %s5 = inlined_call_operand.hbm [shape: bf16[32,128], index: 5, kind: input, shape index: {}]
  %s6 = inlined_call_operand.hbm [shape: f32[1,128], index: 6, kind: input, shape index: {}]
  %s7 = inlined_call_operand.hbm [shape: bf16[2,256,128], index: 7, kind: output, shape index: {}]
  %s8 = sld [smem:[#allocation0]]
  $region89: #{bottleneck_forward.1} parent=0
    _
  %s10 = ssub.s32 1, %s8
  %s11 = scalar_select 0, %s10, %s8
  $region1: #{bottleneck_forward.1} parent=0
    #allocation4 [shape = 'u8[131072]{0}', space=vmem, size = 0x20000, scoped, tag = 'input window, operand 0']
    #allocation5 [shape = 's32[2]{0}', space=sflag, size = 0x8, scoped, tag = 'scoped memory for bottleneck_forward.1']
    #allocation6 [shape = 's32[2]{0}', space=sflag, size = 0x8, scoped, tag = 'scoped memory for bottleneck_forward.1']
    #allocation7 [shape = 'u8[32768]{0}', space=vmem, size = 0x8000, scoped, tag = 'input window, operand 1, single buffered']
    #allocation8 [shape = 's32[1]{0}', space=sflag, size = 0x4, scoped, tag = 'scoped memory for bottleneck_forward.1']
    #allocation9 [shape = 'u8[512]{0}', space=vmem, size = 0x400, scoped, tag = 'input window, operand 2, single buffered']
    #allocation10 [shape = 'u8[73728]{0}', space=vmem, size = 0x12000, scoped, tag = 'input window, operand 3, single buffered']
    #allocation11 [shape = 's32[1]{0}', space=sflag, size = 0x4, scoped, tag = 'scoped memory for bottleneck_forward.1']
    #allocation12 [shape = 'u8[512]{0}', space=vmem, size = 0x400, scoped, tag = 'input window, operand 4, single buffered']
    #allocation13 [shape = 'u8[8192]{0}', space=vmem, size = 0x2000, scoped, tag = 'input window, operand 5, single buffered']
    #allocation14 [shape = 's32[1]{0}', space=sflag, size = 0x4, scoped, tag = 'scoped memory for bottleneck_forward.1']
    #allocation15 [shape = 'u8[512]{0}', space=vmem, size = 0x400, scoped, tag = 'input window, operand 6, single buffered']
    #allocation16 [shape = 'u8[131072]{0}', space=vmem, size = 0x20000, scoped, tag = 'output window, operand 0']
    %12 = vsyncpa [#allocation5], 0
    %s13 = scalar_lea.sflag [#allocation5], 1
    %14 = vsyncpa %s13, 0
    %15 = vsyncpa [#allocation8], 0
    %16 = vsyncpa [#allocation11], 0
    %17 = vsyncpa [#allocation14], 0
    %18 = vsyncpa [#allocation6], 0
    %s19 = scalar_lea.sflag [#allocation6], 1
    %20 = vsyncpa %s19, 0
    loop: start=0, step=1, limit=4
    $region2: #{bottleneck_forward.1} parent=1 // loop_pre_header
      _
    $region3: #{bottleneck_forward.1} parent=1 // loop_header
      %s22 = sphi 0, %s26
      %p23 = scmp.ge.s32.totalorder %s22, 4
      %s32 = sphi 0, %s34
      %s35 = sphi 0, %s32
      %s36 = sphi 0, %s35
      %s52 = sphi 0, %s36
      %s56 = sphi 0, %s56
      %s58 = sphi 0, %s56
      %s59 = sphi 0, %s58
      %s73 = sphi 0, %s59
      %s77 = sphi 0, %s77
      %s79 = sphi 0, %s77
      %s80 = sphi 0, %s79
      %s94 = sphi 0, %s80
      %s98 = sphi 0, %s98
      %s100 = sphi 0, %s98
      %s101 = sphi 0, %s100
      %s115 = sphi 0, %s101
      %s119 = sphi 0, %s119
      %s121 = sphi 0, %s119
      %s122 = sphi 0, %s121
      %s136 = sphi 0, %s122
      %s140 = sphi 0, %s140
      %s142 = sphi 0, %s140
      %s143 = sphi 0, %s142
      %s157 = sphi 0, %s143
      %s161 = sphi 0, %s161
      %s163 = sphi 0, %s161
      %s164 = sphi 0, %s163
      %s178 = sphi 0, %s164
      %s184 = sphi 0, %s186
      %s187 = sphi 0, %s184
      %s188 = sphi 0, %s187
      %s204 = sphi 0, %s188
    $region4: #{bottleneck_forward.1} parent=1 // loop_header_branch
      %25 = sbr.rel (%p23) target = $region8
    $region5: #{bottleneck_forward.1} parent=1 // loop_body
      %s27 = ssub.s32 %s22, 1
      %s28 = ssub.s32 %s22, 2
      %s29 = sadd.s32 %s22, 1
      %s30 = ssub.s32 %s22, %s29
      %p31 = scmp.eq.s32.totalorder %s30, 0
      %s33 = sadd.s32 %s32, 1
      %s34 = scalar_select %p31, %s32, %s33
      %p37 = pneg %p31
      %p38 = scmp.eq.s32.totalorder %s22, 1
      %p39 = por %p37, %p38
      %p40 = scmp.ne.s32.totalorder %s32, %s35
      %p41 = scmp.eq.s32.totalorder %s22, 0
      %p42 = por %p40, %p41
      %p43 = scmp.ne.s32.totalorder %s32, %s35
      %p44 = scmp.eq.s32.totalorder %s27, 1
      %p45 = por %p43, %p44
      %p46 = scmp.ne.s32.totalorder %s35, %s36
      %p47 = scmp.eq.s32.totalorder %s27, 0
      %p48 = por %p46, %p47
      %p49 = scmp.ne.s32.totalorder %s35, %s36
      %p50 = scmp.eq.s32.totalorder %s28, 1
      %p51 = por %p49, %p50
      %p53 = scmp.ne.s32.totalorder %s36, %s52
      %p54 = scmp.eq.s32.totalorder %s28, 0
      %p55 = por %p53, %p54
      %s57 = sadd.s32 %s56, 1
      %p60 = scmp.eq.s32.totalorder %s22, 1
      %p61 = scmp.ne.s32.totalorder %s56, %s58
      %p62 = scmp.eq.s32.totalorder %s22, 0
      %p63 = por %p61, %p62
      %p64 = scmp.ne.s32.totalorder %s56, %s58
      %p65 = scmp.eq.s32.totalorder %s27, 1
      %p66 = por %p64, %p65
      %p67 = scmp.ne.s32.totalorder %s58, %s59
      %p68 = scmp.eq.s32.totalorder %s27, 0
      %p69 = por %p67, %p68
      %p70 = scmp.ne.s32.totalorder %s58, %s59
      %p71 = scmp.eq.s32.totalorder %s28, 1
      %p72 = por %p70, %p71
      %p74 = scmp.ne.s32.totalorder %s59, %s73
      %p75 = scmp.eq.s32.totalorder %s28, 0
      %p76 = por %p74, %p75
      %s78 = sadd.s32 %s77, 1
      %p81 = scmp.eq.s32.totalorder %s22, 1
      %p82 = scmp.ne.s32.totalorder %s77, %s79
      %p83 = scmp.eq.s32.totalorder %s22, 0
      %p84 = por %p82, %p83
      %p85 = scmp.ne.s32.totalorder %s77, %s79
      %p86 = scmp.eq.s32.totalorder %s27, 1
      %p87 = por %p85, %p86
      %p88 = scmp.ne.s32.totalorder %s79, %s80
      %p89 = scmp.eq.s32.totalorder %s27, 0
      %p90 = por %p88, %p89
      %p91 = scmp.ne.s32.totalorder %s79, %s80
      %p92 = scmp.eq.s32.totalorder %s28, 1
      %p93 = por %p91, %p92
      %p95 = scmp.ne.s32.totalorder %s80, %s94
      %p96 = scmp.eq.s32.totalorder %s28, 0
      %p97 = por %p95, %p96
      %s99 = sadd.s32 %s98, 1
      %p102 = scmp.eq.s32.totalorder %s22, 1
      %p103 = scmp.ne.s32.totalorder %s98, %s100
      %p104 = scmp.eq.s32.totalorder %s22, 0
      %p105 = por %p103, %p104
      %p106 = scmp.ne.s32.totalorder %s98, %s100
      %p107 = scmp.eq.s32.totalorder %s27, 1
      %p108 = por %p106, %p107
      %p109 = scmp.ne.s32.totalorder %s100, %s101
      %p110 = scmp.eq.s32.totalorder %s27, 0
      %p111 = por %p109, %p110
      %p112 = scmp.ne.s32.totalorder %s100, %s101
      %p113 = scmp.eq.s32.totalorder %s28, 1
      %p114 = por %p112, %p113
      %p116 = scmp.ne.s32.totalorder %s101, %s115
      %p117 = scmp.eq.s32.totalorder %s28, 0
      %p118 = por %p116, %p117
      %s120 = sadd.s32 %s119, 1
      %p123 = scmp.eq.s32.totalorder %s22, 1
      %p124 = scmp.ne.s32.totalorder %s119, %s121
      %p125 = scmp.eq.s32.totalorder %s22, 0
      %p126 = por %p124, %p125
      %p127 = scmp.ne.s32.totalorder %s119, %s121
      %p128 = scmp.eq.s32.totalorder %s27, 1
      %p129 = por %p127, %p128
      %p130 = scmp.ne.s32.totalorder %s121, %s122
      %p131 = scmp.eq.s32.totalorder %s27, 0
      %p132 = por %p130, %p131
      %p133 = scmp.ne.s32.totalorder %s121, %s122
      %p134 = scmp.eq.s32.totalorder %s28, 1
      %p135 = por %p133, %p134
      %p137 = scmp.ne.s32.totalorder %s122, %s136
      %p138 = scmp.eq.s32.totalorder %s28, 0
      %p139 = por %p137, %p138
      %s141 = sadd.s32 %s140, 1
      %p144 = scmp.eq.s32.totalorder %s22, 1
      %p145 = scmp.ne.s32.totalorder %s140, %s142
      %p146 = scmp.eq.s32.totalorder %s22, 0
      %p147 = por %p145, %p146
      %p148 = scmp.ne.s32.totalorder %s140, %s142
      %p149 = scmp.eq.s32.totalorder %s27, 1
      %p150 = por %p148, %p149
      %p151 = scmp.ne.s32.totalorder %s142, %s143
      %p152 = scmp.eq.s32.totalorder %s27, 0
      %p153 = por %p151, %p152
      %p154 = scmp.ne.s32.totalorder %s142, %s143
      %p155 = scmp.eq.s32.totalorder %s28, 1
      %p156 = por %p154, %p155
      %p158 = scmp.ne.s32.totalorder %s143, %s157
      %p159 = scmp.eq.s32.totalorder %s28, 0
      %p160 = por %p158, %p159
      %s162 = sadd.s32 %s161, 1
      %p165 = scmp.eq.s32.totalorder %s22, 1
      %p166 = scmp.ne.s32.totalorder %s161, %s163
      %p167 = scmp.eq.s32.totalorder %s22, 0
      %p168 = por %p166, %p167
      %p169 = scmp.ne.s32.totalorder %s161, %s163
      %p170 = scmp.eq.s32.totalorder %s27, 1
      %p171 = por %p169, %p170
      %p172 = scmp.ne.s32.totalorder %s163, %s164
      %p173 = scmp.eq.s32.totalorder %s27, 0
      %p174 = por %p172, %p173
      %p175 = scmp.ne.s32.totalorder %s163, %s164
      %p176 = scmp.eq.s32.totalorder %s28, 1
      %p177 = por %p175, %p176
      %p179 = scmp.ne.s32.totalorder %s164, %s178
      %p180 = scmp.eq.s32.totalorder %s28, 0
      %p181 = por %p179, %p180
      %s182 = ssub.s32 %s22, %s29
      %p183 = scmp.eq.s32.totalorder %s182, 0
      %s185 = sadd.s32 %s184, 1
      %s186 = scalar_select %p183, %s184, %s185
      %p189 = pneg %p183
      %p190 = scmp.eq.s32.totalorder %s22, 1
      %p191 = por %p189, %p190
      %p192 = scmp.ne.s32.totalorder %s184, %s187
      %p193 = scmp.eq.s32.totalorder %s22, 0
      %p194 = por %p192, %p193
      %p195 = scmp.ne.s32.totalorder %s184, %s187
      %p196 = scmp.eq.s32.totalorder %s27, 1
      %p197 = por %p195, %p196
      %p198 = scmp.ne.s32.totalorder %s187, %s188
      %p199 = scmp.eq.s32.totalorder %s27, 0
      %p200 = por %p198, %p199
      %p201 = scmp.ne.s32.totalorder %s187, %s188
      %p202 = scmp.eq.s32.totalorder %s28, 1
      %p203 = por %p201, %p202
      %p205 = scmp.ne.s32.totalorder %s188, %s204
      %p206 = scmp.eq.s32.totalorder %s28, 0
      %p207 = por %p205, %p206
      %p208 = scmp.le.s32.totalorder 1, %s22
      %p209 = scmp.lt.s32.totalorder %s22, 3
      %p210 = pnand %p208, %p209
      %p211 = pneg %p210
      // Predicated region
      $region9: #{bottleneck_forward.1} parent=5 // pred_check
        _
      $region10: #{bottleneck_forward.1} parent=5 // pred_check_branch
        %213 = sbr.rel (%p210) target = $region12
      $region11: #{bottleneck_forward.1} parent=5 // pred_region
        %s214 = ssub.s32 %s22, 1
        // Predicated region
        $region13: #{bottleneck_forward.1} parent=11 // pred_check
          %p215 = pneg %p69
        $region14: #{bottleneck_forward.1} parent=11 // pred_check_branch
          %217 = sbr.rel (%p215) target = $region16
        $region15: #{bottleneck_forward.1} parent=11 // pred_region
          %s219 = ssub.s32 1024, 1024
          %220 = vsyncadd [#allocation8], %s219
          %s221 = sshll.u32 [#allocation7], 4
          %s222 = int_to_ptr.vmem [resolvable:$true] %s221
          %227 = dma.hbm_to_vmem [thread:$0]  %s1, 1024, %s222, [#allocation8], 64, 64, 4
        $region16: #{bottleneck_forward.1} parent=11 // pred_fallthru
          _
        // Predicated region
        $region17: #{bottleneck_forward.1} parent=11 // pred_check
          %p228 = pneg %p90
        $region18: #{bottleneck_forward.1} parent=11 // pred_check_branch
          %230 = sbr.rel (%p228) target = $region20
        $region19: #{bottleneck_forward.1} parent=11 // pred_region
          %s232 = ssub.s32 16, 16
          %233 = vsyncadd [#allocation8], %s232
          %s235 = sshll.u32 [#allocation9], 4
          %s236 = int_to_ptr.vmem [resolvable:$true] %s235
          %238 = dma.hbm_to_vmem [thread:$0]  %s2, 16, %s236, [#allocation8]
        $region20: #{bottleneck_forward.1} parent=11 // pred_fallthru
          _
        // Predicated region
        $region21: #{bottleneck_forward.1} parent=11 // pred_check
          %p239 = pneg %p111
        $region22: #{bottleneck_forward.1} parent=11 // pred_check_branch
          %241 = sbr.rel (%p239) target = $region24
        $region23: #{bottleneck_forward.1} parent=11 // pred_region
          %s243 = ssub.s32 2304, 2304
          %244 = vsyncadd [#allocation11], %s243
          %s245 = sshll.u32 [#allocation10], 4
          %s246 = int_to_ptr.vmem [resolvable:$true] %s245
          %251 = dma.hbm_to_vmem [thread:$0]  %s3, 2304, %s246, [#allocation11], 64, 64, 4
        $region24: #{bottleneck_forward.1} parent=11 // pred_fallthru
          _
        // Predicated region
        $region25: #{bottleneck_forward.1} parent=11 // pred_check
          %p252 = pneg %p132
        $region26: #{bottleneck_forward.1} parent=11 // pred_check_branch
          %254 = sbr.rel (%p252) target = $region28
        $region27: #{bottleneck_forward.1} parent=11 // pred_region
          %s256 = ssub.s32 16, 16
          %257 = vsyncadd [#allocation11], %s256
          %s259 = sshll.u32 [#allocation12], 4
          %s260 = int_to_ptr.vmem [resolvable:$true] %s259
          %262 = dma.hbm_to_vmem [thread:$0]  %s4, 16, %s260, [#allocation11]
        $region28: #{bottleneck_forward.1} parent=11 // pred_fallthru
          _
        // Predicated region
        $region29: #{bottleneck_forward.1} parent=11 // pred_check
          %p263 = pneg %p153
        $region30: #{bottleneck_forward.1} parent=11 // pred_check_branch
          %265 = sbr.rel (%p263) target = $region32
        $region31: #{bottleneck_forward.1} parent=11 // pred_region
          %s267 = ssub.s32 256, 256
          %268 = vsyncadd [#allocation14], %s267
          %s269 = sshll.u32 [#allocation13], 4
          %s270 = int_to_ptr.vmem [resolvable:$true] %s269
          %275 = dma.hbm_to_vmem [thread:$0]  %s5, 256, %s270, [#allocation14], 64, 64, 4
        $region32: #{bottleneck_forward.1} parent=11 // pred_fallthru
          _
        // Predicated region
        $region33: #{bottleneck_forward.1} parent=11 // pred_check
          %p276 = pneg %p174
        $region34: #{bottleneck_forward.1} parent=11 // pred_check_branch
          %278 = sbr.rel (%p276) target = $region36
        $region35: #{bottleneck_forward.1} parent=11 // pred_region
          %s280 = ssub.s32 16, 16
          %281 = vsyncadd [#allocation14], %s280
          %s283 = sshll.u32 [#allocation15], 4
          %s284 = int_to_ptr.vmem [resolvable:$true] %s283
          %286 = dma.hbm_to_vmem [thread:$0]  %s6, 16, %s284, [#allocation14]
        $region36: #{bottleneck_forward.1} parent=11 // pred_fallthru
          _
      $region12: #{bottleneck_forward.1} parent=5 // pred_fallthru
        _
      %p287 = scmp.lt.s32.totalorder %s22, 2
      // Predicated region
      $region37: #{bottleneck_forward.1} parent=5 // pred_check
        %p288 = pneg %p287
      $region38: #{bottleneck_forward.1} parent=5 // pred_check_branch
        %290 = sbr.rel (%p288) target = $region40
      $region39: #{bottleneck_forward.1} parent=5 // pred_region
        // Predicated region
        $region41: #{bottleneck_forward.1} parent=39 // pred_check
          %p291 = pneg %p42
        $region42: #{bottleneck_forward.1} parent=39 // pred_check_branch
          %293 = sbr.rel (%p291) target = $region44
        $region43: #{bottleneck_forward.1} parent=39 // pred_region
          %s294 = sand.u32 %s32, 1
          %s295 = scalar_lea.sflag [#allocation5], %s294
          %s296 = sand.u32 %s32, 1
          %s297 = smul.addr %s296, 128
          %s298 = scalar_lea.vmem [#allocation4], %s297
          %s300 = ssub.s32 2048, 2048
          %301 = vsyncadd %s295, %s300
          %s302 = smul.addr %s22, 32
          %s303 = smul.addr %s302, 64
          %s304 = scalar_lea.hbm %s0, %s303
          %s305 = sshll.u32 %s298, 4
          %s306 = int_to_ptr.vmem [resolvable:$true] %s305
          %311 = dma.hbm_to_vmem [thread:$0]  %s304, 2048, %s306, %s295, 64, 64, 4
        $region44: #{bottleneck_forward.1} parent=39 // pred_fallthru
          _
      $region40: #{bottleneck_forward.1} parent=5 // pred_fallthru
        _
      %p312 = scmp.le.s32.totalorder 1, %s22
      %p313 = scmp.lt.s32.totalorder %s22, 3
      %p314 = pnand %p312, %p313
      %p315 = pneg %p314
      // Predicated region
      $region45: #{bottleneck_forward.1} parent=5 // pred_check
        _
      $region46: #{bottleneck_forward.1} parent=5 // pred_check_branch
        %317 = sbr.rel (%p314) target = $region48
      $region47: #{bottleneck_forward.1} parent=5 // pred_region
        %s318 = ssub.s32 %s22, 1
        %s319 = sand.u32 %s35, 1
        %s320 = scalar_lea.sflag [#allocation5], %s319
        %s321 = sand.u32 %s35, 1
        %s322 = smul.addr %s321, 128
        %s323 = scalar_lea.vmem [#allocation4], %s322
        // Predicated region
        $region49: #{bottleneck_forward.1} parent=47 // pred_check
          %p324 = pneg %p48
        $region50: #{bottleneck_forward.1} parent=47 // pred_check_branch
          %326 = sbr.rel (%p324) target = $region52
        $region51: #{bottleneck_forward.1} parent=47 // pred_region
          %327 = dma.done %s320, 2048
        $region52: #{bottleneck_forward.1} parent=47 // pred_fallthru
          _
        // Predicated region
        $region53: #{bottleneck_forward.1} parent=47 // pred_check
          %p328 = pneg %p69
        $region54: #{bottleneck_forward.1} parent=47 // pred_check_branch
          %330 = sbr.rel (%p328) target = $region56
        $region55: #{bottleneck_forward.1} parent=47 // pred_region
          %331 = dma.done [#allocation8], 1024
        $region56: #{bottleneck_forward.1} parent=47 // pred_fallthru
          _
        // Predicated region
        $region57: #{bottleneck_forward.1} parent=47 // pred_check
          %p332 = pneg %p90
        $region58: #{bottleneck_forward.1} parent=47 // pred_check_branch
          %334 = sbr.rel (%p332) target = $region60
        $region59: #{bottleneck_forward.1} parent=47 // pred_region
          %335 = dma.done [#allocation8], 16
        $region60: #{bottleneck_forward.1} parent=47 // pred_fallthru
          _
        // Predicated region
        $region61: #{bottleneck_forward.1} parent=47 // pred_check
          %p336 = pneg %p111
        $region62: #{bottleneck_forward.1} parent=47 // pred_check_branch
          %338 = sbr.rel (%p336) target = $region64
        $region63: #{bottleneck_forward.1} parent=47 // pred_region
          %339 = dma.done [#allocation11], 2304
        $region64: #{bottleneck_forward.1} parent=47 // pred_fallthru
          _
        // Predicated region
        $region65: #{bottleneck_forward.1} parent=47 // pred_check
          %p340 = pneg %p132
        $region66: #{bottleneck_forward.1} parent=47 // pred_check_branch
          %342 = sbr.rel (%p340) target = $region68
        $region67: #{bottleneck_forward.1} parent=47 // pred_region
          %343 = dma.done [#allocation11], 16
        $region68: #{bottleneck_forward.1} parent=47 // pred_fallthru
          _
        // Predicated region
        $region69: #{bottleneck_forward.1} parent=47 // pred_check
          %p344 = pneg %p153
        $region70: #{bottleneck_forward.1} parent=47 // pred_check_branch
          %346 = sbr.rel (%p344) target = $region72
        $region71: #{bottleneck_forward.1} parent=47 // pred_region
          %347 = dma.done [#allocation14], 256
        $region72: #{bottleneck_forward.1} parent=47 // pred_fallthru
          _
        // Predicated region
        $region73: #{bottleneck_forward.1} parent=47 // pred_check
          %p348 = pneg %p174
        $region74: #{bottleneck_forward.1} parent=47 // pred_check_branch
          %350 = sbr.rel (%p348) target = $region76
        $region75: #{bottleneck_forward.1} parent=47 // pred_region
          %351 = dma.done [#allocation14], 16
        $region76: #{bottleneck_forward.1} parent=47 // pred_fallthru
          _
        %s352 = sand.u32 %s35, 1
        %s353 = scalar_lea.sflag [#allocation5], %s352
        %s354 = sand.u32 %s35, 1
        %s355 = smul.addr %s354, 128
        %s356 = scalar_lea.vmem [#allocation4], %s355
        %p357 = pneg %p48
        %p358 = pneg %p45
        %p359 = pneg %p69
        %p360 = pneg %p66
        %p361 = pneg %p90
        %p362 = pneg %p87
        %p363 = pneg %p111
        %p364 = pneg %p108
        %p365 = pneg %p132
        %p366 = pneg %p129
        %p367 = pneg %p153
        %p368 = pneg %p150
        %p369 = pneg %p174
        %p370 = pneg %p171
        %p371 = pneg %p200
        %p372 = pneg %p197
        %s373 = sand.u32 %s187, 1
        %s374 = scalar_lea.sflag [#allocation6], %s373
        %s375 = sand.u32 %s187, 1
        %s376 = smul.addr %s375, 128
        %s377 = scalar_lea.vmem [#allocation16], %s376
        %v381 = vld [vmem:[%s323] sm:$0xf]
        %v382 = vld [vmem:[%s323 + $0x4] sm:$0xf]
        %v383 = vld [vmem:[%s323 + $0x8] sm:$0xf]
        %v384 = vld [vmem:[%s323 + $0xc] sm:$0xf]
        %v385 = vld [vmem:[%s323 + $0x10] sm:$0xf]
        %v386 = vld [vmem:[%s323 + $0x14] sm:$0xf]
        %v387 = vld [vmem:[%s323 + $0x18] sm:$0xf]
        %v388 = vld [vmem:[%s323 + $0x1c] sm:$0xf]
        %v389 = vld [vmem:[%s323 + $0x20] sm:$0xf]
        %v390 = vld [vmem:[%s323 + $0x24] sm:$0xf]
        %v391 = vld [vmem:[%s323 + $0x28] sm:$0xf]
        %v392 = vld [vmem:[%s323 + $0x2c] sm:$0xf]
        %v393 = vld [vmem:[%s323 + $0x30] sm:$0xf]
        %v394 = vld [vmem:[%s323 + $0x34] sm:$0xf]
        %v395 = vld [vmem:[%s323 + $0x38] sm:$0xf]
        %v396 = vld [vmem:[%s323 + $0x3c] sm:$0xf]
        %v397 = vld [vmem:[%s323 + $0x40] sm:$0xf]
        %v398 = vld [vmem:[%s323 + $0x44] sm:$0xf]
        %v399 = vld [vmem:[%s323 + $0x48] sm:$0xf]
        %v400 = vld [vmem:[%s323 + $0x4c] sm:$0xf]
        %v401 = vld [vmem:[%s323 + $0x50] sm:$0xf]
        %v402 = vld [vmem:[%s323 + $0x54] sm:$0xf]
        %v403 = vld [vmem:[%s323 + $0x58] sm:$0xf]
        %v404 = vld [vmem:[%s323 + $0x5c] sm:$0xf]
        %v405 = vld [vmem:[%s323 + $0x60] sm:$0xf]
        %v406 = vld [vmem:[%s323 + $0x64] sm:$0xf]
        %v407 = vld [vmem:[%s323 + $0x68] sm:$0xf]
        %v408 = vld [vmem:[%s323 + $0x6c] sm:$0xf]
        %v409 = vld [vmem:[%s323 + $0x70] sm:$0xf]
        %v410 = vld [vmem:[%s323 + $0x74] sm:$0xf]
        %v411 = vld [vmem:[%s323 + $0x78] sm:$0xf]
        %v412 = vld [vmem:[%s323 + $0x7c] sm:$0xf]
        %v413 = vld [vmem:[#allocation7] sm:$0xf]
        %v414 = vld [vmem:[#allocation7 + $0x4] sm:$0xf]
        %v415 = vld [vmem:[#allocation7 + $0x8] sm:$0xf]
        %v416 = vld [vmem:[#allocation7 + $0xc] sm:$0xf]
        %v417 = vld [vmem:[#allocation7 + $0x10] sm:$0xf]
        %v418 = vld [vmem:[#allocation7 + $0x14] sm:$0xf]
        %v419 = vld [vmem:[#allocation7 + $0x18] sm:$0xf]
        %v420 = vld [vmem:[#allocation7 + $0x1c] sm:$0xf]
        %v421 = vld [vmem:[#allocation7 + $0x20] sm:$0xf]
        %v422 = vld [vmem:[#allocation7 + $0x24] sm:$0xf]
        %v423 = vld [vmem:[#allocation7 + $0x28] sm:$0xf]
        %v424 = vld [vmem:[#allocation7 + $0x2c] sm:$0xf]
        %v425 = vld [vmem:[#allocation7 + $0x30] sm:$0xf]
        %v426 = vld [vmem:[#allocation7 + $0x34] sm:$0xf]
        %v427 = vld [vmem:[#allocation7 + $0x38] sm:$0xf]
        %v428 = vld [vmem:[#allocation7 + $0x3c] sm:$0xf]
        %v429 = vld [vmem:[#allocation9] sm:$0x1]
        %v431 = vlaneseq
        %v432 = vshrl.u32 %v431, 7
        %v433 = vsub.s32 0, %v432
        %v434 = vrot.slane %v429, %v433
        %v468 = vunpack.c.l.b16 %v381
        %v469 = vunpack.c.l.b16 %v382
        %v470 = vunpack.c.l.b16 %v383
        %v471 = vunpack.c.l.b16 %v384
        %v472 = vunpack.c.l.b16 %v385
        %v473 = vunpack.c.l.b16 %v386
        %v474 = vunpack.c.l.b16 %v387
        %v475 = vunpack.c.l.b16 %v388
        %v476 = vunpack.c.l.b16 %v389
        %v477 = vunpack.c.l.b16 %v390
        %v478 = vunpack.c.l.b16 %v391
        %v479 = vunpack.c.l.b16 %v392
        %v480 = vunpack.c.l.b16 %v393
        %v481 = vunpack.c.l.b16 %v394
        %v482 = vunpack.c.l.b16 %v395
        %v483 = vunpack.c.l.b16 %v396
        %v484 = vunpack.c.l.b16 %v397
        %v485 = vunpack.c.l.b16 %v398
        %v486 = vunpack.c.l.b16 %v399
        %v487 = vunpack.c.l.b16 %v400
        %v488 = vunpack.c.l.b16 %v401
        %v489 = vunpack.c.l.b16 %v402
        %v490 = vunpack.c.l.b16 %v403
        %v491 = vunpack.c.l.b16 %v404
        %v492 = vunpack.c.l.b16 %v405
        %v493 = vunpack.c.l.b16 %v406
        %v494 = vunpack.c.l.b16 %v407
        %v495 = vunpack.c.l.b16 %v408
        %v496 = vunpack.c.l.b16 %v409
        %v497 = vunpack.c.l.b16 %v410
        %v498 = vunpack.c.l.b16 %v411
        %v499 = vunpack.c.l.b16 %v412
        %v500 = vpack.c.b16 %v469, %v468
        %v501 = vpack.c.b16 %v471, %v470
        %v502 = vpack.c.b16 %v473, %v472
        %v503 = vpack.c.b16 %v475, %v474
        %v504 = vpack.c.b16 %v477, %v476
        %v505 = vpack.c.b16 %v479, %v478
        %v506 = vpack.c.b16 %v481, %v480
        %v507 = vpack.c.b16 %v483, %v482
        %v508 = vpack.c.b16 %v485, %v484
        %v509 = vpack.c.b16 %v487, %v486
        %v510 = vpack.c.b16 %v489, %v488
        %v511 = vpack.c.b16 %v491, %v490
        %v512 = vpack.c.b16 %v493, %v492
        %v513 = vpack.c.b16 %v495, %v494
        %v514 = vpack.c.b16 %v497, %v496
        %v515 = vpack.c.b16 %v499, %v498
        %v548 = vunpack.c.l.b16 %v413
        %v549 = vunpack.c.l.b16 %v414
        %v550 = vunpack.c.l.b16 %v415
        %v551 = vunpack.c.l.b16 %v416
        %v552 = vunpack.c.l.b16 %v417
        %v553 = vunpack.c.l.b16 %v418
        %v554 = vunpack.c.l.b16 %v419
        %v555 = vunpack.c.l.b16 %v420
        %v556 = vunpack.c.l.b16 %v421
        %v557 = vunpack.c.l.b16 %v422
        %v558 = vunpack.c.l.b16 %v423
        %v559 = vunpack.c.l.b16 %v424
        %v560 = vunpack.c.l.b16 %v425
        %v561 = vunpack.c.l.b16 %v426
        %v562 = vunpack.c.l.b16 %v427
        %v563 = vunpack.c.l.b16 %v428
        %v564 = vpack.c.b16 %v549, %v548
        %v565 = vpack.c.b16 %v551, %v550
        %v566 = vpack.c.b16 %v553, %v552
        %v567 = vpack.c.b16 %v555, %v554
        %v568 = vpack.c.b16 %v557, %v556
        %v569 = vpack.c.b16 %v559, %v558
        %v570 = vpack.c.b16 %v561, %v560
        %v571 = vpack.c.b16 %v563, %v562
        %580 = vmatprep.subr.bf16.mxu0 0
        %581 = vmatpush1.bf16.msra.mxu0 %v564
        %582 = vmatprep.subr.bf16.mxu0 0
        %583 = vmatpush1.bf16.msra.mxu0 %v565
        %584 = vmatprep.subr.bf16.mxu0 0
        %585 = vmatpush1.bf16.msra.mxu0 %v566
        %586 = vmatprep.subr.bf16.mxu0 0
        %587 = vmatpush1.bf16.msra.mxu0 %v567
        %588 = vmatprep.subr.bf16.mxu0 0
        %589 = vmatpush1.bf16.msra.mxu0 %v568
        %590 = vmatprep.subr.bf16.mxu0 0
        %591 = vmatpush1.bf16.msra.mxu0 %v569
        %592 = vmatprep.subr.bf16.mxu0 0
        %593 = vmatpush1.bf16.msra.mxu0 %v570
        %594 = vmatprep.subr.bf16.mxu0 0
        %595 = vmatpush1.bf16.msra.mxu0 %v571
        %596 = vmatprep.subr.bf16.mxu0 0
        %597 = vmatpush1.bf16.msra.mxu0 0
        %598 = vmatprep.subr.bf16.mxu0 0
        %599 = vmatpush1.bf16.msra.mxu0 0
        %600 = vmatprep.subr.bf16.mxu0 0
        %601 = vmatpush1.bf16.msra.mxu0 0
        %602 = vmatprep.subr.bf16.mxu0 0
        %603 = vmatpush1.bf16.msra.mxu0 0
        %604 = vmatprep.subr.bf16.mxu0 0
        %605 = vmatpush1.bf16.msra.mxu0 0
        %606 = vmatprep.subr.bf16.mxu0 0
        %607 = vmatpush1.bf16.msra.mxu0 0
        %608 = vmatprep.subr.bf16.mxu0 0
        %609 = vmatpush1.bf16.msra.mxu0 0
        %610 = vmatprep.subr.bf16.mxu0 0
        %611 = vmatpush1.bf16.msra.mxu0 0
        %612 = vmatprep.mubr.bf16.mxu0 0
        %613 = vmatmul.mubr.bf16.gmra.mrb[0].mxu0 %v500
        %v614 = vpop.f32.mrb[0].mxu0
        %v615 = vadd.f32 %v434, %v614
        %v616 = vpop.f32.mrb[0].mxu0
        %v617 = vpop.f32.mrb[0].mxu0
        %v618 = vadd.f32 %v434, %v617
        %v619 = vpop.f32.mrb[0].mxu0
        %620 = vmatprep.mubr.bf16.mxu0 0
        %621 = vmatmul.mubr.bf16.gmra.mrb[0].mxu0 %v501
        %v622 = vpop.f32.mrb[0].mxu0
        %v623 = vadd.f32 %v434, %v622
        %v624 = vpop.f32.mrb[0].mxu0
        %v625 = vpop.f32.mrb[0].mxu0
        %v626 = vadd.f32 %v434, %v625
        %v627 = vpop.f32.mrb[0].mxu0
        %628 = vmatprep.mubr.bf16.mxu0 0
        %629 = vmatmul.mubr.bf16.gmra.mrb[0].mxu0 %v502
        %v630 = vpop.f32.mrb[0].mxu0
        %v631 = vadd.f32 %v434, %v630
        %v632 = vpop.f32.mrb[0].mxu0
        %v633 = vpop.f32.mrb[0].mxu0
        %v634 = vadd.f32 %v434, %v633
        %v635 = vpop.f32.mrb[0].mxu0
        %636 = vmatprep.mubr.bf16.mxu0 0
        %637 = vmatmul.mubr.bf16.gmra.mrb[0].mxu0 %v503
        %v638 = vpop.f32.mrb[0].mxu0
        %v639 = vadd.f32 %v434, %v638
        %v640 = vpop.f32.mrb[0].mxu0
        %v641 = vpop.f32.mrb[0].mxu0
        %v642 = vadd.f32 %v434, %v641
        %v643 = vpop.f32.mrb[0].mxu0
        %644 = vmatprep.mubr.bf16.mxu0 0
        %645 = vmatmul.mubr.bf16.gmra.mrb[0].mxu0 %v504
        %v646 = vpop.f32.mrb[0].mxu0
        %v647 = vadd.f32 %v434, %v646
        %v648 = vpop.f32.mrb[0].mxu0
        %v649 = vpop.f32.mrb[0].mxu0
        %v650 = vadd.f32 %v434, %v649
        %v651 = vpop.f32.mrb[0].mxu0
        %652 = vmatprep.mubr.bf16.mxu0 0
        %653 = vmatmul.mubr.bf16.gmra.mrb[0].mxu0 %v505
        %v654 = vpop.f32.mrb[0].mxu0
        %v655 = vadd.f32 %v434, %v654
        %v656 = vpop.f32.mrb[0].mxu0
        %v657 = vpop.f32.mrb[0].mxu0
        %v658 = vadd.f32 %v434, %v657
        %v659 = vpop.f32.mrb[0].mxu0
        %660 = vmatprep.mubr.bf16.mxu0 0
        %661 = vmatmul.mubr.bf16.gmra.mrb[0].mxu0 %v506
        %v662 = vpop.f32.mrb[0].mxu0
        %v663 = vadd.f32 %v434, %v662
        %v664 = vpop.f32.mrb[0].mxu0
        %v665 = vpop.f32.mrb[0].mxu0
        %v666 = vadd.f32 %v434, %v665
        %v667 = vpop.f32.mrb[0].mxu0
        %668 = vmatprep.mubr.bf16.mxu0 0
        %669 = vmatmul.mubr.bf16.gmra.mrb[0].mxu0 %v507
        %v670 = vpop.f32.mrb[0].mxu0
        %v671 = vadd.f32 %v434, %v670
        %v672 = vpop.f32.mrb[0].mxu0
        %v673 = vpop.f32.mrb[0].mxu0
        %v674 = vadd.f32 %v434, %v673
        %v675 = vpop.f32.mrb[0].mxu0
        %676 = vmatprep.mubr.bf16.mxu0 0
        %677 = vmatmul.mubr.bf16.gmra.mrb[0].mxu0 %v508
        %v678 = vpop.f32.mrb[0].mxu0
        %v679 = vadd.f32 %v434, %v678
        %v680 = vpop.f32.mrb[0].mxu0
        %v681 = vpop.f32.mrb[0].mxu0
        %v682 = vadd.f32 %v434, %v681
        %v683 = vpop.f32.mrb[0].mxu0
        %684 = vmatprep.mubr.bf16.mxu0 0
        %685 = vmatmul.mubr.bf16.gmra.mrb[0].mxu0 %v509
        %v686 = vpop.f32.mrb[0].mxu0
        %v687 = vadd.f32 %v434, %v686
        %v688 = vpop.f32.mrb[0].mxu0
        %v689 = vpop.f32.mrb[0].mxu0
        %v690 = vadd.f32 %v434, %v689
        %v691 = vpop.f32.mrb[0].mxu0
        %692 = vmatprep.mubr.bf16.mxu0 0
        %693 = vmatmul.mubr.bf16.gmra.mrb[0].mxu0 %v510
        %v694 = vpop.f32.mrb[0].mxu0
        %v695 = vadd.f32 %v434, %v694
        %v696 = vpop.f32.mrb[0].mxu0
        %v697 = vpop.f32.mrb[0].mxu0
        %v698 = vadd.f32 %v434, %v697
        %v699 = vpop.f32.mrb[0].mxu0
        %700 = vmatprep.mubr.bf16.mxu0 0
        %701 = vmatmul.mubr.bf16.gmra.mrb[0].mxu0 %v511
        %v702 = vpop.f32.mrb[0].mxu0
        %v703 = vadd.f32 %v434, %v702
        %v704 = vpop.f32.mrb[0].mxu0
        %v705 = vpop.f32.mrb[0].mxu0
        %v706 = vadd.f32 %v434, %v705
        %v707 = vpop.f32.mrb[0].mxu0
        %708 = vmatprep.mubr.bf16.mxu0 0
        %709 = vmatmul.mubr.bf16.gmra.mrb[0].mxu0 %v512
        %v710 = vpop.f32.mrb[0].mxu0
        %v711 = vadd.f32 %v434, %v710
        %v712 = vpop.f32.mrb[0].mxu0
        %v713 = vpop.f32.mrb[0].mxu0
        %v714 = vadd.f32 %v434, %v713
        %v715 = vpop.f32.mrb[0].mxu0
        %716 = vmatprep.mubr.bf16.mxu0 0
        %717 = vmatmul.mubr.bf16.gmra.mrb[0].mxu0 %v513
        %v718 = vpop.f32.mrb[0].mxu0
        %v719 = vadd.f32 %v434, %v718
        %v720 = vpop.f32.mrb[0].mxu0
        %v721 = vpop.f32.mrb[0].mxu0
        %v722 = vadd.f32 %v434, %v721
        %v723 = vpop.f32.mrb[0].mxu0
        %724 = vmatprep.mubr.bf16.mxu0 0
        %725 = vmatmul.mubr.bf16.gmra.mrb[0].mxu0 %v514
        %v726 = vpop.f32.mrb[0].mxu0
        %v727 = vadd.f32 %v434, %v726
        %v728 = vpop.f32.mrb[0].mxu0
        %v729 = vpop.f32.mrb[0].mxu0
        %v730 = vadd.f32 %v434, %v729
        %v731 = vpop.f32.mrb[0].mxu0
        %732 = vmatprep.mubr.bf16.mxu0 0
        %733 = vmatmul.mubr.bf16.gmra.mrb[0].mxu0 %v515
        %v734 = vpop.f32.mrb[0].mxu0
        %v735 = vadd.f32 %v434, %v734
        %v736 = vpop.f32.mrb[0].mxu0
        %v737 = vpop.f32.mrb[0].mxu0
        %v738 = vadd.f32 %v434, %v737
        %v739 = vpop.f32.mrb[0].mxu0
        %740 = vdwg.mxu0
        %v741 = vmax.f32 %v615, 0.0
        %v742 = vmax.f32 %v618, 0.0
        %v743 = vmax.f32 %v623, 0.0
        %v744 = vmax.f32 %v626, 0.0
        %v745 = vmax.f32 %v631, 0.0
        %v746 = vmax.f32 %v634, 0.0
        %v747 = vmax.f32 %v639, 0.0
        %v748 = vmax.f32 %v642, 0.0
        %v749 = vmax.f32 %v647, 0.0
        %v750 = vmax.f32 %v650, 0.0
        %v751 = vmax.f32 %v655, 0.0
        %v752 = vmax.f32 %v658, 0.0
        %v753 = vmax.f32 %v663, 0.0
        %v754 = vmax.f32 %v666, 0.0
        %v755 = vmax.f32 %v671, 0.0
        %v756 = vmax.f32 %v674, 0.0
        %v757 = vmax.f32 %v679, 0.0
        %v758 = vmax.f32 %v682, 0.0
        %v759 = vmax.f32 %v687, 0.0
        %v760 = vmax.f32 %v690, 0.0
        %v761 = vmax.f32 %v695, 0.0
        %v762 = vmax.f32 %v698, 0.0
        %v763 = vmax.f32 %v703, 0.0
        %v764 = vmax.f32 %v706, 0.0
        %v765 = vmax.f32 %v711, 0.0
        %v766 = vmax.f32 %v714, 0.0
        %v767 = vmax.f32 %v719, 0.0
        %v768 = vmax.f32 %v722, 0.0
        %v769 = vmax.f32 %v727, 0.0
        %v770 = vmax.f32 %v730, 0.0
        %v771 = vmax.f32 %v735, 0.0
        %v772 = vmax.f32 %v738, 0.0
        %vm773 = vcmask 261120
        %774 = vst.msk [vmem:[#allocation2] sm:$0xff] %vm773, 0
        %vm775 = vcmask 257024
        %776 = vst.msk [vmem:[#allocation2 + $0x8] sm:$0xf] %vm775, 0
        %vm777 = vcmask 261124
        %778 = vst.msk [vmem:[#allocation2 + $0x88] sm:$0xf0] %vm777, 0
        %779 = vst.msk [vmem:[#allocation2 + $0x90] sm:$0xff] %vm773, 0
        %v780 = vpack.c.bf16 %v742, %v741
        %v781 = vpack.c.bf16 %v744, %v743
        %v782 = vpack.c.bf16 %v746, %v745
        %v783 = vpack.c.bf16 %v748, %v747
        %v784 = vpack.c.bf16 %v750, %v749
        %v785 = vpack.c.bf16 %v752, %v751
        %v786 = vpack.c.bf16 %v754, %v753
        %v787 = vpack.c.bf16 %v756, %v755
        %v788 = vpack.c.bf16 %v758, %v757
        %v789 = vpack.c.bf16 %v760, %v759
        %v790 = vpack.c.bf16 %v762, %v761
        %v791 = vpack.c.bf16 %v764, %v763
        %v792 = vpack.c.bf16 %v766, %v765
        %v793 = vpack.c.bf16 %v768, %v767
        %v794 = vpack.c.bf16 %v770, %v769
        %v795 = vpack.c.bf16 %v772, %v771
        %vm812 = vcmask 1043456
        %v813 = vrot.slane %v780, 4
        %v814 = vrot.slane %v781, 4
        %v815 = vsel %vm812, %v813, %v814
        %v816 = vrot.slane %v782, 4
        %v817 = vsel %vm812, %v814, %v816
        %v818 = vrot.slane %v783, 4
        %v819 = vsel %vm812, %v816, %v818
        %v820 = vrot.slane %v784, 4
        %v821 = vsel %vm812, %v818, %v820
        %v822 = vrot.slane %v785, 4
        %v823 = vsel %vm812, %v820, %v822
        %v824 = vrot.slane %v786, 4
        %v825 = vsel %vm812, %v822, %v824
        %v826 = vrot.slane %v787, 4
        %v827 = vsel %vm812, %v824, %v826
        %v828 = vrot.slane %v788, 4
        %v829 = vsel %vm812, %v826, %v828
        %v830 = vrot.slane %v789, 4
        %v831 = vsel %vm812, %v828, %v830
        %v832 = vrot.slane %v790, 4
        %v833 = vsel %vm812, %v830, %v832
        %v834 = vrot.slane %v791, 4
        %v835 = vsel %vm812, %v832, %v834
        %v836 = vrot.slane %v792, 4
        %v837 = vsel %vm812, %v834, %v836
        %v838 = vrot.slane %v793, 4
        %v839 = vsel %vm812, %v836, %v838
        %v840 = vrot.slane %v794, 4
        %v841 = vsel %vm812, %v838, %v840
        %v842 = vrot.slane %v795, 4
        %v843 = vsel %vm812, %v840, %v842
        %861 = vst.msk [vmem:[#allocation2 + $0x8] sm:$0xf0] %vm777, %v813
        %862 = vst.msk [vmem:[#allocation2 + $0x10] sm:$0xff] %vm773, %v815
        %863 = vst.msk [vmem:[#allocation2 + $0x18] sm:$0xff] %vm773, %v817
        %864 = vst.msk [vmem:[#allocation2 + $0x20] sm:$0xff] %vm773, %v819
        %865 = vst.msk [vmem:[#allocation2 + $0x28] sm:$0xff] %vm773, %v821
        %866 = vst.msk [vmem:[#allocation2 + $0x30] sm:$0xff] %vm773, %v823
        %867 = vst.msk [vmem:[#allocation2 + $0x38] sm:$0xff] %vm773, %v825
        %868 = vst.msk [vmem:[#allocation2 + $0x40] sm:$0xff] %vm773, %v827
        %869 = vst.msk [vmem:[#allocation2 + $0x48] sm:$0xff] %vm773, %v829
        %870 = vst.msk [vmem:[#allocation2 + $0x50] sm:$0xff] %vm773, %v831
        %871 = vst.msk [vmem:[#allocation2 + $0x58] sm:$0xff] %vm773, %v833
        %872 = vst.msk [vmem:[#allocation2 + $0x60] sm:$0xff] %vm773, %v835
        %873 = vst.msk [vmem:[#allocation2 + $0x68] sm:$0xff] %vm773, %v837
        %874 = vst.msk [vmem:[#allocation2 + $0x70] sm:$0xff] %vm773, %v839
        %875 = vst.msk [vmem:[#allocation2 + $0x78] sm:$0xff] %vm773, %v841
        %876 = vst.msk [vmem:[#allocation2 + $0x80] sm:$0xff] %vm773, %v843
        %877 = vst.msk [vmem:[#allocation2 + $0x88] sm:$0xf] %vm775, %v842
        %v878 = vlaneseq
        %v879 = vshrl.u32 %v878, 7
        %v880 = vadd.s32 %v879, 8
        %v881 = vadd.s32 %v879, 16
        %v882 = vadd.s32 %v879, 24
        %v883 = vadd.s32 %v879, 32
        %v884 = vadd.s32 %v879, 40
        %v885 = vadd.s32 %v879, 48
        %v886 = vadd.s32 %v879, 56
        %v887 = vadd.s32 %v879, 64
        %v888 = vadd.s32 %v879, 72
        %v889 = vadd.s32 %v879, 80
        %v890 = vadd.s32 %v879, 88
        %v891 = vadd.s32 %v879, 96
        %v892 = vadd.s32 %v879, 104
        %v893 = vadd.s32 %v879, 112
        %v894 = vadd.s32 %v879, 120
        %v895 = vadd.s32 %v879, 128
        %v896 = vadd.s32 %v879, 136
        %v897 = vadd.s32 %v879, 144
        %v898 = vadd.s32 %v879, 152
        %v899 = vadd.s32 %v879, 160
        %v900 = vadd.s32 %v879, 168
        %v901 = vadd.s32 %v879, 176
        %v902 = vadd.s32 %v879, 184
        %v903 = vadd.s32 %v879, 192
        %v904 = vadd.s32 %v879, 200
        %v905 = vadd.s32 %v879, 208
        %v906 = vadd.s32 %v879, 216
        %v907 = vadd.s32 %v879, 224
        %v908 = vadd.s32 %v879, 232
        %v909 = vadd.s32 %v879, 240
        %v910 = vadd.s32 %v879, 248
        %vm911 = vcmp.lt.s32.totalorder %v879, 0
        %v912 = vsub.s32 0, %v879
        %v913 = vsel %vm911, %v912, %v879
        %v914 = vshrl.u32 %v913, 4
        %v915 = vand.u32 %v913, 15
        %v916 = vsub.s32 0, %v915
        %v917 = vsel %vm911, %v916, %v915
        %vm918 = vcmp.lt.s32.totalorder %v880, 0
        %v919 = vsub.s32 0, %v880
        %v920 = vsel %vm918, %v919, %v880
        %v921 = vshrl.u32 %v920, 4
        %v922 = vand.u32 %v920, 15
        %v923 = vsub.s32 0, %v922
        %v924 = vsel %vm918, %v923, %v922
        %vm925 = vcmp.lt.s32.totalorder %v881, 0
        %v926 = vsub.s32 0, %v881
        %v927 = vsel %vm925, %v926, %v881
        %v928 = vshrl.u32 %v927, 4
        %v929 = vand.u32 %v927, 15
        %v930 = vsub.s32 0, %v929
        %v931 = vsel %vm925, %v930, %v929
        %vm932 = vcmp.lt.s32.totalorder %v882, 0
        %v933 = vsub.s32 0, %v882
        %v934 = vsel %vm932, %v933, %v882
        %v935 = vshrl.u32 %v934, 4
        %v936 = vand.u32 %v934, 15
        %v937 = vsub.s32 0, %v936
        %v938 = vsel %vm932, %v937, %v936
        %vm939 = vcmp.lt.s32.totalorder %v883, 0
        %v940 = vsub.s32 0, %v883
        %v941 = vsel %vm939, %v940, %v883
        %v942 = vshrl.u32 %v941, 4
        %v943 = vand.u32 %v941, 15
        %v944 = vsub.s32 0, %v943
        %v945 = vsel %vm939, %v944, %v943
        %vm946 = vcmp.lt.s32.totalorder %v884, 0
        %v947 = vsub.s32 0, %v884
        %v948 = vsel %vm946, %v947, %v884
        %v949 = vshrl.u32 %v948, 4
        %v950 = vand.u32 %v948, 15
        %v951 = vsub.s32 0, %v950
        %v952 = vsel %vm946, %v951, %v950
        %vm953 = vcmp.lt.s32.totalorder %v885, 0
        %v954 = vsub.s32 0, %v885
        %v955 = vsel %vm953, %v954, %v885
        %v956 = vshrl.u32 %v955, 4
        %v957 = vand.u32 %v955, 15
        %v958 = vsub.s32 0, %v957
        %v959 = vsel %vm953, %v958, %v957
        %vm960 = vcmp.lt.s32.totalorder %v886, 0
        %v961 = vsub.s32 0, %v886
        %v962 = vsel %vm960, %v961, %v886
        %v963 = vshrl.u32 %v962, 4
        %v964 = vand.u32 %v962, 15
        %v965 = vsub.s32 0, %v964
        %v966 = vsel %vm960, %v965, %v964
        %vm967 = vcmp.lt.s32.totalorder %v887, 0
        %v968 = vsub.s32 0, %v887
        %v969 = vsel %vm967, %v968, %v887
        %v970 = vshrl.u32 %v969, 4
        %v971 = vand.u32 %v969, 15
        %v972 = vsub.s32 0, %v971
        %v973 = vsel %vm967, %v972, %v971
        %vm974 = vcmp.lt.s32.totalorder %v888, 0
        %v975 = vsub.s32 0, %v888
        %v976 = vsel %vm974, %v975, %v888
        %v977 = vshrl.u32 %v976, 4
        %v978 = vand.u32 %v976, 15
        %v979 = vsub.s32 0, %v978
        %v980 = vsel %vm974, %v979, %v978
        %vm981 = vcmp.lt.s32.totalorder %v889, 0
        %v982 = vsub.s32 0, %v889
        %v983 = vsel %vm981, %v982, %v889
        %v984 = vshrl.u32 %v983, 4
        %v985 = vand.u32 %v983, 15
        %v986 = vsub.s32 0, %v985
        %v987 = vsel %vm981, %v986, %v985
        %vm988 = vcmp.lt.s32.totalorder %v890, 0
        %v989 = vsub.s32 0, %v890
        %v990 = vsel %vm988, %v989, %v890
        %v991 = vshrl.u32 %v990, 4
        %v992 = vand.u32 %v990, 15
        %v993 = vsub.s32 0, %v992
        %v994 = vsel %vm988, %v993, %v992
        %vm995 = vcmp.lt.s32.totalorder %v891, 0
        %v996 = vsub.s32 0, %v891
        %v997 = vsel %vm995, %v996, %v891
        %v998 = vshrl.u32 %v997, 4
        %v999 = vand.u32 %v997, 15
        %v1000 = vsub.s32 0, %v999
        %v1001 = vsel %vm995, %v1000, %v999
        %vm1002 = vcmp.lt.s32.totalorder %v892, 0
        %v1003 = vsub.s32 0, %v892
        %v1004 = vsel %vm1002, %v1003, %v892
        %v1005 = vshrl.u32 %v1004, 4
        %v1006 = vand.u32 %v1004, 15
        %v1007 = vsub.s32 0, %v1006
        %v1008 = vsel %vm1002, %v1007, %v1006
        %vm1009 = vcmp.lt.s32.totalorder %v893, 0
        %v1010 = vsub.s32 0, %v893
        %v1011 = vsel %vm1009, %v1010, %v893
        %v1012 = vshrl.u32 %v1011, 4
        %v1013 = vand.u32 %v1011, 15
        %v1014 = vsub.s32 0, %v1013
        %v1015 = vsel %vm1009, %v1014, %v1013
        %vm1016 = vcmp.lt.s32.totalorder %v894, 0
        %v1017 = vsub.s32 0, %v894
        %v1018 = vsel %vm1016, %v1017, %v894
        %v1019 = vshrl.u32 %v1018, 4
        %v1020 = vand.u32 %v1018, 15
        %v1021 = vsub.s32 0, %v1020
        %v1022 = vsel %vm1016, %v1021, %v1020
        %vm1023 = vcmp.lt.s32.totalorder %v895, 0
        %v1024 = vsub.s32 0, %v895
        %v1025 = vsel %vm1023, %v1024, %v895
        %v1026 = vshrl.u32 %v1025, 4
        %v1027 = vand.u32 %v1025, 15
        %v1028 = vsub.s32 0, %v1027
        %v1029 = vsel %vm1023, %v1028, %v1027
        %vm1030 = vcmp.lt.s32.totalorder %v896, 0
        %v1031 = vsub.s32 0, %v896
        %v1032 = vsel %vm1030, %v1031, %v896
        %v1033 = vshrl.u32 %v1032, 4
        %v1034 = vand.u32 %v1032, 15
        %v1035 = vsub.s32 0, %v1034
        %v1036 = vsel %vm1030, %v1035, %v1034
        %vm1037 = vcmp.lt.s32.totalorder %v897, 0
        %v1038 = vsub.s32 0, %v897
        %v1039 = vsel %vm1037, %v1038, %v897
        %v1040 = vshrl.u32 %v1039, 4
        %v1041 = vand.u32 %v1039, 15
        %v1042 = vsub.s32 0, %v1041
        %v1043 = vsel %vm1037, %v1042, %v1041
        %vm1044 = vcmp.lt.s32.totalorder %v898, 0
        %v1045 = vsub.s32 0, %v898
        %v1046 = vsel %vm1044, %v1045, %v898
        %v1047 = vshrl.u32 %v1046, 4
        %v1048 = vand.u32 %v1046, 15
        %v1049 = vsub.s32 0, %v1048
        %v1050 = vsel %vm1044, %v1049, %v1048
        %vm1051 = vcmp.lt.s32.totalorder %v899, 0
        %v1052 = vsub.s32 0, %v899
        %v1053 = vsel %vm1051, %v1052, %v899
        %v1054 = vshrl.u32 %v1053, 4
        %v1055 = vand.u32 %v1053, 15
        %v1056 = vsub.s32 0, %v1055
        %v1057 = vsel %vm1051, %v1056, %v1055
        %vm1058 = vcmp.lt.s32.totalorder %v900, 0
        %v1059 = vsub.s32 0, %v900
        %v1060 = vsel %vm1058, %v1059, %v900
        %v1061 = vshrl.u32 %v1060, 4
        %v1062 = vand.u32 %v1060, 15
        %v1063 = vsub.s32 0, %v1062
        %v1064 = vsel %vm1058, %v1063, %v1062
        %vm1065 = vcmp.lt.s32.totalorder %v901, 0
        %v1066 = vsub.s32 0, %v901
        %v1067 = vsel %vm1065, %v1066, %v901
        %v1068 = vshrl.u32 %v1067, 4
        %v1069 = vand.u32 %v1067, 15
        %v1070 = vsub.s32 0, %v1069
        %v1071 = vsel %vm1065, %v1070, %v1069
        %vm1072 = vcmp.lt.s32.totalorder %v902, 0
        %v1073 = vsub.s32 0, %v902
        %v1074 = vsel %vm1072, %v1073, %v902
        %v1075 = vshrl.u32 %v1074, 4
        %v1076 = vand.u32 %v1074, 15
        %v1077 = vsub.s32 0, %v1076
        %v1078 = vsel %vm1072, %v1077, %v1076
        %vm1079 = vcmp.lt.s32.totalorder %v903, 0
        %v1080 = vsub.s32 0, %v903
        %v1081 = vsel %vm1079, %v1080, %v903
        %v1082 = vshrl.u32 %v1081, 4
        %v1083 = vand.u32 %v1081, 15
        %v1084 = vsub.s32 0, %v1083
        %v1085 = vsel %vm1079, %v1084, %v1083
        %vm1086 = vcmp.lt.s32.totalorder %v904, 0
        %v1087 = vsub.s32 0, %v904
        %v1088 = vsel %vm1086, %v1087, %v904
        %v1089 = vshrl.u32 %v1088, 4
        %v1090 = vand.u32 %v1088, 15
        %v1091 = vsub.s32 0, %v1090
        %v1092 = vsel %vm1086, %v1091, %v1090
        %vm1093 = vcmp.lt.s32.totalorder %v905, 0
        %v1094 = vsub.s32 0, %v905
        %v1095 = vsel %vm1093, %v1094, %v905
        %v1096 = vshrl.u32 %v1095, 4
        %v1097 = vand.u32 %v1095, 15
        %v1098 = vsub.s32 0, %v1097
        %v1099 = vsel %vm1093, %v1098, %v1097
        %vm1100 = vcmp.lt.s32.totalorder %v906, 0
        %v1101 = vsub.s32 0, %v906
        %v1102 = vsel %vm1100, %v1101, %v906
        %v1103 = vshrl.u32 %v1102, 4
        %v1104 = vand.u32 %v1102, 15
        %v1105 = vsub.s32 0, %v1104
        %v1106 = vsel %vm1100, %v1105, %v1104
        %vm1107 = vcmp.lt.s32.totalorder %v907, 0
        %v1108 = vsub.s32 0, %v907
        %v1109 = vsel %vm1107, %v1108, %v907
        %v1110 = vshrl.u32 %v1109, 4
        %v1111 = vand.u32 %v1109, 15
        %v1112 = vsub.s32 0, %v1111
        %v1113 = vsel %vm1107, %v1112, %v1111
        %vm1114 = vcmp.lt.s32.totalorder %v908, 0
        %v1115 = vsub.s32 0, %v908
        %v1116 = vsel %vm1114, %v1115, %v908
        %v1117 = vshrl.u32 %v1116, 4
        %v1118 = vand.u32 %v1116, 15
        %v1119 = vsub.s32 0, %v1118
        %v1120 = vsel %vm1114, %v1119, %v1118
        %vm1121 = vcmp.lt.s32.totalorder %v909, 0
        %v1122 = vsub.s32 0, %v909
        %v1123 = vsel %vm1121, %v1122, %v909
        %v1124 = vshrl.u32 %v1123, 4
        %v1125 = vand.u32 %v1123, 15
        %v1126 = vsub.s32 0, %v1125
        %v1127 = vsel %vm1121, %v1126, %v1125
        %vm1128 = vcmp.lt.s32.totalorder %v910, 0
        %v1129 = vsub.s32 0, %v910
        %v1130 = vsel %vm1128, %v1129, %v910
        %v1131 = vshrl.u32 %v1130, 4
        %v1132 = vand.u32 %v1130, 15
        %v1133 = vsub.s32 0, %v1132
        %v1134 = vsel %vm1128, %v1133, %v1132
        %vm1135 = vcmp.ne.s32.totalorder %v917, 0
        %vm1136 = vcmp.ne.s32.totalorder %v924, 0
        %vm1137 = vcmp.ne.s32.totalorder %v931, 0
        %vm1138 = vcmp.ne.s32.totalorder %v938, 0
        %vm1139 = vcmp.ne.s32.totalorder %v945, 0
        %vm1140 = vcmp.ne.s32.totalorder %v952, 0
        %vm1141 = vcmp.ne.s32.totalorder %v959, 0
        %vm1142 = vcmp.ne.s32.totalorder %v966, 0
        %vm1143 = vcmp.ne.s32.totalorder %v973, 0
        %vm1144 = vcmp.ne.s32.totalorder %v980, 0
        %vm1145 = vcmp.ne.s32.totalorder %v987, 0
        %vm1146 = vcmp.ne.s32.totalorder %v994, 0
        %vm1147 = vcmp.ne.s32.totalorder %v1001, 0
        %vm1148 = vcmp.ne.s32.totalorder %v1008, 0
        %vm1149 = vcmp.ne.s32.totalorder %v1015, 0
        %vm1150 = vcmp.ne.s32.totalorder %v1022, 0
        %vm1151 = vcmp.ne.s32.totalorder %v1029, 0
        %vm1152 = vcmp.ne.s32.totalorder %v1036, 0
        %vm1153 = vcmp.ne.s32.totalorder %v1043, 0
        %vm1154 = vcmp.ne.s32.totalorder %v1050, 0
        %vm1155 = vcmp.ne.s32.totalorder %v1057, 0
        %vm1156 = vcmp.ne.s32.totalorder %v1064, 0
        %vm1157 = vcmp.ne.s32.totalorder %v1071, 0
        %vm1158 = vcmp.ne.s32.totalorder %v1078, 0
        %vm1159 = vcmp.ne.s32.totalorder %v1085, 0
        %vm1160 = vcmp.ne.s32.totalorder %v1092, 0
        %vm1161 = vcmp.ne.s32.totalorder %v1099, 0
        %vm1162 = vcmp.ne.s32.totalorder %v1106, 0
        %vm1163 = vcmp.ne.s32.totalorder %v1113, 0
        %vm1164 = vcmp.ne.s32.totalorder %v1120, 0
        %vm1165 = vcmp.ne.s32.totalorder %v1127, 0
        %vm1166 = vcmp.ne.s32.totalorder %v1134, 0
        %vm1167 = vcmp.lt.s32.totalorder %v917, 0
        %vm1168 = vcmp.lt.s32.totalorder %v924, 0
        %vm1169 = vcmp.lt.s32.totalorder %v931, 0
        %vm1170 = vcmp.lt.s32.totalorder %v938, 0
        %vm1171 = vcmp.lt.s32.totalorder %v945, 0
        %vm1172 = vcmp.lt.s32.totalorder %v952, 0
        %vm1173 = vcmp.lt.s32.totalorder %v959, 0
        %vm1174 = vcmp.lt.s32.totalorder %v966, 0
        %vm1175 = vcmp.lt.s32.totalorder %v973, 0
        %vm1176 = vcmp.lt.s32.totalorder %v980, 0
        %vm1177 = vcmp.lt.s32.totalorder %v987, 0
        %vm1178 = vcmp.lt.s32.totalorder %v994, 0
        %vm1179 = vcmp.lt.s32.totalorder %v1001, 0
        %vm1180 = vcmp.lt.s32.totalorder %v1008, 0
        %vm1181 = vcmp.lt.s32.totalorder %v1015, 0
        %vm1182 = vcmp.lt.s32.totalorder %v1022, 0
        %vm1183 = vcmp.lt.s32.totalorder %v1029, 0
        %vm1184 = vcmp.lt.s32.totalorder %v1036, 0
        %vm1185 = vcmp.lt.s32.totalorder %v1043, 0
        %vm1186 = vcmp.lt.s32.totalorder %v1050, 0
        %vm1187 = vcmp.lt.s32.totalorder %v1057, 0
        %vm1188 = vcmp.lt.s32.totalorder %v1064, 0
        %vm1189 = vcmp.lt.s32.totalorder %v1071, 0
        %vm1190 = vcmp.lt.s32.totalorder %v1078, 0
        %vm1191 = vcmp.lt.s32.totalorder %v1085, 0
        %vm1192 = vcmp.lt.s32.totalorder %v1092, 0
        %vm1193 = vcmp.lt.s32.totalorder %v1099, 0
        %vm1194 = vcmp.lt.s32.totalorder %v1106, 0
        %vm1195 = vcmp.lt.s32.totalorder %v1113, 0
        %vm1196 = vcmp.lt.s32.totalorder %v1120, 0
        %vm1197 = vcmp.lt.s32.totalorder %v1127, 0
        %vm1198 = vcmp.lt.s32.totalorder %v1134, 0
        %vm1199 = vmand %vm1167, %vm1135
        %vm1200 = vmand %vm1168, %vm1136
        %vm1201 = vmand %vm1169, %vm1137
        %vm1202 = vmand %vm1170, %vm1138
        %vm1203 = vmand %vm1171, %vm1139
        %vm1204 = vmand %vm1172, %vm1140
        %vm1205 = vmand %vm1173, %vm1141
        %vm1206 = vmand %vm1174, %vm1142
        %vm1207 = vmand %vm1175, %vm1143
        %vm1208 = vmand %vm1176, %vm1144
        %vm1209 = vmand %vm1177, %vm1145
        %vm1210 = vmand %vm1178, %vm1146
        %vm1211 = vmand %vm1179, %vm1147
        %vm1212 = vmand %vm1180, %vm1148
        %vm1213 = vmand %vm1181, %vm1149
        %vm1214 = vmand %vm1182, %vm1150
        %vm1215 = vmand %vm1183, %vm1151
        %vm1216 = vmand %vm1184, %vm1152
        %vm1217 = vmand %vm1185, %vm1153
        %vm1218 = vmand %vm1186, %vm1154
        %vm1219 = vmand %vm1187, %vm1155
        %vm1220 = vmand %vm1188, %vm1156
        %vm1221 = vmand %vm1189, %vm1157
        %vm1222 = vmand %vm1190, %vm1158
        %vm1223 = vmand %vm1191, %vm1159
        %vm1224 = vmand %vm1192, %vm1160
        %vm1225 = vmand %vm1193, %vm1161
        %vm1226 = vmand %vm1194, %vm1162
        %vm1227 = vmand %vm1195, %vm1163
        %vm1228 = vmand %vm1196, %vm1164
        %vm1229 = vmand %vm1197, %vm1165
        %vm1230 = vmand %vm1198, %vm1166
        %v1231 = vadd.s32 %v917, 16
        %v1232 = vadd.s32 %v924, 16
        %v1233 = vadd.s32 %v931, 16
        %v1234 = vadd.s32 %v938, 16
        %v1235 = vadd.s32 %v945, 16
        %v1236 = vadd.s32 %v952, 16
        %v1237 = vadd.s32 %v959, 16
        %v1238 = vadd.s32 %v966, 16
        %v1239 = vadd.s32 %v973, 16
        %v1240 = vadd.s32 %v980, 16
        %v1241 = vadd.s32 %v987, 16
        %v1242 = vadd.s32 %v994, 16
        %v1243 = vadd.s32 %v1001, 16
        %v1244 = vadd.s32 %v1008, 16
        %v1245 = vadd.s32 %v1015, 16
        %v1246 = vadd.s32 %v1022, 16
        %v1247 = vadd.s32 %v1029, 16
        %v1248 = vadd.s32 %v1036, 16
        %v1249 = vadd.s32 %v1043, 16
        %v1250 = vadd.s32 %v1050, 16
        %v1251 = vadd.s32 %v1057, 16
        %v1252 = vadd.s32 %v1064, 16
        %v1253 = vadd.s32 %v1071, 16
        %v1254 = vadd.s32 %v1078, 16
        %v1255 = vadd.s32 %v1085, 16
        %v1256 = vadd.s32 %v1092, 16
        %v1257 = vadd.s32 %v1099, 16
        %v1258 = vadd.s32 %v1106, 16
        %v1259 = vadd.s32 %v1113, 16
        %v1260 = vadd.s32 %v1120, 16
        %v1261 = vadd.s32 %v1127, 16
        %v1262 = vadd.s32 %v1134, 16
        %v1263 = vsel %vm1199, %v1231, %v917
        %v1264 = vsel %vm1200, %v1232, %v924
        %v1265 = vsel %vm1201, %v1233, %v931
        %v1266 = vsel %vm1202, %v1234, %v938
        %v1267 = vsel %vm1203, %v1235, %v945
        %v1268 = vsel %vm1204, %v1236, %v952
        %v1269 = vsel %vm1205, %v1237, %v959
        %v1270 = vsel %vm1206, %v1238, %v966
        %v1271 = vsel %vm1207, %v1239, %v973
        %v1272 = vsel %vm1208, %v1240, %v980
        %v1273 = vsel %vm1209, %v1241, %v987
        %v1274 = vsel %vm1210, %v1242, %v994
        %v1275 = vsel %vm1211, %v1243, %v1001
        %v1276 = vsel %vm1212, %v1244, %v1008
        %v1277 = vsel %vm1213, %v1245, %v1015
        %v1278 = vsel %vm1214, %v1246, %v1022
        %v1279 = vsel %vm1215, %v1247, %v1029
        %v1280 = vsel %vm1216, %v1248, %v1036
        %v1281 = vsel %vm1217, %v1249, %v1043
        %v1282 = vsel %vm1218, %v1250, %v1050
        %v1283 = vsel %vm1219, %v1251, %v1057
        %v1284 = vsel %vm1220, %v1252, %v1064
        %v1285 = vsel %vm1221, %v1253, %v1071
        %v1286 = vsel %vm1222, %v1254, %v1078
        %v1287 = vsel %vm1223, %v1255, %v1085
        %v1288 = vsel %vm1224, %v1256, %v1092
        %v1289 = vsel %vm1225, %v1257, %v1099
        %v1290 = vsel %vm1226, %v1258, %v1106
        %v1291 = vsel %vm1227, %v1259, %v1113
        %v1292 = vsel %vm1228, %v1260, %v1120
        %v1293 = vsel %vm1229, %v1261, %v1127
        %v1294 = vsel %vm1230, %v1262, %v1134
        %vm1295 = vcmp.ne.s32.totalorder %v1263, 0
        %vm1296 = vcmp.ne.s32.totalorder %v1264, 0
        %vm1297 = vcmp.ne.s32.totalorder %v1265, 0
        %vm1298 = vcmp.ne.s32.totalorder %v1266, 0
        %vm1299 = vcmp.ne.s32.totalorder %v1267, 0
        %vm1300 = vcmp.ne.s32.totalorder %v1268, 0
        %vm1301 = vcmp.ne.s32.totalorder %v1269, 0
        %vm1302 = vcmp.ne.s32.totalorder %v1270, 0
        %vm1303 = vcmp.ne.s32.totalorder %v1271, 0
        %vm1304 = vcmp.ne.s32.totalorder %v1272, 0
        %vm1305 = vcmp.ne.s32.totalorder %v1273, 0
        %vm1306 = vcmp.ne.s32.totalorder %v1274, 0
        %vm1307 = vcmp.ne.s32.totalorder %v1275, 0
        %vm1308 = vcmp.ne.s32.totalorder %v1276, 0
        %vm1309 = vcmp.ne.s32.totalorder %v1277, 0
        %vm1310 = vcmp.ne.s32.totalorder %v1278, 0
        %vm1311 = vcmp.ne.s32.totalorder %v1279, 0
        %vm1312 = vcmp.ne.s32.totalorder %v1280, 0
        %vm1313 = vcmp.ne.s32.totalorder %v1281, 0
        %vm1314 = vcmp.ne.s32.totalorder %v1282, 0
        %vm1315 = vcmp.ne.s32.totalorder %v1283, 0
        %vm1316 = vcmp.ne.s32.totalorder %v1284, 0
        %vm1317 = vcmp.ne.s32.totalorder %v1285, 0
        %vm1318 = vcmp.ne.s32.totalorder %v1286, 0
        %vm1319 = vcmp.ne.s32.totalorder %v1287, 0
        %vm1320 = vcmp.ne.s32.totalorder %v1288, 0
        %vm1321 = vcmp.ne.s32.totalorder %v1289, 0
        %vm1322 = vcmp.ne.s32.totalorder %v1290, 0
        %vm1323 = vcmp.ne.s32.totalorder %v1291, 0
        %vm1324 = vcmp.ne.s32.totalorder %v1292, 0
        %vm1325 = vcmp.ne.s32.totalorder %v1293, 0
        %vm1326 = vcmp.ne.s32.totalorder %v1294, 0
        %v1327 = vsel %vm1295, 1, 0
        %v1328 = vsel %vm1296, 1, 0
        %v1329 = vsel %vm1297, 1, 0
        %v1330 = vsel %vm1298, 1, 0
        %v1331 = vsel %vm1299, 1, 0
        %v1332 = vsel %vm1300, 1, 0
        %v1333 = vsel %vm1301, 1, 0
        %v1334 = vsel %vm1302, 1, 0
        %v1335 = vsel %vm1303, 1, 0
        %v1336 = vsel %vm1304, 1, 0
        %v1337 = vsel %vm1305, 1, 0
        %v1338 = vsel %vm1306, 1, 0
        %v1339 = vsel %vm1307, 1, 0
        %v1340 = vsel %vm1308, 1, 0
        %v1341 = vsel %vm1309, 1, 0
        %v1342 = vsel %vm1310, 1, 0
        %v1343 = vsel %vm1311, 1, 0
        %v1344 = vsel %vm1312, 1, 0
        %v1345 = vsel %vm1313, 1, 0
        %v1346 = vsel %vm1314, 1, 0
        %v1347 = vsel %vm1315, 1, 0
        %v1348 = vsel %vm1316, 1, 0
        %v1349 = vsel %vm1317, 1, 0
        %v1350 = vsel %vm1318, 1, 0
        %v1351 = vsel %vm1319, 1, 0
        %v1352 = vsel %vm1320, 1, 0
        %v1353 = vsel %vm1321, 1, 0
        %v1354 = vsel %vm1322, 1, 0
        %v1355 = vsel %vm1323, 1, 0
        %v1356 = vsel %vm1324, 1, 0
        %v1357 = vsel %vm1325, 1, 0
        %v1358 = vsel %vm1326, 1, 0
        %vm1359 = vcmp.eq.s32.totalorder %v1327, 1
        %vm1360 = vcmp.eq.s32.totalorder %v1328, 1
        %vm1361 = vcmp.eq.s32.totalorder %v1329, 1
        %vm1362 = vcmp.eq.s32.totalorder %v1330, 1
        %vm1363 = vcmp.eq.s32.totalorder %v1331, 1
        %vm1364 = vcmp.eq.s32.totalorder %v1332, 1
        %vm1365 = vcmp.eq.s32.totalorder %v1333, 1
        %vm1366 = vcmp.eq.s32.totalorder %v1334, 1
        %vm1367 = vcmp.eq.s32.totalorder %v1335, 1
        %vm1368 = vcmp.eq.s32.totalorder %v1336, 1
        %vm1369 = vcmp.eq.s32.totalorder %v1337, 1
        %vm1370 = vcmp.eq.s32.totalorder %v1338, 1
        %vm1371 = vcmp.eq.s32.totalorder %v1339, 1
        %vm1372 = vcmp.eq.s32.totalorder %v1340, 1
        %vm1373 = vcmp.eq.s32.totalorder %v1341, 1
        %vm1374 = vcmp.eq.s32.totalorder %v1342, 1
        %vm1375 = vcmp.eq.s32.totalorder %v1343, 1
        %vm1376 = vcmp.eq.s32.totalorder %v1344, 1
        %vm1377 = vcmp.eq.s32.totalorder %v1345, 1
        %vm1378 = vcmp.eq.s32.totalorder %v1346, 1
        %vm1379 = vcmp.eq.s32.totalorder %v1347, 1
        %vm1380 = vcmp.eq.s32.totalorder %v1348, 1
        %vm1381 = vcmp.eq.s32.totalorder %v1349, 1
        %vm1382 = vcmp.eq.s32.totalorder %v1350, 1
        %vm1383 = vcmp.eq.s32.totalorder %v1351, 1
        %vm1384 = vcmp.eq.s32.totalorder %v1352, 1
        %vm1385 = vcmp.eq.s32.totalorder %v1353, 1
        %vm1386 = vcmp.eq.s32.totalorder %v1354, 1
        %vm1387 = vcmp.eq.s32.totalorder %v1355, 1
        %vm1388 = vcmp.eq.s32.totalorder %v1356, 1
        %vm1389 = vcmp.eq.s32.totalorder %v1357, 1
        %vm1390 = vcmp.eq.s32.totalorder %v1358, 1
        %vm1391 = vcmp.ne.s32.totalorder %v1263, 15
        %vm1392 = vcmp.ne.s32.totalorder %v1264, 15
        %vm1393 = vcmp.ne.s32.totalorder %v1265, 15
        %vm1394 = vcmp.ne.s32.totalorder %v1266, 15
        %vm1395 = vcmp.ne.s32.totalorder %v1267, 15
        %vm1396 = vcmp.ne.s32.totalorder %v1268, 15
        %vm1397 = vcmp.ne.s32.totalorder %v1269, 15
        %vm1398 = vcmp.ne.s32.totalorder %v1270, 15
        %vm1399 = vcmp.ne.s32.totalorder %v1271, 15
        %vm1400 = vcmp.ne.s32.totalorder %v1272, 15
        %vm1401 = vcmp.ne.s32.totalorder %v1273, 15
        %vm1402 = vcmp.ne.s32.totalorder %v1274, 15
        %vm1403 = vcmp.ne.s32.totalorder %v1275, 15
        %vm1404 = vcmp.ne.s32.totalorder %v1276, 15
        %vm1405 = vcmp.ne.s32.totalorder %v1277, 15
        %vm1406 = vcmp.ne.s32.totalorder %v1278, 15
        %vm1407 = vcmp.ne.s32.totalorder %v1279, 15
        %vm1408 = vcmp.ne.s32.totalorder %v1280, 15
        %vm1409 = vcmp.ne.s32.totalorder %v1281, 15
        %vm1410 = vcmp.ne.s32.totalorder %v1282, 15
        %vm1411 = vcmp.ne.s32.totalorder %v1283, 15
        %vm1412 = vcmp.ne.s32.totalorder %v1284, 15
        %vm1413 = vcmp.ne.s32.totalorder %v1285, 15
        %vm1414 = vcmp.ne.s32.totalorder %v1286, 15
        %vm1415 = vcmp.ne.s32.totalorder %v1287, 15
        %vm1416 = vcmp.ne.s32.totalorder %v1288, 15
        %vm1417 = vcmp.ne.s32.totalorder %v1289, 15
        %vm1418 = vcmp.ne.s32.totalorder %v1290, 15
        %vm1419 = vcmp.ne.s32.totalorder %v1291, 15
        %vm1420 = vcmp.ne.s32.totalorder %v1292, 15
        %vm1421 = vcmp.ne.s32.totalorder %v1293, 15
        %vm1422 = vcmp.ne.s32.totalorder %v1294, 15
        %v1423 = vsel %vm1391, 1, 0
        %v1424 = vsel %vm1392, 1, 0
        %v1425 = vsel %vm1393, 1, 0
        %v1426 = vsel %vm1394, 1, 0
        %v1427 = vsel %vm1395, 1, 0
        %v1428 = vsel %vm1396, 1, 0
        %v1429 = vsel %vm1397, 1, 0
        %v1430 = vsel %vm1398, 1, 0
        %v1431 = vsel %vm1399, 1, 0
        %v1432 = vsel %vm1400, 1, 0
        %v1433 = vsel %vm1401, 1, 0
        %v1434 = vsel %vm1402, 1, 0
        %v1435 = vsel %vm1403, 1, 0
        %v1436 = vsel %vm1404, 1, 0
        %v1437 = vsel %vm1405, 1, 0
        %v1438 = vsel %vm1406, 1, 0
        %v1439 = vsel %vm1407, 1, 0
        %v1440 = vsel %vm1408, 1, 0
        %v1441 = vsel %vm1409, 1, 0
        %v1442 = vsel %vm1410, 1, 0
        %v1443 = vsel %vm1411, 1, 0
        %v1444 = vsel %vm1412, 1, 0
        %v1445 = vsel %vm1413, 1, 0
        %v1446 = vsel %vm1414, 1, 0
        %v1447 = vsel %vm1415, 1, 0
        %v1448 = vsel %vm1416, 1, 0
        %v1449 = vsel %vm1417, 1, 0
        %v1450 = vsel %vm1418, 1, 0
        %v1451 = vsel %vm1419, 1, 0
        %v1452 = vsel %vm1420, 1, 0
        %v1453 = vsel %vm1421, 1, 0
        %v1454 = vsel %vm1422, 1, 0
        %vm1455 = vcmp.eq.s32.totalorder %v1423, 1
        %vm1456 = vcmp.eq.s32.totalorder %v1424, 1
        %vm1457 = vcmp.eq.s32.totalorder %v1425, 1
        %vm1458 = vcmp.eq.s32.totalorder %v1426, 1
        %vm1459 = vcmp.eq.s32.totalorder %v1427, 1
        %vm1460 = vcmp.eq.s32.totalorder %v1428, 1
        %vm1461 = vcmp.eq.s32.totalorder %v1429, 1
        %vm1462 = vcmp.eq.s32.totalorder %v1430, 1
        %vm1463 = vcmp.eq.s32.totalorder %v1431, 1
        %vm1464 = vcmp.eq.s32.totalorder %v1432, 1
        %vm1465 = vcmp.eq.s32.totalorder %v1433, 1
        %vm1466 = vcmp.eq.s32.totalorder %v1434, 1
        %vm1467 = vcmp.eq.s32.totalorder %v1435, 1
        %vm1468 = vcmp.eq.s32.totalorder %v1436, 1
        %vm1469 = vcmp.eq.s32.totalorder %v1437, 1
        %vm1470 = vcmp.eq.s32.totalorder %v1438, 1
        %vm1471 = vcmp.eq.s32.totalorder %v1439, 1
        %vm1472 = vcmp.eq.s32.totalorder %v1440, 1
        %vm1473 = vcmp.eq.s32.totalorder %v1441, 1
        %vm1474 = vcmp.eq.s32.totalorder %v1442, 1
        %vm1475 = vcmp.eq.s32.totalorder %v1443, 1
        %vm1476 = vcmp.eq.s32.totalorder %v1444, 1
        %vm1477 = vcmp.eq.s32.totalorder %v1445, 1
        %vm1478 = vcmp.eq.s32.totalorder %v1446, 1
        %vm1479 = vcmp.eq.s32.totalorder %v1447, 1
        %vm1480 = vcmp.eq.s32.totalorder %v1448, 1
        %vm1481 = vcmp.eq.s32.totalorder %v1449, 1
        %vm1482 = vcmp.eq.s32.totalorder %v1450, 1
        %vm1483 = vcmp.eq.s32.totalorder %v1451, 1
        %vm1484 = vcmp.eq.s32.totalorder %v1452, 1
        %vm1485 = vcmp.eq.s32.totalorder %v1453, 1
        %vm1486 = vcmp.eq.s32.totalorder %v1454, 1
        %v1487 = vld [vmem:[#allocation2] sm:$0xf8]
        %v1488 = vld [vmem:[#allocation2 + $0x8] sm:$0xff]
        %v1489 = vld [vmem:[#allocation2 + $0x10] sm:$0xff]
        %v1490 = vld [vmem:[#allocation2 + $0x18] sm:$0xff]
        %v1491 = vld [vmem:[#allocation2 + $0x20] sm:$0xff]
        %v1492 = vld [vmem:[#allocation2 + $0x28] sm:$0xff]
        %v1493 = vld [vmem:[#allocation2 + $0x30] sm:$0xff]
        %v1494 = vld [vmem:[#allocation2 + $0x38] sm:$0xff]
        %v1495 = vld [vmem:[#allocation2 + $0x40] sm:$0xff]
        %v1496 = vld [vmem:[#allocation2 + $0x48] sm:$0xff]
        %v1497 = vld [vmem:[#allocation2 + $0x50] sm:$0xff]
        %v1498 = vld [vmem:[#allocation2 + $0x58] sm:$0xff]
        %v1499 = vld [vmem:[#allocation2 + $0x60] sm:$0xff]
        %v1500 = vld [vmem:[#allocation2 + $0x68] sm:$0xff]
        %v1501 = vld [vmem:[#allocation2 + $0x70] sm:$0xff]
        %v1502 = vld [vmem:[#allocation2 + $0x78] sm:$0xff]
        %v1503 = vld [vmem:[#allocation2 + $0x80] sm:$0xf]
        %vm1504 = vmpackc.low %vm1359, %vm1359
        %vm1505 = vmpackc.low %vm1360, %vm1360
        %vm1506 = vmpackc.low %vm1361, %vm1361
        %vm1507 = vmpackc.low %vm1362, %vm1362
        %vm1508 = vmpackc.low %vm1363, %vm1363
        %vm1509 = vmpackc.low %vm1364, %vm1364
        %vm1510 = vmpackc.low %vm1365, %vm1365
        %vm1511 = vmpackc.low %vm1366, %vm1366
        %vm1512 = vmpackc.low %vm1367, %vm1367
        %vm1513 = vmpackc.low %vm1368, %vm1368
        %vm1514 = vmpackc.low %vm1369, %vm1369
        %vm1515 = vmpackc.low %vm1370, %vm1370
        %vm1516 = vmpackc.low %vm1371, %vm1371
        %vm1517 = vmpackc.low %vm1372, %vm1372
        %vm1518 = vmpackc.low %vm1373, %vm1373
        %vm1519 = vmpackc.low %vm1374, %vm1374
        %vm1520 = vmpackc.low %vm1375, %vm1375
        %vm1521 = vmpackc.low %vm1376, %vm1376
        %vm1522 = vmpackc.low %vm1377, %vm1377
        %vm1523 = vmpackc.low %vm1378, %vm1378
        %vm1524 = vmpackc.low %vm1379, %vm1379
        %vm1525 = vmpackc.low %vm1380, %vm1380
        %vm1526 = vmpackc.low %vm1381, %vm1381
        %vm1527 = vmpackc.low %vm1382, %vm1382
        %vm1528 = vmpackc.low %vm1383, %vm1383
        %vm1529 = vmpackc.low %vm1384, %vm1384
        %vm1530 = vmpackc.low %vm1385, %vm1385
        %vm1531 = vmpackc.low %vm1386, %vm1386
        %vm1532 = vmpackc.low %vm1387, %vm1387
        %vm1533 = vmpackc.low %vm1388, %vm1388
        %vm1534 = vmpackc.low %vm1389, %vm1389
        %vm1535 = vmpackc.low %vm1390, %vm1390
        %v1536 = vsel %vm1504, 65537, 0
        %v1537 = vsel %vm1505, 65537, 0
        %v1538 = vsel %vm1506, 65537, 0
        %v1539 = vsel %vm1507, 65537, 0
        %v1540 = vsel %vm1508, 65537, 0
        %v1541 = vsel %vm1509, 65537, 0
        %v1542 = vsel %vm1510, 65537, 0
        %v1543 = vsel %vm1511, 65537, 0
        %v1544 = vsel %vm1512, 65537, 0
        %v1545 = vsel %vm1513, 65537, 0
        %v1546 = vsel %vm1514, 65537, 0
        %v1547 = vsel %vm1515, 65537, 0
        %v1548 = vsel %vm1516, 65537, 0
        %v1549 = vsel %vm1517, 65537, 0
        %v1550 = vsel %vm1518, 65537, 0
        %v1551 = vsel %vm1519, 65537, 0
        %v1552 = vsel %vm1520, 65537, 0
        %v1553 = vsel %vm1521, 65537, 0
        %v1554 = vsel %vm1522, 65537, 0
        %v1555 = vsel %vm1523, 65537, 0
        %v1556 = vsel %vm1524, 65537, 0
        %v1557 = vsel %vm1525, 65537, 0
        %v1558 = vsel %vm1526, 65537, 0
        %v1559 = vsel %vm1527, 65537, 0
        %v1560 = vsel %vm1528, 65537, 0
        %v1561 = vsel %vm1529, 65537, 0
        %v1562 = vsel %vm1530, 65537, 0
        %v1563 = vsel %vm1531, 65537, 0
        %v1564 = vsel %vm1532, 65537, 0
        %v1565 = vsel %vm1533, 65537, 0
        %v1566 = vsel %vm1534, 65537, 0
        %v1567 = vsel %vm1535, 65537, 0
        %v1568 = vunpack.c.l.b16 %v1536
        %v1569 = vunpack.c.l.b16 %v1537
        %v1570 = vunpack.c.l.b16 %v1538
        %v1571 = vunpack.c.l.b16 %v1539
        %v1572 = vunpack.c.l.b16 %v1540
        %v1573 = vunpack.c.l.b16 %v1541
        %v1574 = vunpack.c.l.b16 %v1542
        %v1575 = vunpack.c.l.b16 %v1543
        %v1576 = vunpack.c.l.b16 %v1544
        %v1577 = vunpack.c.l.b16 %v1545
        %v1578 = vunpack.c.l.b16 %v1546
        %v1579 = vunpack.c.l.b16 %v1547
        %v1580 = vunpack.c.l.b16 %v1548
        %v1581 = vunpack.c.l.b16 %v1549
        %v1582 = vunpack.c.l.b16 %v1550
        %v1583 = vunpack.c.l.b16 %v1551
        %v1584 = vunpack.c.l.b16 %v1552
        %v1585 = vunpack.c.l.b16 %v1553
        %v1586 = vunpack.c.l.b16 %v1554
        %v1587 = vunpack.c.l.b16 %v1555
        %v1588 = vunpack.c.l.b16 %v1556
        %v1589 = vunpack.c.l.b16 %v1557
        %v1590 = vunpack.c.l.b16 %v1558
        %v1591 = vunpack.c.l.b16 %v1559
        %v1592 = vunpack.c.l.b16 %v1560
        %v1593 = vunpack.c.l.b16 %v1561
        %v1594 = vunpack.c.l.b16 %v1562
        %v1595 = vunpack.c.l.b16 %v1563
        %v1596 = vunpack.c.l.b16 %v1564
        %v1597 = vunpack.c.l.b16 %v1565
        %v1598 = vunpack.c.l.b16 %v1566
        %v1599 = vunpack.c.l.b16 %v1567
        %v1600 = vpack.c.b16 %v1569, %v1568
        %v1601 = vpack.c.b16 %v1571, %v1570
        %v1602 = vpack.c.b16 %v1573, %v1572
        %v1603 = vpack.c.b16 %v1575, %v1574
        %v1604 = vpack.c.b16 %v1577, %v1576
        %v1605 = vpack.c.b16 %v1579, %v1578
        %v1606 = vpack.c.b16 %v1581, %v1580
        %v1607 = vpack.c.b16 %v1583, %v1582
        %v1608 = vpack.c.b16 %v1585, %v1584
        %v1609 = vpack.c.b16 %v1587, %v1586
        %v1610 = vpack.c.b16 %v1589, %v1588
        %v1611 = vpack.c.b16 %v1591, %v1590
        %v1612 = vpack.c.b16 %v1593, %v1592
        %v1613 = vpack.c.b16 %v1595, %v1594
        %v1614 = vpack.c.b16 %v1597, %v1596
        %v1615 = vpack.c.b16 %v1599, %v1598
        %vm1616 = vsmask.f32 3328
        %v1618 = vshrl.u32 %v1600, 16
        %v1620 = vrot.slane %v1618, 4
        %v1621 = vshll.u32 %v1600, 16
        %v1623 = vrot.slane %v1621, 5
        %v1624 = vor.u32 %v1620, %v1623
        %v1626 = vshrl.u32 %v1601, 16
        %v1628 = vrot.slane %v1626, 4
        %v1629 = vshll.u32 %v1601, 16
        %v1631 = vrot.slane %v1629, 5
        %v1632 = vor.u32 %v1628, %v1631
        %v1633 = vsel %vm1616, %v1624, %v1632
        %v1635 = vshrl.u32 %v1602, 16
        %v1637 = vrot.slane %v1635, 4
        %v1638 = vshll.u32 %v1602, 16
        %v1640 = vrot.slane %v1638, 5
        %v1641 = vor.u32 %v1637, %v1640
        %v1642 = vsel %vm1616, %v1632, %v1641
        %v1644 = vshrl.u32 %v1603, 16
        %v1646 = vrot.slane %v1644, 4
        %v1647 = vshll.u32 %v1603, 16
        %v1649 = vrot.slane %v1647, 5
        %v1650 = vor.u32 %v1646, %v1649
        %v1651 = vsel %vm1616, %v1641, %v1650
        %v1653 = vshrl.u32 %v1604, 16
        %v1655 = vrot.slane %v1653, 4
        %v1656 = vshll.u32 %v1604, 16
        %v1658 = vrot.slane %v1656, 5
        %v1659 = vor.u32 %v1655, %v1658
        %v1660 = vsel %vm1616, %v1650, %v1659
        %v1662 = vshrl.u32 %v1605, 16
        %v1664 = vrot.slane %v1662, 4
        %v1665 = vshll.u32 %v1605, 16
        %v1667 = vrot.slane %v1665, 5
        %v1668 = vor.u32 %v1664, %v1667
        %v1669 = vsel %vm1616, %v1659, %v1668
        %v1671 = vshrl.u32 %v1606, 16
        %v1673 = vrot.slane %v1671, 4
        %v1674 = vshll.u32 %v1606, 16
        %v1676 = vrot.slane %v1674, 5
        %v1677 = vor.u32 %v1673, %v1676
        %v1678 = vsel %vm1616, %v1668, %v1677
        %v1680 = vshrl.u32 %v1607, 16
        %v1682 = vrot.slane %v1680, 4
        %v1683 = vshll.u32 %v1607, 16
        %v1685 = vrot.slane %v1683, 5
        %v1686 = vor.u32 %v1682, %v1685
        %v1687 = vsel %vm1616, %v1677, %v1686
        %v1689 = vshrl.u32 %v1608, 16
        %v1691 = vrot.slane %v1689, 4
        %v1692 = vshll.u32 %v1608, 16
        %v1694 = vrot.slane %v1692, 5
        %v1695 = vor.u32 %v1691, %v1694
        %v1696 = vsel %vm1616, %v1686, %v1695
        %v1698 = vshrl.u32 %v1609, 16
        %v1700 = vrot.slane %v1698, 4
        %v1701 = vshll.u32 %v1609, 16
        %v1703 = vrot.slane %v1701, 5
        %v1704 = vor.u32 %v1700, %v1703
        %v1705 = vsel %vm1616, %v1695, %v1704
        %v1707 = vshrl.u32 %v1610, 16
        %v1709 = vrot.slane %v1707, 4
        %v1710 = vshll.u32 %v1610, 16
        %v1712 = vrot.slane %v1710, 5
        %v1713 = vor.u32 %v1709, %v1712
        %v1714 = vsel %vm1616, %v1704, %v1713
        %v1716 = vshrl.u32 %v1611, 16
        %v1718 = vrot.slane %v1716, 4
        %v1719 = vshll.u32 %v1611, 16
        %v1721 = vrot.slane %v1719, 5
        %v1722 = vor.u32 %v1718, %v1721
        %v1723 = vsel %vm1616, %v1713, %v1722
        %v1725 = vshrl.u32 %v1612, 16
        %v1727 = vrot.slane %v1725, 4
        %v1728 = vshll.u32 %v1612, 16
        %v1730 = vrot.slane %v1728, 5
        %v1731 = vor.u32 %v1727, %v1730
        %v1732 = vsel %vm1616, %v1722, %v1731
        %v1734 = vshrl.u32 %v1613, 16
        %v1736 = vrot.slane %v1734, 4
        %v1737 = vshll.u32 %v1613, 16
        %v1739 = vrot.slane %v1737, 5
        %v1740 = vor.u32 %v1736, %v1739
        %v1741 = vsel %vm1616, %v1731, %v1740
        %v1743 = vshrl.u32 %v1614, 16
        %v1745 = vrot.slane %v1743, 4
        %v1746 = vshll.u32 %v1614, 16
        %v1748 = vrot.slane %v1746, 5
        %v1749 = vor.u32 %v1745, %v1748
        %v1750 = vsel %vm1616, %v1740, %v1749
        %v1752 = vshrl.u32 %v1615, 16
        %v1754 = vrot.slane %v1752, 4
        %v1755 = vshll.u32 %v1615, 16
        %v1757 = vrot.slane %v1755, 5
        %v1758 = vor.u32 %v1754, %v1757
        %v1759 = vsel %vm1616, %v1749, %v1758
        %vm1760 = vcmp.ne.s16.totalorder %v1624, 0
        %vm1761 = vcmp.ne.s16.totalorder %v1633, 0
        %vm1762 = vcmp.ne.s16.totalorder %v1642, 0
        %vm1763 = vcmp.ne.s16.totalorder %v1651, 0
        %vm1764 = vcmp.ne.s16.totalorder %v1660, 0
        %vm1765 = vcmp.ne.s16.totalorder %v1669, 0
        %vm1766 = vcmp.ne.s16.totalorder %v1678, 0
        %vm1767 = vcmp.ne.s16.totalorder %v1687, 0
        %vm1768 = vcmp.ne.s16.totalorder %v1696, 0
        %vm1769 = vcmp.ne.s16.totalorder %v1705, 0
        %vm1770 = vcmp.ne.s16.totalorder %v1714, 0
        %vm1771 = vcmp.ne.s16.totalorder %v1723, 0
        %vm1772 = vcmp.ne.s16.totalorder %v1732, 0
        %vm1773 = vcmp.ne.s16.totalorder %v1741, 0
        %vm1774 = vcmp.ne.s16.totalorder %v1750, 0
        %vm1775 = vcmp.ne.s16.totalorder %v1759, 0
        %vm1776 = vcmp.ne.s16.totalorder %v1758, 0
        %v1777 = vsel %vm1760, %v1487, 0
        %v1778 = vsel %vm1761, %v1488, 0
        %v1779 = vsel %vm1762, %v1489, 0
        %v1780 = vsel %vm1763, %v1490, 0
        %v1781 = vsel %vm1764, %v1491, 0
        %v1782 = vsel %vm1765, %v1492, 0
        %v1783 = vsel %vm1766, %v1493, 0
        %v1784 = vsel %vm1767, %v1494, 0
        %v1785 = vsel %vm1768, %v1495, 0
        %v1786 = vsel %vm1769, %v1496, 0
        %v1787 = vsel %vm1770, %v1497, 0
        %v1788 = vsel %vm1771, %v1498, 0
        %v1789 = vsel %vm1772, %v1499, 0
        %v1790 = vsel %vm1773, %v1500, 0
        %v1791 = vsel %vm1774, %v1501, 0
        %v1792 = vsel %vm1775, %v1502, 0
        %v1793 = vsel %vm1776, %v1503, 0
        %vm1794 = vsmask.f32 4352
        %v1796 = vshrl.u32 %v1777, 16
        %v1798 = vrot.slane %v1796, 3
        %v1799 = vshll.u32 %v1777, 16
        %v1801 = vrot.slane %v1799, 4
        %v1802 = vor.u32 %v1798, %v1801
        %v1804 = vshrl.u32 %v1778, 16
        %v1806 = vrot.slane %v1804, 3
        %v1807 = vshll.u32 %v1778, 16
        %v1809 = vrot.slane %v1807, 4
        %v1810 = vor.u32 %v1806, %v1809
        %v1811 = vsel %vm1794, %v1802, %v1810
        %v1813 = vshrl.u32 %v1779, 16
        %v1815 = vrot.slane %v1813, 3
        %v1816 = vshll.u32 %v1779, 16
        %v1818 = vrot.slane %v1816, 4
        %v1819 = vor.u32 %v1815, %v1818
        %v1820 = vsel %vm1794, %v1810, %v1819
        %v1822 = vshrl.u32 %v1780, 16
        %v1824 = vrot.slane %v1822, 3
        %v1825 = vshll.u32 %v1780, 16
        %v1827 = vrot.slane %v1825, 4
        %v1828 = vor.u32 %v1824, %v1827
        %v1829 = vsel %vm1794, %v1819, %v1828
        %v1831 = vshrl.u32 %v1781, 16
        %v1833 = vrot.slane %v1831, 3
        %v1834 = vshll.u32 %v1781, 16
        %v1836 = vrot.slane %v1834, 4
        %v1837 = vor.u32 %v1833, %v1836
        %v1838 = vsel %vm1794, %v1828, %v1837
        %v1840 = vshrl.u32 %v1782, 16
        %v1842 = vrot.slane %v1840, 3
        %v1843 = vshll.u32 %v1782, 16
        %v1845 = vrot.slane %v1843, 4
        %v1846 = vor.u32 %v1842, %v1845
        %v1847 = vsel %vm1794, %v1837, %v1846
        %v1849 = vshrl.u32 %v1783, 16
        %v1851 = vrot.slane %v1849, 3
        %v1852 = vshll.u32 %v1783, 16
        %v1854 = vrot.slane %v1852, 4
        %v1855 = vor.u32 %v1851, %v1854
        %v1856 = vsel %vm1794, %v1846, %v1855
        %v1858 = vshrl.u32 %v1784, 16
        %v1860 = vrot.slane %v1858, 3
        %v1861 = vshll.u32 %v1784, 16
        %v1863 = vrot.slane %v1861, 4
        %v1864 = vor.u32 %v1860, %v1863
        %v1865 = vsel %vm1794, %v1855, %v1864
        %v1867 = vshrl.u32 %v1785, 16
        %v1869 = vrot.slane %v1867, 3
        %v1870 = vshll.u32 %v1785, 16
        %v1872 = vrot.slane %v1870, 4
        %v1873 = vor.u32 %v1869, %v1872
        %v1874 = vsel %vm1794, %v1864, %v1873
        %v1876 = vshrl.u32 %v1786, 16
        %v1878 = vrot.slane %v1876, 3
        %v1879 = vshll.u32 %v1786, 16
        %v1881 = vrot.slane %v1879, 4
        %v1882 = vor.u32 %v1878, %v1881
        %v1883 = vsel %vm1794, %v1873, %v1882
        %v1885 = vshrl.u32 %v1787, 16
        %v1887 = vrot.slane %v1885, 3
        %v1888 = vshll.u32 %v1787, 16
        %v1890 = vrot.slane %v1888, 4
        %v1891 = vor.u32 %v1887, %v1890
        %v1892 = vsel %vm1794, %v1882, %v1891
        %v1894 = vshrl.u32 %v1788, 16
        %v1896 = vrot.slane %v1894, 3
        %v1897 = vshll.u32 %v1788, 16
        %v1899 = vrot.slane %v1897, 4
        %v1900 = vor.u32 %v1896, %v1899
        %v1901 = vsel %vm1794, %v1891, %v1900
        %v1903 = vshrl.u32 %v1789, 16
        %v1905 = vrot.slane %v1903, 3
        %v1906 = vshll.u32 %v1789, 16
        %v1908 = vrot.slane %v1906, 4
        %v1909 = vor.u32 %v1905, %v1908
        %v1910 = vsel %vm1794, %v1900, %v1909
        %v1912 = vshrl.u32 %v1790, 16
        %v1914 = vrot.slane %v1912, 3
        %v1915 = vshll.u32 %v1790, 16
        %v1917 = vrot.slane %v1915, 4
        %v1918 = vor.u32 %v1914, %v1917
        %v1919 = vsel %vm1794, %v1909, %v1918
        %v1921 = vshrl.u32 %v1791, 16
        %v1923 = vrot.slane %v1921, 3
        %v1924 = vshll.u32 %v1791, 16
        %v1926 = vrot.slane %v1924, 4
        %v1927 = vor.u32 %v1923, %v1926
        %v1928 = vsel %vm1794, %v1918, %v1927
        %v1930 = vshrl.u32 %v1792, 16
        %v1932 = vrot.slane %v1930, 3
        %v1933 = vshll.u32 %v1792, 16
        %v1935 = vrot.slane %v1933, 4
        %v1936 = vor.u32 %v1932, %v1935
        %v1937 = vsel %vm1794, %v1927, %v1936
        %v1939 = vshrl.u32 %v1793, 16
        %v1941 = vrot.slane %v1939, 3
        %v1942 = vshll.u32 %v1793, 16
        %v1944 = vrot.slane %v1942, 4
        %v1945 = vor.u32 %v1941, %v1944
        %v1946 = vsel %vm1794, %v1936, %v1945
        %1963 = vst.msk [vmem:[#allocation3] sm:$0xff] %vm773, %v1811
        %1964 = vst.msk [vmem:[#allocation3 + $0x18] sm:$0xff] %vm773, %v1820
        %1965 = vst.msk [vmem:[#allocation3 + $0x30] sm:$0xff] %vm773, %v1829
        %1966 = vst.msk [vmem:[#allocation3 + $0x48] sm:$0xff] %vm773, %v1838
        %1967 = vst.msk [vmem:[#allocation3 + $0x60] sm:$0xff] %vm773, %v1847
        %1968 = vst.msk [vmem:[#allocation3 + $0x78] sm:$0xff] %vm773, %v1856
        %1969 = vst.msk [vmem:[#allocation3 + $0x90] sm:$0xff] %vm773, %v1865
        %1970 = vst.msk [vmem:[#allocation3 + $0xa8] sm:$0xff] %vm773, %v1874
        %1971 = vst.msk [vmem:[#allocation3 + $0xc0] sm:$0xff] %vm773, %v1883
        %1972 = vst.msk [vmem:[#allocation3 + $0xd8] sm:$0xff] %vm773, %v1892
        %1973 = vst.msk [vmem:[#allocation3 + $0xf0] sm:$0xff] %vm773, %v1901
        %1974 = vst.msk [vmem:[#allocation3 + $0x108] sm:$0xff] %vm773, %v1910
        %1975 = vst.msk [vmem:[#allocation3 + $0x120] sm:$0xff] %vm773, %v1919
        %1976 = vst.msk [vmem:[#allocation3 + $0x138] sm:$0xff] %vm773, %v1928
        %1977 = vst.msk [vmem:[#allocation3 + $0x150] sm:$0xff] %vm773, %v1937
        %1978 = vst.msk [vmem:[#allocation3 + $0x168] sm:$0xff] %vm773, %v1946
        %v1979 = vld [vmem:[#allocation2] sm:$0xf0]
        %v1980 = vld [vmem:[#allocation2 + $0x8] sm:$0xff]
        %v1981 = vld [vmem:[#allocation2 + $0x10] sm:$0xff]
        %v1982 = vld [vmem:[#allocation2 + $0x18] sm:$0xff]
        %v1983 = vld [vmem:[#allocation2 + $0x20] sm:$0xff]
        %v1984 = vld [vmem:[#allocation2 + $0x28] sm:$0xff]
        %v1985 = vld [vmem:[#allocation2 + $0x30] sm:$0xff]
        %v1986 = vld [vmem:[#allocation2 + $0x38] sm:$0xff]
        %v1987 = vld [vmem:[#allocation2 + $0x40] sm:$0xff]
        %v1988 = vld [vmem:[#allocation2 + $0x48] sm:$0xff]
        %v1989 = vld [vmem:[#allocation2 + $0x50] sm:$0xff]
        %v1990 = vld [vmem:[#allocation2 + $0x58] sm:$0xff]
        %v1991 = vld [vmem:[#allocation2 + $0x60] sm:$0xff]
        %v1992 = vld [vmem:[#allocation2 + $0x68] sm:$0xff]
        %v1993 = vld [vmem:[#allocation2 + $0x70] sm:$0xff]
        %v1994 = vld [vmem:[#allocation2 + $0x78] sm:$0xff]
        %v1995 = vld [vmem:[#allocation2 + $0x80] sm:$0xf]
        %v2013 = vrot.slane %v1979, 4
        %v2014 = vrot.slane %v1980, 4
        %v2015 = vsel %vm812, %v2013, %v2014
        %v2016 = vrot.slane %v1981, 4
        %v2017 = vsel %vm812, %v2014, %v2016
        %v2018 = vrot.slane %v1982, 4
        %v2019 = vsel %vm812, %v2016, %v2018
        %v2020 = vrot.slane %v1983, 4
        %v2021 = vsel %vm812, %v2018, %v2020
        %v2022 = vrot.slane %v1984, 4
        %v2023 = vsel %vm812, %v2020, %v2022
        %v2024 = vrot.slane %v1985, 4
        %v2025 = vsel %vm812, %v2022, %v2024
        %v2026 = vrot.slane %v1986, 4
        %v2027 = vsel %vm812, %v2024, %v2026
        %v2028 = vrot.slane %v1987, 4
        %v2029 = vsel %vm812, %v2026, %v2028
        %v2030 = vrot.slane %v1988, 4
        %v2031 = vsel %vm812, %v2028, %v2030
        %v2032 = vrot.slane %v1989, 4
        %v2033 = vsel %vm812, %v2030, %v2032
        %v2034 = vrot.slane %v1990, 4
        %v2035 = vsel %vm812, %v2032, %v2034
        %v2036 = vrot.slane %v1991, 4
        %v2037 = vsel %vm812, %v2034, %v2036
        %v2038 = vrot.slane %v1992, 4
        %v2039 = vsel %vm812, %v2036, %v2038
        %v2040 = vrot.slane %v1993, 4
        %v2041 = vsel %vm812, %v2038, %v2040
        %v2042 = vrot.slane %v1994, 4
        %v2043 = vsel %vm812, %v2040, %v2042
        %v2044 = vrot.slane %v1995, 4
        %v2045 = vsel %vm812, %v2042, %v2044
        %2046 = vrot.lane.b32.xlu0 %v2015, 32
        %v2047 = vpop.permute.xlu0 %2046
        %2048 = vrot.lane.b32.xlu0 %v2017, 32
        %v2049 = vpop.permute.xlu0 %2048
        %2050 = vrot.lane.b32.xlu0 %v2019, 32
        %v2051 = vpop.permute.xlu0 %2050
        %2052 = vrot.lane.b32.xlu0 %v2021, 32
        %v2053 = vpop.permute.xlu0 %2052
        %2054 = vrot.lane.b32.xlu0 %v2023, 32
        %v2055 = vpop.permute.xlu0 %2054
        %2056 = vrot.lane.b32.xlu0 %v2025, 32
        %v2057 = vpop.permute.xlu0 %2056
        %2058 = vrot.lane.b32.xlu0 %v2027, 32
        %v2059 = vpop.permute.xlu0 %2058
        %2060 = vrot.lane.b32.xlu0 %v2029, 32
        %v2061 = vpop.permute.xlu0 %2060
        %2062 = vrot.lane.b32.xlu0 %v2031, 32
        %v2063 = vpop.permute.xlu0 %2062
        %2064 = vrot.lane.b32.xlu0 %v2033, 32
        %v2065 = vpop.permute.xlu0 %2064
        %2066 = vrot.lane.b32.xlu0 %v2035, 32
        %v2067 = vpop.permute.xlu0 %2066
        %2068 = vrot.lane.b32.xlu0 %v2037, 32
        %v2069 = vpop.permute.xlu0 %2068
        %2070 = vrot.lane.b32.xlu0 %v2039, 32
        %v2071 = vpop.permute.xlu0 %2070
        %2072 = vrot.lane.b32.xlu0 %v2041, 32
        %v2073 = vpop.permute.xlu0 %2072
        %2074 = vrot.lane.b32.xlu0 %v2043, 32
        %v2075 = vpop.permute.xlu0 %2074
        %2076 = vrot.lane.b32.xlu0 %v2045, 32
        %v2077 = vpop.permute.xlu0 %2076
        %vm2094 = vcmask 523520
        %2095 = vst.msk [vmem:[#allocation3] sm:$0xff] %vm2094, %v2047
        %2096 = vst.msk [vmem:[#allocation3 + $0x18] sm:$0xff] %vm2094, %v2049
        %2097 = vst.msk [vmem:[#allocation3 + $0x30] sm:$0xff] %vm2094, %v2051
        %2098 = vst.msk [vmem:[#allocation3 + $0x48] sm:$0xff] %vm2094, %v2053
        %2099 = vst.msk [vmem:[#allocation3 + $0x60] sm:$0xff] %vm2094, %v2055
        %2100 = vst.msk [vmem:[#allocation3 + $0x78] sm:$0xff] %vm2094, %v2057
        %2101 = vst.msk [vmem:[#allocation3 + $0x90] sm:$0xff] %vm2094, %v2059
        %2102 = vst.msk [vmem:[#allocation3 + $0xa8] sm:$0xff] %vm2094, %v2061
        %2103 = vst.msk [vmem:[#allocation3 + $0xc0] sm:$0xff] %vm2094, %v2063
        %2104 = vst.msk [vmem:[#allocation3 + $0xd8] sm:$0xff] %vm2094, %v2065
        %2105 = vst.msk [vmem:[#allocation3 + $0xf0] sm:$0xff] %vm2094, %v2067
        %2106 = vst.msk [vmem:[#allocation3 + $0x108] sm:$0xff] %vm2094, %v2069
        %2107 = vst.msk [vmem:[#allocation3 + $0x120] sm:$0xff] %vm2094, %v2071
        %2108 = vst.msk [vmem:[#allocation3 + $0x138] sm:$0xff] %vm2094, %v2073
        %2109 = vst.msk [vmem:[#allocation3 + $0x150] sm:$0xff] %vm2094, %v2075
        %2110 = vst.msk [vmem:[#allocation3 + $0x168] sm:$0xff] %vm2094, %v2077
        %v2111 = vld [vmem:[#allocation2] sm:$0xf0]
        %v2112 = vld [vmem:[#allocation2 + $0x8] sm:$0xff]
        %v2113 = vld [vmem:[#allocation2 + $0x10] sm:$0xff]
        %v2114 = vld [vmem:[#allocation2 + $0x18] sm:$0xff]
        %v2115 = vld [vmem:[#allocation2 + $0x20] sm:$0xff]
        %v2116 = vld [vmem:[#allocation2 + $0x28] sm:$0xff]
        %v2117 = vld [vmem:[#allocation2 + $0x30] sm:$0xff]
        %v2118 = vld [vmem:[#allocation2 + $0x38] sm:$0xff]
        %v2119 = vld [vmem:[#allocation2 + $0x40] sm:$0xff]
        %v2120 = vld [vmem:[#allocation2 + $0x48] sm:$0xff]
        %v2121 = vld [vmem:[#allocation2 + $0x50] sm:$0xff]
        %v2122 = vld [vmem:[#allocation2 + $0x58] sm:$0xff]
        %v2123 = vld [vmem:[#allocation2 + $0x60] sm:$0xff]
        %v2124 = vld [vmem:[#allocation2 + $0x68] sm:$0xff]
        %v2125 = vld [vmem:[#allocation2 + $0x70] sm:$0xff]
        %v2126 = vld [vmem:[#allocation2 + $0x78] sm:$0xff]
        %v2127 = vld [vmem:[#allocation2 + $0x80] sm:$0x1f]
        %vm2128 = vmpackc.low %vm1455, %vm1455
        %vm2129 = vmpackc.low %vm1456, %vm1456
        %vm2130 = vmpackc.low %vm1457, %vm1457
        %vm2131 = vmpackc.low %vm1458, %vm1458
        %vm2132 = vmpackc.low %vm1459, %vm1459
        %vm2133 = vmpackc.low %vm1460, %vm1460
        %vm2134 = vmpackc.low %vm1461, %vm1461
        %vm2135 = vmpackc.low %vm1462, %vm1462
        %vm2136 = vmpackc.low %vm1463, %vm1463
        %vm2137 = vmpackc.low %vm1464, %vm1464
        %vm2138 = vmpackc.low %vm1465, %vm1465
        %vm2139 = vmpackc.low %vm1466, %vm1466
        %vm2140 = vmpackc.low %vm1467, %vm1467
        %vm2141 = vmpackc.low %vm1468, %vm1468
        %vm2142 = vmpackc.low %vm1469, %vm1469
        %vm2143 = vmpackc.low %vm1470, %vm1470
        %vm2144 = vmpackc.low %vm1471, %vm1471
        %vm2145 = vmpackc.low %vm1472, %vm1472
        %vm2146 = vmpackc.low %vm1473, %vm1473
        %vm2147 = vmpackc.low %vm1474, %vm1474
        %vm2148 = vmpackc.low %vm1475, %vm1475
        %vm2149 = vmpackc.low %vm1476, %vm1476
        %vm2150 = vmpackc.low %vm1477, %vm1477
        %vm2151 = vmpackc.low %vm1478, %vm1478
        %vm2152 = vmpackc.low %vm1479, %vm1479
        %vm2153 = vmpackc.low %vm1480, %vm1480
        %vm2154 = vmpackc.low %vm1481, %vm1481
        %vm2155 = vmpackc.low %vm1482, %vm1482
        %vm2156 = vmpackc.low %vm1483, %vm1483
        %vm2157 = vmpackc.low %vm1484, %vm1484
        %vm2158 = vmpackc.low %vm1485, %vm1485
        %vm2159 = vmpackc.low %vm1486, %vm1486
        %v2160 = vsel %vm2128, 65537, 0
        %v2161 = vsel %vm2129, 65537, 0
        %v2162 = vsel %vm2130, 65537, 0
        %v2163 = vsel %vm2131, 65537, 0
        %v2164 = vsel %vm2132, 65537, 0
        %v2165 = vsel %vm2133, 65537, 0
        %v2166 = vsel %vm2134, 65537, 0
        %v2167 = vsel %vm2135, 65537, 0
        %v2168 = vsel %vm2136, 65537, 0
        %v2169 = vsel %vm2137, 65537, 0
        %v2170 = vsel %vm2138, 65537, 0
        %v2171 = vsel %vm2139, 65537, 0
        %v2172 = vsel %vm2140, 65537, 0
        %v2173 = vsel %vm2141, 65537, 0
        %v2174 = vsel %vm2142, 65537, 0
        %v2175 = vsel %vm2143, 65537, 0
        %v2176 = vsel %vm2144, 65537, 0
        %v2177 = vsel %vm2145, 65537, 0
        %v2178 = vsel %vm2146, 65537, 0
        %v2179 = vsel %vm2147, 65537, 0
        %v2180 = vsel %vm2148, 65537, 0
        %v2181 = vsel %vm2149, 65537, 0
        %v2182 = vsel %vm2150, 65537, 0
        %v2183 = vsel %vm2151, 65537, 0
        %v2184 = vsel %vm2152, 65537, 0
        %v2185 = vsel %vm2153, 65537, 0
        %v2186 = vsel %vm2154, 65537, 0
        %v2187 = vsel %vm2155, 65537, 0
        %v2188 = vsel %vm2156, 65537, 0
        %v2189 = vsel %vm2157, 65537, 0
        %v2190 = vsel %vm2158, 65537, 0
        %v2191 = vsel %vm2159, 65537, 0
        %v2192 = vunpack.c.l.b16 %v2160
        %v2193 = vunpack.c.l.b16 %v2161
        %v2194 = vunpack.c.l.b16 %v2162
        %v2195 = vunpack.c.l.b16 %v2163
        %v2196 = vunpack.c.l.b16 %v2164
        %v2197 = vunpack.c.l.b16 %v2165
        %v2198 = vunpack.c.l.b16 %v2166
        %v2199 = vunpack.c.l.b16 %v2167
        %v2200 = vunpack.c.l.b16 %v2168
        %v2201 = vunpack.c.l.b16 %v2169
        %v2202 = vunpack.c.l.b16 %v2170
        %v2203 = vunpack.c.l.b16 %v2171
        %v2204 = vunpack.c.l.b16 %v2172
        %v2205 = vunpack.c.l.b16 %v2173
        %v2206 = vunpack.c.l.b16 %v2174
        %v2207 = vunpack.c.l.b16 %v2175
        %v2208 = vunpack.c.l.b16 %v2176
        %v2209 = vunpack.c.l.b16 %v2177
        %v2210 = vunpack.c.l.b16 %v2178
        %v2211 = vunpack.c.l.b16 %v2179
        %v2212 = vunpack.c.l.b16 %v2180
        %v2213 = vunpack.c.l.b16 %v2181
        %v2214 = vunpack.c.l.b16 %v2182
        %v2215 = vunpack.c.l.b16 %v2183
        %v2216 = vunpack.c.l.b16 %v2184
        %v2217 = vunpack.c.l.b16 %v2185
        %v2218 = vunpack.c.l.b16 %v2186
        %v2219 = vunpack.c.l.b16 %v2187
        %v2220 = vunpack.c.l.b16 %v2188
        %v2221 = vunpack.c.l.b16 %v2189
        %v2222 = vunpack.c.l.b16 %v2190
        %v2223 = vunpack.c.l.b16 %v2191
        %v2224 = vpack.c.b16 %v2193, %v2192
        %v2225 = vpack.c.b16 %v2195, %v2194
        %v2226 = vpack.c.b16 %v2197, %v2196
        %v2227 = vpack.c.b16 %v2199, %v2198
        %v2228 = vpack.c.b16 %v2201, %v2200
        %v2229 = vpack.c.b16 %v2203, %v2202
        %v2230 = vpack.c.b16 %v2205, %v2204
        %v2231 = vpack.c.b16 %v2207, %v2206
        %v2232 = vpack.c.b16 %v2209, %v2208
        %v2233 = vpack.c.b16 %v2211, %v2210
        %v2234 = vpack.c.b16 %v2213, %v2212
        %v2235 = vpack.c.b16 %v2215, %v2214
        %v2236 = vpack.c.b16 %v2217, %v2216
        %v2237 = vpack.c.b16 %v2219, %v2218
        %v2238 = vpack.c.b16 %v2221, %v2220
        %v2239 = vpack.c.b16 %v2223, %v2222
        %v2241 = vshrl.u32 %v2224, 16
        %v2243 = vrot.slane %v2241, 3
        %v2244 = vshll.u32 %v2224, 16
        %v2246 = vrot.slane %v2244, 4
        %v2247 = vor.u32 %v2243, %v2246
        %v2249 = vshrl.u32 %v2225, 16
        %v2251 = vrot.slane %v2249, 3
        %v2252 = vshll.u32 %v2225, 16
        %v2254 = vrot.slane %v2252, 4
        %v2255 = vor.u32 %v2251, %v2254
        %v2256 = vsel %vm1794, %v2247, %v2255
        %v2258 = vshrl.u32 %v2226, 16
        %v2260 = vrot.slane %v2258, 3
        %v2261 = vshll.u32 %v2226, 16
        %v2263 = vrot.slane %v2261, 4
        %v2264 = vor.u32 %v2260, %v2263
        %v2265 = vsel %vm1794, %v2255, %v2264
        %v2267 = vshrl.u32 %v2227, 16
        %v2269 = vrot.slane %v2267, 3
        %v2270 = vshll.u32 %v2227, 16
        %v2272 = vrot.slane %v2270, 4
        %v2273 = vor.u32 %v2269, %v2272
        %v2274 = vsel %vm1794, %v2264, %v2273
        %v2276 = vshrl.u32 %v2228, 16
        %v2278 = vrot.slane %v2276, 3
        %v2279 = vshll.u32 %v2228, 16
        %v2281 = vrot.slane %v2279, 4
        %v2282 = vor.u32 %v2278, %v2281
        %v2283 = vsel %vm1794, %v2273, %v2282
        %v2285 = vshrl.u32 %v2229, 16
        %v2287 = vrot.slane %v2285, 3
        %v2288 = vshll.u32 %v2229, 16
        %v2290 = vrot.slane %v2288, 4
        %v2291 = vor.u32 %v2287, %v2290
        %v2292 = vsel %vm1794, %v2282, %v2291
        %v2294 = vshrl.u32 %v2230, 16
        %v2296 = vrot.slane %v2294, 3
        %v2297 = vshll.u32 %v2230, 16
        %v2299 = vrot.slane %v2297, 4
        %v2300 = vor.u32 %v2296, %v2299
        %v2301 = vsel %vm1794, %v2291, %v2300
        %v2303 = vshrl.u32 %v2231, 16
        %v2305 = vrot.slane %v2303, 3
        %v2306 = vshll.u32 %v2231, 16
        %v2308 = vrot.slane %v2306, 4
        %v2309 = vor.u32 %v2305, %v2308
        %v2310 = vsel %vm1794, %v2300, %v2309
        %v2312 = vshrl.u32 %v2232, 16
        %v2314 = vrot.slane %v2312, 3
        %v2315 = vshll.u32 %v2232, 16
        %v2317 = vrot.slane %v2315, 4
        %v2318 = vor.u32 %v2314, %v2317
        %v2319 = vsel %vm1794, %v2309, %v2318
        %v2321 = vshrl.u32 %v2233, 16
        %v2323 = vrot.slane %v2321, 3
        %v2324 = vshll.u32 %v2233, 16
        %v2326 = vrot.slane %v2324, 4
        %v2327 = vor.u32 %v2323, %v2326
        %v2328 = vsel %vm1794, %v2318, %v2327
        %v2330 = vshrl.u32 %v2234, 16
        %v2332 = vrot.slane %v2330, 3
        %v2333 = vshll.u32 %v2234, 16
        %v2335 = vrot.slane %v2333, 4
        %v2336 = vor.u32 %v2332, %v2335
        %v2337 = vsel %vm1794, %v2327, %v2336
        %v2339 = vshrl.u32 %v2235, 16
        %v2341 = vrot.slane %v2339, 3
        %v2342 = vshll.u32 %v2235, 16
        %v2344 = vrot.slane %v2342, 4
        %v2345 = vor.u32 %v2341, %v2344
        %v2346 = vsel %vm1794, %v2336, %v2345
        %v2348 = vshrl.u32 %v2236, 16
        %v2350 = vrot.slane %v2348, 3
        %v2351 = vshll.u32 %v2236, 16
        %v2353 = vrot.slane %v2351, 4
        %v2354 = vor.u32 %v2350, %v2353
        %v2355 = vsel %vm1794, %v2345, %v2354
        %v2357 = vshrl.u32 %v2237, 16
        %v2359 = vrot.slane %v2357, 3
        %v2360 = vshll.u32 %v2237, 16
        %v2362 = vrot.slane %v2360, 4
        %v2363 = vor.u32 %v2359, %v2362
        %v2364 = vsel %vm1794, %v2354, %v2363
        %v2366 = vshrl.u32 %v2238, 16
        %v2368 = vrot.slane %v2366, 3
        %v2369 = vshll.u32 %v2238, 16
        %v2371 = vrot.slane %v2369, 4
        %v2372 = vor.u32 %v2368, %v2371
        %v2373 = vsel %vm1794, %v2363, %v2372
        %v2375 = vshrl.u32 %v2239, 16
        %v2377 = vrot.slane %v2375, 3
        %v2378 = vshll.u32 %v2239, 16
        %v2380 = vrot.slane %v2378, 4
        %v2381 = vor.u32 %v2377, %v2380
        %v2382 = vsel %vm1794, %v2372, %v2381
        %vm2383 = vcmp.ne.s16.totalorder %v2247, 0
        %vm2384 = vcmp.ne.s16.totalorder %v2256, 0
        %vm2385 = vcmp.ne.s16.totalorder %v2265, 0
        %vm2386 = vcmp.ne.s16.totalorder %v2274, 0
        %vm2387 = vcmp.ne.s16.totalorder %v2283, 0
        %vm2388 = vcmp.ne.s16.totalorder %v2292, 0
        %vm2389 = vcmp.ne.s16.totalorder %v2301, 0
        %vm2390 = vcmp.ne.s16.totalorder %v2310, 0
        %vm2391 = vcmp.ne.s16.totalorder %v2319, 0
        %vm2392 = vcmp.ne.s16.totalorder %v2328, 0
        %vm2393 = vcmp.ne.s16.totalorder %v2337, 0
        %vm2394 = vcmp.ne.s16.totalorder %v2346, 0
        %vm2395 = vcmp.ne.s16.totalorder %v2355, 0
        %vm2396 = vcmp.ne.s16.totalorder %v2364, 0
        %vm2397 = vcmp.ne.s16.totalorder %v2373, 0
        %vm2398 = vcmp.ne.s16.totalorder %v2382, 0
        %vm2399 = vcmp.ne.s16.totalorder %v2381, 0
        %v2400 = vsel %vm2383, %v2111, 0
        %v2401 = vsel %vm2384, %v2112, 0
        %v2402 = vsel %vm2385, %v2113, 0
        %v2403 = vsel %vm2386, %v2114, 0
        %v2404 = vsel %vm2387, %v2115, 0
        %v2405 = vsel %vm2388, %v2116, 0
        %v2406 = vsel %vm2389, %v2117, 0
        %v2407 = vsel %vm2390, %v2118, 0
        %v2408 = vsel %vm2391, %v2119, 0
        %v2409 = vsel %vm2392, %v2120, 0
        %v2410 = vsel %vm2393, %v2121, 0
        %v2411 = vsel %vm2394, %v2122, 0
        %v2412 = vsel %vm2395, %v2123, 0
        %v2413 = vsel %vm2396, %v2124, 0
        %v2414 = vsel %vm2397, %v2125, 0
        %v2415 = vsel %vm2398, %v2126, 0
        %v2416 = vsel %vm2399, %v2127, 0
        %v2418 = vshrl.u32 %v2400, 16
        %v2420 = vrot.slane %v2418, 4
        %v2421 = vshll.u32 %v2400, 16
        %v2423 = vrot.slane %v2421, 5
        %v2424 = vor.u32 %v2420, %v2423
        %v2426 = vshrl.u32 %v2401, 16
        %v2428 = vrot.slane %v2426, 4
        %v2429 = vshll.u32 %v2401, 16
        %v2431 = vrot.slane %v2429, 5
        %v2432 = vor.u32 %v2428, %v2431
        %v2433 = vsel %vm1616, %v2424, %v2432
        %v2435 = vshrl.u32 %v2402, 16
        %v2437 = vrot.slane %v2435, 4
        %v2438 = vshll.u32 %v2402, 16
        %v2440 = vrot.slane %v2438, 5
        %v2441 = vor.u32 %v2437, %v2440
        %v2442 = vsel %vm1616, %v2432, %v2441
        %v2444 = vshrl.u32 %v2403, 16
        %v2446 = vrot.slane %v2444, 4
        %v2447 = vshll.u32 %v2403, 16
        %v2449 = vrot.slane %v2447, 5
        %v2450 = vor.u32 %v2446, %v2449
        %v2451 = vsel %vm1616, %v2441, %v2450
        %v2453 = vshrl.u32 %v2404, 16
        %v2455 = vrot.slane %v2453, 4
        %v2456 = vshll.u32 %v2404, 16
        %v2458 = vrot.slane %v2456, 5
        %v2459 = vor.u32 %v2455, %v2458
        %v2460 = vsel %vm1616, %v2450, %v2459
        %v2462 = vshrl.u32 %v2405, 16
        %v2464 = vrot.slane %v2462, 4
        %v2465 = vshll.u32 %v2405, 16
        %v2467 = vrot.slane %v2465, 5
        %v2468 = vor.u32 %v2464, %v2467
        %v2469 = vsel %vm1616, %v2459, %v2468
        %v2471 = vshrl.u32 %v2406, 16
        %v2473 = vrot.slane %v2471, 4
        %v2474 = vshll.u32 %v2406, 16
        %v2476 = vrot.slane %v2474, 5
        %v2477 = vor.u32 %v2473, %v2476
        %v2478 = vsel %vm1616, %v2468, %v2477
        %v2480 = vshrl.u32 %v2407, 16
        %v2482 = vrot.slane %v2480, 4
        %v2483 = vshll.u32 %v2407, 16
        %v2485 = vrot.slane %v2483, 5
        %v2486 = vor.u32 %v2482, %v2485
        %v2487 = vsel %vm1616, %v2477, %v2486
        %v2489 = vshrl.u32 %v2408, 16
        %v2491 = vrot.slane %v2489, 4
        %v2492 = vshll.u32 %v2408, 16
        %v2494 = vrot.slane %v2492, 5
        %v2495 = vor.u32 %v2491, %v2494
        %v2496 = vsel %vm1616, %v2486, %v2495
        %v2498 = vshrl.u32 %v2409, 16
        %v2500 = vrot.slane %v2498, 4
        %v2501 = vshll.u32 %v2409, 16
        %v2503 = vrot.slane %v2501, 5
        %v2504 = vor.u32 %v2500, %v2503
        %v2505 = vsel %vm1616, %v2495, %v2504
        %v2507 = vshrl.u32 %v2410, 16
        %v2509 = vrot.slane %v2507, 4
        %v2510 = vshll.u32 %v2410, 16
        %v2512 = vrot.slane %v2510, 5
        %v2513 = vor.u32 %v2509, %v2512
        %v2514 = vsel %vm1616, %v2504, %v2513
        %v2516 = vshrl.u32 %v2411, 16
        %v2518 = vrot.slane %v2516, 4
        %v2519 = vshll.u32 %v2411, 16
        %v2521 = vrot.slane %v2519, 5
        %v2522 = vor.u32 %v2518, %v2521
        %v2523 = vsel %vm1616, %v2513, %v2522
        %v2525 = vshrl.u32 %v2412, 16
        %v2527 = vrot.slane %v2525, 4
        %v2528 = vshll.u32 %v2412, 16
        %v2530 = vrot.slane %v2528, 5
        %v2531 = vor.u32 %v2527, %v2530
        %v2532 = vsel %vm1616, %v2522, %v2531
        %v2534 = vshrl.u32 %v2413, 16
        %v2536 = vrot.slane %v2534, 4
        %v2537 = vshll.u32 %v2413, 16
        %v2539 = vrot.slane %v2537, 5
        %v2540 = vor.u32 %v2536, %v2539
        %v2541 = vsel %vm1616, %v2531, %v2540
        %v2543 = vshrl.u32 %v2414, 16
        %v2545 = vrot.slane %v2543, 4
        %v2546 = vshll.u32 %v2414, 16
        %v2548 = vrot.slane %v2546, 5
        %v2549 = vor.u32 %v2545, %v2548
        %v2550 = vsel %vm1616, %v2540, %v2549
        %v2552 = vshrl.u32 %v2415, 16
        %v2554 = vrot.slane %v2552, 4
        %v2555 = vshll.u32 %v2415, 16
        %v2557 = vrot.slane %v2555, 5
        %v2558 = vor.u32 %v2554, %v2557
        %v2559 = vsel %vm1616, %v2549, %v2558
        %v2561 = vshrl.u32 %v2416, 16
        %v2563 = vrot.slane %v2561, 4
        %v2564 = vshll.u32 %v2416, 16
        %v2566 = vrot.slane %v2564, 5
        %v2567 = vor.u32 %v2563, %v2566
        %v2568 = vsel %vm1616, %v2558, %v2567
        %2569 = vrot.lane.b32.xlu0 %v2433, 64
        %v2570 = vpop.permute.xlu0 %2569
        %2571 = vrot.lane.b32.xlu0 %v2442, 64
        %v2572 = vpop.permute.xlu0 %2571
        %2573 = vrot.lane.b32.xlu0 %v2451, 64
        %v2574 = vpop.permute.xlu0 %2573
        %2575 = vrot.lane.b32.xlu0 %v2460, 64
        %v2576 = vpop.permute.xlu0 %2575
        %2577 = vrot.lane.b32.xlu0 %v2469, 64
        %v2578 = vpop.permute.xlu0 %2577
        %2579 = vrot.lane.b32.xlu0 %v2478, 64
        %v2580 = vpop.permute.xlu0 %2579
        %2581 = vrot.lane.b32.xlu0 %v2487, 64
        %v2582 = vpop.permute.xlu0 %2581
        %2583 = vrot.lane.b32.xlu0 %v2496, 64
        %v2584 = vpop.permute.xlu0 %2583
        %2585 = vrot.lane.b32.xlu0 %v2505, 64
        %v2586 = vpop.permute.xlu0 %2585
        %2587 = vrot.lane.b32.xlu0 %v2514, 64
        %v2588 = vpop.permute.xlu0 %2587
        %2589 = vrot.lane.b32.xlu0 %v2523, 64
        %v2590 = vpop.permute.xlu0 %2589
        %2591 = vrot.lane.b32.xlu0 %v2532, 64
        %v2592 = vpop.permute.xlu0 %2591
        %2593 = vrot.lane.b32.xlu0 %v2541, 64
        %v2594 = vpop.permute.xlu0 %2593
        %2595 = vrot.lane.b32.xlu0 %v2550, 64
        %v2596 = vpop.permute.xlu0 %2595
        %2597 = vrot.lane.b32.xlu0 %v2559, 64
        %v2598 = vpop.permute.xlu0 %2597
        %2599 = vrot.lane.b32.xlu0 %v2568, 64
        %v2600 = vpop.permute.xlu0 %2599
        %vm2617 = vcmask 785920
        %2618 = vst.msk [vmem:[#allocation3] sm:$0xff] %vm2617, %v2570
        %2619 = vst.msk [vmem:[#allocation3 + $0x18] sm:$0xff] %vm2617, %v2572
        %2620 = vst.msk [vmem:[#allocation3 + $0x30] sm:$0xff] %vm2617, %v2574
        %2621 = vst.msk [vmem:[#allocation3 + $0x48] sm:$0xff] %vm2617, %v2576
        %2622 = vst.msk [vmem:[#allocation3 + $0x60] sm:$0xff] %vm2617, %v2578
        %2623 = vst.msk [vmem:[#allocation3 + $0x78] sm:$0xff] %vm2617, %v2580
        %2624 = vst.msk [vmem:[#allocation3 + $0x90] sm:$0xff] %vm2617, %v2582
        %2625 = vst.msk [vmem:[#allocation3 + $0xa8] sm:$0xff] %vm2617, %v2584
        %2626 = vst.msk [vmem:[#allocation3 + $0xc0] sm:$0xff] %vm2617, %v2586
        %2627 = vst.msk [vmem:[#allocation3 + $0xd8] sm:$0xff] %vm2617, %v2588
        %2628 = vst.msk [vmem:[#allocation3 + $0xf0] sm:$0xff] %vm2617, %v2590
        %2629 = vst.msk [vmem:[#allocation3 + $0x108] sm:$0xff] %vm2617, %v2592
        %2630 = vst.msk [vmem:[#allocation3 + $0x120] sm:$0xff] %vm2617, %v2594
        %2631 = vst.msk [vmem:[#allocation3 + $0x138] sm:$0xff] %vm2617, %v2596
        %2632 = vst.msk [vmem:[#allocation3 + $0x150] sm:$0xff] %vm2617, %v2598
        %2633 = vst.msk [vmem:[#allocation3 + $0x168] sm:$0xff] %vm2617, %v2600
        %v2634 = vld [vmem:[#allocation2 + $0x8] sm:$0xf8]
        %v2635 = vld [vmem:[#allocation2 + $0x10] sm:$0xff]
        %v2636 = vld [vmem:[#allocation2 + $0x18] sm:$0xff]
        %v2637 = vld [vmem:[#allocation2 + $0x20] sm:$0xff]
        %v2638 = vld [vmem:[#allocation2 + $0x28] sm:$0xff]
        %v2639 = vld [vmem:[#allocation2 + $0x30] sm:$0xff]
        %v2640 = vld [vmem:[#allocation2 + $0x38] sm:$0xff]
        %v2641 = vld [vmem:[#allocation2 + $0x40] sm:$0xff]
        %v2642 = vld [vmem:[#allocation2 + $0x48] sm:$0xff]
        %v2643 = vld [vmem:[#allocation2 + $0x50] sm:$0xff]
        %v2644 = vld [vmem:[#allocation2 + $0x58] sm:$0xff]
        %v2645 = vld [vmem:[#allocation2 + $0x60] sm:$0xff]
        %v2646 = vld [vmem:[#allocation2 + $0x68] sm:$0xff]
        %v2647 = vld [vmem:[#allocation2 + $0x70] sm:$0xff]
        %v2648 = vld [vmem:[#allocation2 + $0x78] sm:$0xff]
        %v2649 = vld [vmem:[#allocation2 + $0x80] sm:$0xff]
        %v2650 = vld [vmem:[#allocation2 + $0x88] sm:$0xf]
        %v2651 = vsel %vm1760, %v2634, 0
        %v2652 = vsel %vm1761, %v2635, 0
        %v2653 = vsel %vm1762, %v2636, 0
        %v2654 = vsel %vm1763, %v2637, 0
        %v2655 = vsel %vm1764, %v2638, 0
        %v2656 = vsel %vm1765, %v2639, 0
        %v2657 = vsel %vm1766, %v2640, 0
        %v2658 = vsel %vm1767, %v2641, 0
        %v2659 = vsel %vm1768, %v2642, 0
        %v2660 = vsel %vm1769, %v2643, 0
        %v2661 = vsel %vm1770, %v2644, 0
        %v2662 = vsel %vm1771, %v2645, 0
        %v2663 = vsel %vm1772, %v2646, 0
        %v2664 = vsel %vm1773, %v2647, 0
        %v2665 = vsel %vm1774, %v2648, 0
        %v2666 = vsel %vm1775, %v2649, 0
        %v2667 = vsel %vm1776, %v2650, 0
        %v2669 = vshrl.u32 %v2651, 16
        %v2671 = vrot.slane %v2669, 3
        %v2672 = vshll.u32 %v2651, 16
        %v2674 = vrot.slane %v2672, 4
        %v2675 = vor.u32 %v2671, %v2674
        %v2677 = vshrl.u32 %v2652, 16
        %v2679 = vrot.slane %v2677, 3
        %v2680 = vshll.u32 %v2652, 16
        %v2682 = vrot.slane %v2680, 4
        %v2683 = vor.u32 %v2679, %v2682
        %v2684 = vsel %vm1794, %v2675, %v2683
        %v2686 = vshrl.u32 %v2653, 16
        %v2688 = vrot.slane %v2686, 3
        %v2689 = vshll.u32 %v2653, 16
        %v2691 = vrot.slane %v2689, 4
        %v2692 = vor.u32 %v2688, %v2691
        %v2693 = vsel %vm1794, %v2683, %v2692
        %v2695 = vshrl.u32 %v2654, 16
        %v2697 = vrot.slane %v2695, 3
        %v2698 = vshll.u32 %v2654, 16
        %v2700 = vrot.slane %v2698, 4
        %v2701 = vor.u32 %v2697, %v2700
        %v2702 = vsel %vm1794, %v2692, %v2701
        %v2704 = vshrl.u32 %v2655, 16
        %v2706 = vrot.slane %v2704, 3
        %v2707 = vshll.u32 %v2655, 16
        %v2709 = vrot.slane %v2707, 4
        %v2710 = vor.u32 %v2706, %v2709
        %v2711 = vsel %vm1794, %v2701, %v2710
        %v2713 = vshrl.u32 %v2656, 16
        %v2715 = vrot.slane %v2713, 3
        %v2716 = vshll.u32 %v2656, 16
        %v2718 = vrot.slane %v2716, 4
        %v2719 = vor.u32 %v2715, %v2718
        %v2720 = vsel %vm1794, %v2710, %v2719
        %v2722 = vshrl.u32 %v2657, 16
        %v2724 = vrot.slane %v2722, 3
        %v2725 = vshll.u32 %v2657, 16
        %v2727 = vrot.slane %v2725, 4
        %v2728 = vor.u32 %v2724, %v2727
        %v2729 = vsel %vm1794, %v2719, %v2728
        %v2731 = vshrl.u32 %v2658, 16
        %v2733 = vrot.slane %v2731, 3
        %v2734 = vshll.u32 %v2658, 16
        %v2736 = vrot.slane %v2734, 4
        %v2737 = vor.u32 %v2733, %v2736
        %v2738 = vsel %vm1794, %v2728, %v2737
        %v2740 = vshrl.u32 %v2659, 16
        %v2742 = vrot.slane %v2740, 3
        %v2743 = vshll.u32 %v2659, 16
        %v2745 = vrot.slane %v2743, 4
        %v2746 = vor.u32 %v2742, %v2745
        %v2747 = vsel %vm1794, %v2737, %v2746
        %v2749 = vshrl.u32 %v2660, 16
        %v2751 = vrot.slane %v2749, 3
        %v2752 = vshll.u32 %v2660, 16
        %v2754 = vrot.slane %v2752, 4
        %v2755 = vor.u32 %v2751, %v2754
        %v2756 = vsel %vm1794, %v2746, %v2755
        %v2758 = vshrl.u32 %v2661, 16
        %v2760 = vrot.slane %v2758, 3
        %v2761 = vshll.u32 %v2661, 16
        %v2763 = vrot.slane %v2761, 4
        %v2764 = vor.u32 %v2760, %v2763
        %v2765 = vsel %vm1794, %v2755, %v2764
        %v2767 = vshrl.u32 %v2662, 16
        %v2769 = vrot.slane %v2767, 3
        %v2770 = vshll.u32 %v2662, 16
        %v2772 = vrot.slane %v2770, 4
        %v2773 = vor.u32 %v2769, %v2772
        %v2774 = vsel %vm1794, %v2764, %v2773
        %v2776 = vshrl.u32 %v2663, 16
        %v2778 = vrot.slane %v2776, 3
        %v2779 = vshll.u32 %v2663, 16
        %v2781 = vrot.slane %v2779, 4
        %v2782 = vor.u32 %v2778, %v2781
        %v2783 = vsel %vm1794, %v2773, %v2782
        %v2785 = vshrl.u32 %v2664, 16
        %v2787 = vrot.slane %v2785, 3
        %v2788 = vshll.u32 %v2664, 16
        %v2790 = vrot.slane %v2788, 4
        %v2791 = vor.u32 %v2787, %v2790
        %v2792 = vsel %vm1794, %v2782, %v2791
        %v2794 = vshrl.u32 %v2665, 16
        %v2796 = vrot.slane %v2794, 3
        %v2797 = vshll.u32 %v2665, 16
        %v2799 = vrot.slane %v2797, 4
        %v2800 = vor.u32 %v2796, %v2799
        %v2801 = vsel %vm1794, %v2791, %v2800
        %v2803 = vshrl.u32 %v2666, 16
        %v2805 = vrot.slane %v2803, 3
        %v2806 = vshll.u32 %v2666, 16
        %v2808 = vrot.slane %v2806, 4
        %v2809 = vor.u32 %v2805, %v2808
        %v2810 = vsel %vm1794, %v2800, %v2809
        %v2812 = vshrl.u32 %v2667, 16
        %v2814 = vrot.slane %v2812, 3
        %v2815 = vshll.u32 %v2667, 16
        %v2817 = vrot.slane %v2815, 4
        %v2818 = vor.u32 %v2814, %v2817
        %v2819 = vsel %vm1794, %v2809, %v2818
        %2820 = vrot.lane.b32.xlu0 %v2684, 96
        %v2821 = vpop.permute.xlu0 %2820
        %2822 = vrot.lane.b32.xlu0 %v2693, 96
        %v2823 = vpop.permute.xlu0 %2822
        %2824 = vrot.lane.b32.xlu0 %v2702, 96
        %v2825 = vpop.permute.xlu0 %2824
        %2826 = vrot.lane.b32.xlu0 %v2711, 96
        %v2827 = vpop.permute.xlu0 %2826
        %2828 = vrot.lane.b32.xlu0 %v2720, 96
        %v2829 = vpop.permute.xlu0 %2828
        %2830 = vrot.lane.b32.xlu0 %v2729, 96
        %v2831 = vpop.permute.xlu0 %2830
        %2832 = vrot.lane.b32.xlu0 %v2738, 96
        %v2833 = vpop.permute.xlu0 %2832
        %2834 = vrot.lane.b32.xlu0 %v2747, 96
        %v2835 = vpop.permute.xlu0 %2834
        %2836 = vrot.lane.b32.xlu0 %v2756, 96
        %v2837 = vpop.permute.xlu0 %2836
        %2838 = vrot.lane.b32.xlu0 %v2765, 96
        %v2839 = vpop.permute.xlu0 %2838
        %2840 = vrot.lane.b32.xlu0 %v2774, 96
        %v2841 = vpop.permute.xlu0 %2840
        %2842 = vrot.lane.b32.xlu0 %v2783, 96
        %v2843 = vpop.permute.xlu0 %2842
        %2844 = vrot.lane.b32.xlu0 %v2792, 96
        %v2845 = vpop.permute.xlu0 %2844
        %2846 = vrot.lane.b32.xlu0 %v2801, 96
        %v2847 = vpop.permute.xlu0 %2846
        %2848 = vrot.lane.b32.xlu0 %v2810, 96
        %v2849 = vpop.permute.xlu0 %2848
        %2850 = vrot.lane.b32.xlu0 %v2819, 96
        %v2851 = vpop.permute.xlu0 %2850
        %vm2868 = vcmask 1048320
        %2869 = vst.msk [vmem:[#allocation3] sm:$0xff] %vm2868, %v2821
        %2870 = vst.msk [vmem:[#allocation3 + $0x18] sm:$0xff] %vm2868, %v2823
        %2871 = vst.msk [vmem:[#allocation3 + $0x30] sm:$0xff] %vm2868, %v2825
        %2872 = vst.msk [vmem:[#allocation3 + $0x48] sm:$0xff] %vm2868, %v2827
        %2873 = vst.msk [vmem:[#allocation3 + $0x60] sm:$0xff] %vm2868, %v2829
        %2874 = vst.msk [vmem:[#allocation3 + $0x78] sm:$0xff] %vm2868, %v2831
        %2875 = vst.msk [vmem:[#allocation3 + $0x90] sm:$0xff] %vm2868, %v2833
        %2876 = vst.msk [vmem:[#allocation3 + $0xa8] sm:$0xff] %vm2868, %v2835
        %2877 = vst.msk [vmem:[#allocation3 + $0xc0] sm:$0xff] %vm2868, %v2837
        %2878 = vst.msk [vmem:[#allocation3 + $0xd8] sm:$0xff] %vm2868, %v2839
        %2879 = vst.msk [vmem:[#allocation3 + $0xf0] sm:$0xff] %vm2868, %v2841
        %2880 = vst.msk [vmem:[#allocation3 + $0x108] sm:$0xff] %vm2868, %v2843
        %2881 = vst.msk [vmem:[#allocation3 + $0x120] sm:$0xff] %vm2868, %v2845
        %2882 = vst.msk [vmem:[#allocation3 + $0x138] sm:$0xff] %vm2868, %v2847
        %2883 = vst.msk [vmem:[#allocation3 + $0x150] sm:$0xff] %vm2868, %v2849
        %2884 = vst.msk [vmem:[#allocation3 + $0x168] sm:$0xff] %vm2868, %v2851
        %v2885 = vld [vmem:[#allocation2 + $0x8] sm:$0xf0]
        %v2886 = vld [vmem:[#allocation2 + $0x10] sm:$0xff]
        %v2887 = vld [vmem:[#allocation2 + $0x18] sm:$0xff]
        %v2888 = vld [vmem:[#allocation2 + $0x20] sm:$0xff]
        %v2889 = vld [vmem:[#allocation2 + $0x28] sm:$0xff]
        %v2890 = vld [vmem:[#allocation2 + $0x30] sm:$0xff]
        %v2891 = vld [vmem:[#allocation2 + $0x38] sm:$0xff]
        %v2892 = vld [vmem:[#allocation2 + $0x40] sm:$0xff]
        %v2893 = vld [vmem:[#allocation2 + $0x48] sm:$0xff]
        %v2894 = vld [vmem:[#allocation2 + $0x50] sm:$0xff]
        %v2895 = vld [vmem:[#allocation2 + $0x58] sm:$0xff]
        %v2896 = vld [vmem:[#allocation2 + $0x60] sm:$0xff]
        %v2897 = vld [vmem:[#allocation2 + $0x68] sm:$0xff]
        %v2898 = vld [vmem:[#allocation2 + $0x70] sm:$0xff]
        %v2899 = vld [vmem:[#allocation2 + $0x78] sm:$0xff]
        %v2900 = vld [vmem:[#allocation2 + $0x80] sm:$0xff]
        %v2901 = vld [vmem:[#allocation2 + $0x88] sm:$0xf]
        %v2919 = vrot.slane %v2885, 4
        %v2920 = vrot.slane %v2886, 4
        %v2921 = vsel %vm812, %v2919, %v2920
        %v2922 = vrot.slane %v2887, 4
        %v2923 = vsel %vm812, %v2920, %v2922
        %v2924 = vrot.slane %v2888, 4
        %v2925 = vsel %vm812, %v2922, %v2924
        %v2926 = vrot.slane %v2889, 4
        %v2927 = vsel %vm812, %v2924, %v2926
        %v2928 = vrot.slane %v2890, 4
        %v2929 = vsel %vm812, %v2926, %v2928
        %v2930 = vrot.slane %v2891, 4
        %v2931 = vsel %vm812, %v2928, %v2930
        %v2932 = vrot.slane %v2892, 4
        %v2933 = vsel %vm812, %v2930, %v2932
        %v2934 = vrot.slane %v2893, 4
        %v2935 = vsel %vm812, %v2932, %v2934
        %v2936 = vrot.slane %v2894, 4
        %v2937 = vsel %vm812, %v2934, %v2936
        %v2938 = vrot.slane %v2895, 4
        %v2939 = vsel %vm812, %v2936, %v2938
        %v2940 = vrot.slane %v2896, 4
        %v2941 = vsel %vm812, %v2938, %v2940
        %v2942 = vrot.slane %v2897, 4
        %v2943 = vsel %vm812, %v2940, %v2942
        %v2944 = vrot.slane %v2898, 4
        %v2945 = vsel %vm812, %v2942, %v2944
        %v2946 = vrot.slane %v2899, 4
        %v2947 = vsel %vm812, %v2944, %v2946
        %v2948 = vrot.slane %v2900, 4
        %v2949 = vsel %vm812, %v2946, %v2948
        %v2950 = vrot.slane %v2901, 4
        %v2951 = vsel %vm812, %v2948, %v2950
        %2968 = vst.msk [vmem:[#allocation3 + $0x8] sm:$0xff] %vm773, %v2921
        %2969 = vst.msk [vmem:[#allocation3 + $0x20] sm:$0xff] %vm773, %v2923
        %2970 = vst.msk [vmem:[#allocation3 + $0x38] sm:$0xff] %vm773, %v2925
        %2971 = vst.msk [vmem:[#allocation3 + $0x50] sm:$0xff] %vm773, %v2927
        %2972 = vst.msk [vmem:[#allocation3 + $0x68] sm:$0xff] %vm773, %v2929
        %2973 = vst.msk [vmem:[#allocation3 + $0x80] sm:$0xff] %vm773, %v2931
        %2974 = vst.msk [vmem:[#allocation3 + $0x98] sm:$0xff] %vm773, %v2933
        %2975 = vst.msk [vmem:[#allocation3 + $0xb0] sm:$0xff] %vm773, %v2935
        %2976 = vst.msk [vmem:[#allocation3 + $0xc8] sm:$0xff] %vm773, %v2937
        %2977 = vst.msk [vmem:[#allocation3 + $0xe0] sm:$0xff] %vm773, %v2939
        %2978 = vst.msk [vmem:[#allocation3 + $0xf8] sm:$0xff] %vm773, %v2941
        %2979 = vst.msk [vmem:[#allocation3 + $0x110] sm:$0xff] %vm773, %v2943
        %2980 = vst.msk [vmem:[#allocation3 + $0x128] sm:$0xff] %vm773, %v2945
        %2981 = vst.msk [vmem:[#allocation3 + $0x140] sm:$0xff] %vm773, %v2947
        %2982 = vst.msk [vmem:[#allocation3 + $0x158] sm:$0xff] %vm773, %v2949
        %2983 = vst.msk [vmem:[#allocation3 + $0x170] sm:$0xff] %vm773, %v2951
        %v2984 = vld [vmem:[#allocation2 + $0x8] sm:$0xf0]
        %v2985 = vld [vmem:[#allocation2 + $0x10] sm:$0xff]
        %v2986 = vld [vmem:[#allocation2 + $0x18] sm:$0xff]
        %v2987 = vld [vmem:[#allocation2 + $0x20] sm:$0xff]
        %v2988 = vld [vmem:[#allocation2 + $0x28] sm:$0xff]
        %v2989 = vld [vmem:[#allocation2 + $0x30] sm:$0xff]
        %v2990 = vld [vmem:[#allocation2 + $0x38] sm:$0xff]
        %v2991 = vld [vmem:[#allocation2 + $0x40] sm:$0xff]
        %v2992 = vld [vmem:[#allocation2 + $0x48] sm:$0xff]
        %v2993 = vld [vmem:[#allocation2 + $0x50] sm:$0xff]
        %v2994 = vld [vmem:[#allocation2 + $0x58] sm:$0xff]
        %v2995 = vld [vmem:[#allocation2 + $0x60] sm:$0xff]
        %v2996 = vld [vmem:[#allocation2 + $0x68] sm:$0xff]
        %v2997 = vld [vmem:[#allocation2 + $0x70] sm:$0xff]
        %v2998 = vld [vmem:[#allocation2 + $0x78] sm:$0xff]
        %v2999 = vld [vmem:[#allocation2 + $0x80] sm:$0xff]
        %v3000 = vld [vmem:[#allocation2 + $0x88] sm:$0x1f]
        %v3001 = vsel %vm2383, %v2984, 0
        %v3002 = vsel %vm2384, %v2985, 0
        %v3003 = vsel %vm2385, %v2986, 0
        %v3004 = vsel %vm2386, %v2987, 0
        %v3005 = vsel %vm2387, %v2988, 0
        %v3006 = vsel %vm2388, %v2989, 0
        %v3007 = vsel %vm2389, %v2990, 0
        %v3008 = vsel %vm2390, %v2991, 0
        %v3009 = vsel %vm2391, %v2992, 0
        %v3010 = vsel %vm2392, %v2993, 0
        %v3011 = vsel %vm2393, %v2994, 0
        %v3012 = vsel %vm2394, %v2995, 0
        %v3013 = vsel %vm2395, %v2996, 0
        %v3014 = vsel %vm2396, %v2997, 0
        %v3015 = vsel %vm2397, %v2998, 0
        %v3016 = vsel %vm2398, %v2999, 0
        %v3017 = vsel %vm2399, %v3000, 0
        %v3019 = vshrl.u32 %v3001, 16
        %v3021 = vrot.slane %v3019, 4
        %v3022 = vshll.u32 %v3001, 16
        %v3024 = vrot.slane %v3022, 5
        %v3025 = vor.u32 %v3021, %v3024
        %v3027 = vshrl.u32 %v3002, 16
        %v3029 = vrot.slane %v3027, 4
        %v3030 = vshll.u32 %v3002, 16
        %v3032 = vrot.slane %v3030, 5
        %v3033 = vor.u32 %v3029, %v3032
        %v3034 = vsel %vm1616, %v3025, %v3033
        %v3036 = vshrl.u32 %v3003, 16
        %v3038 = vrot.slane %v3036, 4
        %v3039 = vshll.u32 %v3003, 16
        %v3041 = vrot.slane %v3039, 5
        %v3042 = vor.u32 %v3038, %v3041
        %v3043 = vsel %vm1616, %v3033, %v3042
        %v3045 = vshrl.u32 %v3004, 16
        %v3047 = vrot.slane %v3045, 4
        %v3048 = vshll.u32 %v3004, 16
        %v3050 = vrot.slane %v3048, 5
        %v3051 = vor.u32 %v3047, %v3050
        %v3052 = vsel %vm1616, %v3042, %v3051
        %v3054 = vshrl.u32 %v3005, 16
        %v3056 = vrot.slane %v3054, 4
        %v3057 = vshll.u32 %v3005, 16
        %v3059 = vrot.slane %v3057, 5
        %v3060 = vor.u32 %v3056, %v3059
        %v3061 = vsel %vm1616, %v3051, %v3060
        %v3063 = vshrl.u32 %v3006, 16
        %v3065 = vrot.slane %v3063, 4
        %v3066 = vshll.u32 %v3006, 16
        %v3068 = vrot.slane %v3066, 5
        %v3069 = vor.u32 %v3065, %v3068
        %v3070 = vsel %vm1616, %v3060, %v3069
        %v3072 = vshrl.u32 %v3007, 16
        %v3074 = vrot.slane %v3072, 4
        %v3075 = vshll.u32 %v3007, 16
        %v3077 = vrot.slane %v3075, 5
        %v3078 = vor.u32 %v3074, %v3077
        %v3079 = vsel %vm1616, %v3069, %v3078
        %v3081 = vshrl.u32 %v3008, 16
        %v3083 = vrot.slane %v3081, 4
        %v3084 = vshll.u32 %v3008, 16
        %v3086 = vrot.slane %v3084, 5
        %v3087 = vor.u32 %v3083, %v3086
        %v3088 = vsel %vm1616, %v3078, %v3087
        %v3090 = vshrl.u32 %v3009, 16
        %v3092 = vrot.slane %v3090, 4
        %v3093 = vshll.u32 %v3009, 16
        %v3095 = vrot.slane %v3093, 5
        %v3096 = vor.u32 %v3092, %v3095
        %v3097 = vsel %vm1616, %v3087, %v3096
        %v3099 = vshrl.u32 %v3010, 16
        %v3101 = vrot.slane %v3099, 4
        %v3102 = vshll.u32 %v3010, 16
        %v3104 = vrot.slane %v3102, 5
        %v3105 = vor.u32 %v3101, %v3104
        %v3106 = vsel %vm1616, %v3096, %v3105
        %v3108 = vshrl.u32 %v3011, 16
        %v3110 = vrot.slane %v3108, 4
        %v3111 = vshll.u32 %v3011, 16
        %v3113 = vrot.slane %v3111, 5
        %v3114 = vor.u32 %v3110, %v3113
        %v3115 = vsel %vm1616, %v3105, %v3114
        %v3117 = vshrl.u32 %v3012, 16
        %v3119 = vrot.slane %v3117, 4
        %v3120 = vshll.u32 %v3012, 16
        %v3122 = vrot.slane %v3120, 5
        %v3123 = vor.u32 %v3119, %v3122
        %v3124 = vsel %vm1616, %v3114, %v3123
        %v3126 = vshrl.u32 %v3013, 16
        %v3128 = vrot.slane %v3126, 4
        %v3129 = vshll.u32 %v3013, 16
        %v3131 = vrot.slane %v3129, 5
        %v3132 = vor.u32 %v3128, %v3131
        %v3133 = vsel %vm1616, %v3123, %v3132
        %v3135 = vshrl.u32 %v3014, 16
        %v3137 = vrot.slane %v3135, 4
        %v3138 = vshll.u32 %v3014, 16
        %v3140 = vrot.slane %v3138, 5
        %v3141 = vor.u32 %v3137, %v3140
        %v3142 = vsel %vm1616, %v3132, %v3141
        %v3144 = vshrl.u32 %v3015, 16
        %v3146 = vrot.slane %v3144, 4
        %v3147 = vshll.u32 %v3015, 16
        %v3149 = vrot.slane %v3147, 5
        %v3150 = vor.u32 %v3146, %v3149
        %v3151 = vsel %vm1616, %v3141, %v3150
        %v3153 = vshrl.u32 %v3016, 16
        %v3155 = vrot.slane %v3153, 4
        %v3156 = vshll.u32 %v3016, 16
        %v3158 = vrot.slane %v3156, 5
        %v3159 = vor.u32 %v3155, %v3158
        %v3160 = vsel %vm1616, %v3150, %v3159
        %v3162 = vshrl.u32 %v3017, 16
        %v3164 = vrot.slane %v3162, 4
        %v3165 = vshll.u32 %v3017, 16
        %v3167 = vrot.slane %v3165, 5
        %v3168 = vor.u32 %v3164, %v3167
        %v3169 = vsel %vm1616, %v3159, %v3168
        %3170 = vrot.lane.b32.xlu0 %v3034, 32
        %v3171 = vpop.permute.xlu0 %3170
        %3172 = vrot.lane.b32.xlu0 %v3043, 32
        %v3173 = vpop.permute.xlu0 %3172
        %3174 = vrot.lane.b32.xlu0 %v3052, 32
        %v3175 = vpop.permute.xlu0 %3174
        %3176 = vrot.lane.b32.xlu0 %v3061, 32
        %v3177 = vpop.permute.xlu0 %3176
        %3178 = vrot.lane.b32.xlu0 %v3070, 32
        %v3179 = vpop.permute.xlu0 %3178
        %3180 = vrot.lane.b32.xlu0 %v3079, 32
        %v3181 = vpop.permute.xlu0 %3180
        %3182 = vrot.lane.b32.xlu0 %v3088, 32
        %v3183 = vpop.permute.xlu0 %3182
        %3184 = vrot.lane.b32.xlu0 %v3097, 32
        %v3185 = vpop.permute.xlu0 %3184
        %3186 = vrot.lane.b32.xlu0 %v3106, 32
        %v3187 = vpop.permute.xlu0 %3186
        %3188 = vrot.lane.b32.xlu0 %v3115, 32
        %v3189 = vpop.permute.xlu0 %3188
        %3190 = vrot.lane.b32.xlu0 %v3124, 32
        %v3191 = vpop.permute.xlu0 %3190
        %3192 = vrot.lane.b32.xlu0 %v3133, 32
        %v3193 = vpop.permute.xlu0 %3192
        %3194 = vrot.lane.b32.xlu0 %v3142, 32
        %v3195 = vpop.permute.xlu0 %3194
        %3196 = vrot.lane.b32.xlu0 %v3151, 32
        %v3197 = vpop.permute.xlu0 %3196
        %3198 = vrot.lane.b32.xlu0 %v3160, 32
        %v3199 = vpop.permute.xlu0 %3198
        %3200 = vrot.lane.b32.xlu0 %v3169, 32
        %v3201 = vpop.permute.xlu0 %3200
        %3218 = vst.msk [vmem:[#allocation3 + $0x8] sm:$0xff] %vm2094, %v3171
        %3219 = vst.msk [vmem:[#allocation3 + $0x20] sm:$0xff] %vm2094, %v3173
        %3220 = vst.msk [vmem:[#allocation3 + $0x38] sm:$0xff] %vm2094, %v3175
        %3221 = vst.msk [vmem:[#allocation3 + $0x50] sm:$0xff] %vm2094, %v3177
        %3222 = vst.msk [vmem:[#allocation3 + $0x68] sm:$0xff] %vm2094, %v3179
        %3223 = vst.msk [vmem:[#allocation3 + $0x80] sm:$0xff] %vm2094, %v3181
        %3224 = vst.msk [vmem:[#allocation3 + $0x98] sm:$0xff] %vm2094, %v3183
        %3225 = vst.msk [vmem:[#allocation3 + $0xb0] sm:$0xff] %vm2094, %v3185
        %3226 = vst.msk [vmem:[#allocation3 + $0xc8] sm:$0xff] %vm2094, %v3187
        %3227 = vst.msk [vmem:[#allocation3 + $0xe0] sm:$0xff] %vm2094, %v3189
        %3228 = vst.msk [vmem:[#allocation3 + $0xf8] sm:$0xff] %vm2094, %v3191
        %3229 = vst.msk [vmem:[#allocation3 + $0x110] sm:$0xff] %vm2094, %v3193
        %3230 = vst.msk [vmem:[#allocation3 + $0x128] sm:$0xff] %vm2094, %v3195
        %3231 = vst.msk [vmem:[#allocation3 + $0x140] sm:$0xff] %vm2094, %v3197
        %3232 = vst.msk [vmem:[#allocation3 + $0x158] sm:$0xff] %vm2094, %v3199
        %3233 = vst.msk [vmem:[#allocation3 + $0x170] sm:$0xff] %vm2094, %v3201
        %v3234 = vld [vmem:[#allocation2 + $0x10] sm:$0xf8]
        %v3235 = vld [vmem:[#allocation2 + $0x18] sm:$0xff]
        %v3236 = vld [vmem:[#allocation2 + $0x20] sm:$0xff]
        %v3237 = vld [vmem:[#allocation2 + $0x28] sm:$0xff]
        %v3238 = vld [vmem:[#allocation2 + $0x30] sm:$0xff]
        %v3239 = vld [vmem:[#allocation2 + $0x38] sm:$0xff]
        %v3240 = vld [vmem:[#allocation2 + $0x40] sm:$0xff]
        %v3241 = vld [vmem:[#allocation2 + $0x48] sm:$0xff]
        %v3242 = vld [vmem:[#allocation2 + $0x50] sm:$0xff]
        %v3243 = vld [vmem:[#allocation2 + $0x58] sm:$0xff]
        %v3244 = vld [vmem:[#allocation2 + $0x60] sm:$0xff]
        %v3245 = vld [vmem:[#allocation2 + $0x68] sm:$0xff]
        %v3246 = vld [vmem:[#allocation2 + $0x70] sm:$0xff]
        %v3247 = vld [vmem:[#allocation2 + $0x78] sm:$0xff]
        %v3248 = vld [vmem:[#allocation2 + $0x80] sm:$0xff]
        %v3249 = vld [vmem:[#allocation2 + $0x88] sm:$0xff]
        %v3250 = vld [vmem:[#allocation2 + $0x90] sm:$0xf]
        %v3251 = vsel %vm1760, %v3234, 0
        %v3252 = vsel %vm1761, %v3235, 0
        %v3253 = vsel %vm1762, %v3236, 0
        %v3254 = vsel %vm1763, %v3237, 0
        %v3255 = vsel %vm1764, %v3238, 0
        %v3256 = vsel %vm1765, %v3239, 0
        %v3257 = vsel %vm1766, %v3240, 0
        %v3258 = vsel %vm1767, %v3241, 0
        %v3259 = vsel %vm1768, %v3242, 0
        %v3260 = vsel %vm1769, %v3243, 0
        %v3261 = vsel %vm1770, %v3244, 0
        %v3262 = vsel %vm1771, %v3245, 0
        %v3263 = vsel %vm1772, %v3246, 0
        %v3264 = vsel %vm1773, %v3247, 0
        %v3265 = vsel %vm1774, %v3248, 0
        %v3266 = vsel %vm1775, %v3249, 0
        %v3267 = vsel %vm1776, %v3250, 0
        %v3269 = vshrl.u32 %v3251, 16
        %v3271 = vrot.slane %v3269, 3
        %v3272 = vshll.u32 %v3251, 16
        %v3274 = vrot.slane %v3272, 4
        %v3275 = vor.u32 %v3271, %v3274
        %v3277 = vshrl.u32 %v3252, 16
        %v3279 = vrot.slane %v3277, 3
        %v3280 = vshll.u32 %v3252, 16
        %v3282 = vrot.slane %v3280, 4
        %v3283 = vor.u32 %v3279, %v3282
        %v3284 = vsel %vm1794, %v3275, %v3283
        %v3286 = vshrl.u32 %v3253, 16
        %v3288 = vrot.slane %v3286, 3
        %v3289 = vshll.u32 %v3253, 16
        %v3291 = vrot.slane %v3289, 4
        %v3292 = vor.u32 %v3288, %v3291
        %v3293 = vsel %vm1794, %v3283, %v3292
        %v3295 = vshrl.u32 %v3254, 16
        %v3297 = vrot.slane %v3295, 3
        %v3298 = vshll.u32 %v3254, 16
        %v3300 = vrot.slane %v3298, 4
        %v3301 = vor.u32 %v3297, %v3300
        %v3302 = vsel %vm1794, %v3292, %v3301
        %v3304 = vshrl.u32 %v3255, 16
        %v3306 = vrot.slane %v3304, 3
        %v3307 = vshll.u32 %v3255, 16
        %v3309 = vrot.slane %v3307, 4
        %v3310 = vor.u32 %v3306, %v3309
        %v3311 = vsel %vm1794, %v3301, %v3310
        %v3313 = vshrl.u32 %v3256, 16
        %v3315 = vrot.slane %v3313, 3
        %v3316 = vshll.u32 %v3256, 16
        %v3318 = vrot.slane %v3316, 4
        %v3319 = vor.u32 %v3315, %v3318
        %v3320 = vsel %vm1794, %v3310, %v3319
        %v3322 = vshrl.u32 %v3257, 16
        %v3324 = vrot.slane %v3322, 3
        %v3325 = vshll.u32 %v3257, 16
        %v3327 = vrot.slane %v3325, 4
        %v3328 = vor.u32 %v3324, %v3327
        %v3329 = vsel %vm1794, %v3319, %v3328
        %v3331 = vshrl.u32 %v3258, 16
        %v3333 = vrot.slane %v3331, 3
        %v3334 = vshll.u32 %v3258, 16
        %v3336 = vrot.slane %v3334, 4
        %v3337 = vor.u32 %v3333, %v3336
        %v3338 = vsel %vm1794, %v3328, %v3337
        %v3340 = vshrl.u32 %v3259, 16
        %v3342 = vrot.slane %v3340, 3
        %v3343 = vshll.u32 %v3259, 16
        %v3345 = vrot.slane %v3343, 4
        %v3346 = vor.u32 %v3342, %v3345
        %v3347 = vsel %vm1794, %v3337, %v3346
        %v3349 = vshrl.u32 %v3260, 16
        %v3351 = vrot.slane %v3349, 3
        %v3352 = vshll.u32 %v3260, 16
        %v3354 = vrot.slane %v3352, 4
        %v3355 = vor.u32 %v3351, %v3354
        %v3356 = vsel %vm1794, %v3346, %v3355
        %v3358 = vshrl.u32 %v3261, 16
        %v3360 = vrot.slane %v3358, 3
        %v3361 = vshll.u32 %v3261, 16
        %v3363 = vrot.slane %v3361, 4
        %v3364 = vor.u32 %v3360, %v3363
        %v3365 = vsel %vm1794, %v3355, %v3364
        %v3367 = vshrl.u32 %v3262, 16
        %v3369 = vrot.slane %v3367, 3
        %v3370 = vshll.u32 %v3262, 16
        %v3372 = vrot.slane %v3370, 4
        %v3373 = vor.u32 %v3369, %v3372
        %v3374 = vsel %vm1794, %v3364, %v3373
        %v3376 = vshrl.u32 %v3263, 16
        %v3378 = vrot.slane %v3376, 3
        %v3379 = vshll.u32 %v3263, 16
        %v3381 = vrot.slane %v3379, 4
        %v3382 = vor.u32 %v3378, %v3381
        %v3383 = vsel %vm1794, %v3373, %v3382
        %v3385 = vshrl.u32 %v3264, 16
        %v3387 = vrot.slane %v3385, 3
        %v3388 = vshll.u32 %v3264, 16
        %v3390 = vrot.slane %v3388, 4
        %v3391 = vor.u32 %v3387, %v3390
        %v3392 = vsel %vm1794, %v3382, %v3391
        %v3394 = vshrl.u32 %v3265, 16
        %v3396 = vrot.slane %v3394, 3
        %v3397 = vshll.u32 %v3265, 16
        %v3399 = vrot.slane %v3397, 4
        %v3400 = vor.u32 %v3396, %v3399
        %v3401 = vsel %vm1794, %v3391, %v3400
        %v3403 = vshrl.u32 %v3266, 16
        %v3405 = vrot.slane %v3403, 3
        %v3406 = vshll.u32 %v3266, 16
        %v3408 = vrot.slane %v3406, 4
        %v3409 = vor.u32 %v3405, %v3408
        %v3410 = vsel %vm1794, %v3400, %v3409
        %v3412 = vshrl.u32 %v3267, 16
        %v3414 = vrot.slane %v3412, 3
        %v3415 = vshll.u32 %v3267, 16
        %v3417 = vrot.slane %v3415, 4
        %v3418 = vor.u32 %v3414, %v3417
        %v3419 = vsel %vm1794, %v3409, %v3418
        %3420 = vrot.lane.b32.xlu0 %v3284, 64
        %v3421 = vpop.permute.xlu0 %3420
        %3422 = vrot.lane.b32.xlu0 %v3293, 64
        %v3423 = vpop.permute.xlu0 %3422
        %3424 = vrot.lane.b32.xlu0 %v3302, 64
        %v3425 = vpop.permute.xlu0 %3424
        %3426 = vrot.lane.b32.xlu0 %v3311, 64
        %v3427 = vpop.permute.xlu0 %3426
        %3428 = vrot.lane.b32.xlu0 %v3320, 64
        %v3429 = vpop.permute.xlu0 %3428
        %3430 = vrot.lane.b32.xlu0 %v3329, 64
        %v3431 = vpop.permute.xlu0 %3430
        %3432 = vrot.lane.b32.xlu0 %v3338, 64
        %v3433 = vpop.permute.xlu0 %3432
        %3434 = vrot.lane.b32.xlu0 %v3347, 64
        %v3435 = vpop.permute.xlu0 %3434
        %3436 = vrot.lane.b32.xlu0 %v3356, 64
        %v3437 = vpop.permute.xlu0 %3436
        %3438 = vrot.lane.b32.xlu0 %v3365, 64
        %v3439 = vpop.permute.xlu0 %3438
        %3440 = vrot.lane.b32.xlu0 %v3374, 64
        %v3441 = vpop.permute.xlu0 %3440
        %3442 = vrot.lane.b32.xlu0 %v3383, 64
        %v3443 = vpop.permute.xlu0 %3442
        %3444 = vrot.lane.b32.xlu0 %v3392, 64
        %v3445 = vpop.permute.xlu0 %3444
        %3446 = vrot.lane.b32.xlu0 %v3401, 64
        %v3447 = vpop.permute.xlu0 %3446
        %3448 = vrot.lane.b32.xlu0 %v3410, 64
        %v3449 = vpop.permute.xlu0 %3448
        %3450 = vrot.lane.b32.xlu0 %v3419, 64
        %v3451 = vpop.permute.xlu0 %3450
        %3468 = vst.msk [vmem:[#allocation3 + $0x8] sm:$0xff] %vm2617, %v3421
        %3469 = vst.msk [vmem:[#allocation3 + $0x20] sm:$0xff] %vm2617, %v3423
        %3470 = vst.msk [vmem:[#allocation3 + $0x38] sm:$0xff] %vm2617, %v3425
        %3471 = vst.msk [vmem:[#allocation3 + $0x50] sm:$0xff] %vm2617, %v3427
        %3472 = vst.msk [vmem:[#allocation3 + $0x68] sm:$0xff] %vm2617, %v3429
        %3473 = vst.msk [vmem:[#allocation3 + $0x80] sm:$0xff] %vm2617, %v3431
        %3474 = vst.msk [vmem:[#allocation3 + $0x98] sm:$0xff] %vm2617, %v3433
        %3475 = vst.msk [vmem:[#allocation3 + $0xb0] sm:$0xff] %vm2617, %v3435
        %3476 = vst.msk [vmem:[#allocation3 + $0xc8] sm:$0xff] %vm2617, %v3437
        %3477 = vst.msk [vmem:[#allocation3 + $0xe0] sm:$0xff] %vm2617, %v3439
        %3478 = vst.msk [vmem:[#allocation3 + $0xf8] sm:$0xff] %vm2617, %v3441
        %3479 = vst.msk [vmem:[#allocation3 + $0x110] sm:$0xff] %vm2617, %v3443
        %3480 = vst.msk [vmem:[#allocation3 + $0x128] sm:$0xff] %vm2617, %v3445
        %3481 = vst.msk [vmem:[#allocation3 + $0x140] sm:$0xff] %vm2617, %v3447
        %3482 = vst.msk [vmem:[#allocation3 + $0x158] sm:$0xff] %vm2617, %v3449
        %3483 = vst.msk [vmem:[#allocation3 + $0x170] sm:$0xff] %vm2617, %v3451
        %v3484 = vld [vmem:[#allocation2 + $0x10] sm:$0xf0]
        %v3485 = vld [vmem:[#allocation2 + $0x18] sm:$0xff]
        %v3486 = vld [vmem:[#allocation2 + $0x20] sm:$0xff]
        %v3487 = vld [vmem:[#allocation2 + $0x28] sm:$0xff]
        %v3488 = vld [vmem:[#allocation2 + $0x30] sm:$0xff]
        %v3489 = vld [vmem:[#allocation2 + $0x38] sm:$0xff]
        %v3490 = vld [vmem:[#allocation2 + $0x40] sm:$0xff]
        %v3491 = vld [vmem:[#allocation2 + $0x48] sm:$0xff]
        %v3492 = vld [vmem:[#allocation2 + $0x50] sm:$0xff]
        %v3493 = vld [vmem:[#allocation2 + $0x58] sm:$0xff]
        %v3494 = vld [vmem:[#allocation2 + $0x60] sm:$0xff]
        %v3495 = vld [vmem:[#allocation2 + $0x68] sm:$0xff]
        %v3496 = vld [vmem:[#allocation2 + $0x70] sm:$0xff]
        %v3497 = vld [vmem:[#allocation2 + $0x78] sm:$0xff]
        %v3498 = vld [vmem:[#allocation2 + $0x80] sm:$0xff]
        %v3499 = vld [vmem:[#allocation2 + $0x88] sm:$0xff]
        %v3500 = vld [vmem:[#allocation2 + $0x90] sm:$0xf]
        %v3518 = vrot.slane %v3484, 4
        %v3519 = vrot.slane %v3485, 4
        %v3520 = vsel %vm812, %v3518, %v3519
        %v3521 = vrot.slane %v3486, 4
        %v3522 = vsel %vm812, %v3519, %v3521
        %v3523 = vrot.slane %v3487, 4
        %v3524 = vsel %vm812, %v3521, %v3523
        %v3525 = vrot.slane %v3488, 4
        %v3526 = vsel %vm812, %v3523, %v3525
        %v3527 = vrot.slane %v3489, 4
        %v3528 = vsel %vm812, %v3525, %v3527
        %v3529 = vrot.slane %v3490, 4
        %v3530 = vsel %vm812, %v3527, %v3529
        %v3531 = vrot.slane %v3491, 4
        %v3532 = vsel %vm812, %v3529, %v3531
        %v3533 = vrot.slane %v3492, 4
        %v3534 = vsel %vm812, %v3531, %v3533
        %v3535 = vrot.slane %v3493, 4
        %v3536 = vsel %vm812, %v3533, %v3535
        %v3537 = vrot.slane %v3494, 4
        %v3538 = vsel %vm812, %v3535, %v3537
        %v3539 = vrot.slane %v3495, 4
        %v3540 = vsel %vm812, %v3537, %v3539
        %v3541 = vrot.slane %v3496, 4
        %v3542 = vsel %vm812, %v3539, %v3541
        %v3543 = vrot.slane %v3497, 4
        %v3544 = vsel %vm812, %v3541, %v3543
        %v3545 = vrot.slane %v3498, 4
        %v3546 = vsel %vm812, %v3543, %v3545
        %v3547 = vrot.slane %v3499, 4
        %v3548 = vsel %vm812, %v3545, %v3547
        %v3549 = vrot.slane %v3500, 4
        %v3550 = vsel %vm812, %v3547, %v3549
        %3551 = vrot.lane.b32.xlu0 %v3520, 96
        %v3552 = vpop.permute.xlu0 %3551
        %3553 = vrot.lane.b32.xlu0 %v3522, 96
        %v3554 = vpop.permute.xlu0 %3553
        %3555 = vrot.lane.b32.xlu0 %v3524, 96
        %v3556 = vpop.permute.xlu0 %3555
        %3557 = vrot.lane.b32.xlu0 %v3526, 96
        %v3558 = vpop.permute.xlu0 %3557
        %3559 = vrot.lane.b32.xlu0 %v3528, 96
        %v3560 = vpop.permute.xlu0 %3559
        %3561 = vrot.lane.b32.xlu0 %v3530, 96
        %v3562 = vpop.permute.xlu0 %3561
        %3563 = vrot.lane.b32.xlu0 %v3532, 96
        %v3564 = vpop.permute.xlu0 %3563
        %3565 = vrot.lane.b32.xlu0 %v3534, 96
        %v3566 = vpop.permute.xlu0 %3565
        %3567 = vrot.lane.b32.xlu0 %v3536, 96
        %v3568 = vpop.permute.xlu0 %3567
        %3569 = vrot.lane.b32.xlu0 %v3538, 96
        %v3570 = vpop.permute.xlu0 %3569
        %3571 = vrot.lane.b32.xlu0 %v3540, 96
        %v3572 = vpop.permute.xlu0 %3571
        %3573 = vrot.lane.b32.xlu0 %v3542, 96
        %v3574 = vpop.permute.xlu0 %3573
        %3575 = vrot.lane.b32.xlu0 %v3544, 96
        %v3576 = vpop.permute.xlu0 %3575
        %3577 = vrot.lane.b32.xlu0 %v3546, 96
        %v3578 = vpop.permute.xlu0 %3577
        %3579 = vrot.lane.b32.xlu0 %v3548, 96
        %v3580 = vpop.permute.xlu0 %3579
        %3581 = vrot.lane.b32.xlu0 %v3550, 96
        %v3582 = vpop.permute.xlu0 %3581
        %3599 = vst.msk [vmem:[#allocation3 + $0x8] sm:$0xff] %vm2868, %v3552
        %3600 = vst.msk [vmem:[#allocation3 + $0x20] sm:$0xff] %vm2868, %v3554
        %3601 = vst.msk [vmem:[#allocation3 + $0x38] sm:$0xff] %vm2868, %v3556
        %3602 = vst.msk [vmem:[#allocation3 + $0x50] sm:$0xff] %vm2868, %v3558
        %3603 = vst.msk [vmem:[#allocation3 + $0x68] sm:$0xff] %vm2868, %v3560
        %3604 = vst.msk [vmem:[#allocation3 + $0x80] sm:$0xff] %vm2868, %v3562
        %3605 = vst.msk [vmem:[#allocation3 + $0x98] sm:$0xff] %vm2868, %v3564
        %3606 = vst.msk [vmem:[#allocation3 + $0xb0] sm:$0xff] %vm2868, %v3566
        %3607 = vst.msk [vmem:[#allocation3 + $0xc8] sm:$0xff] %vm2868, %v3568
        %3608 = vst.msk [vmem:[#allocation3 + $0xe0] sm:$0xff] %vm2868, %v3570
        %3609 = vst.msk [vmem:[#allocation3 + $0xf8] sm:$0xff] %vm2868, %v3572
        %3610 = vst.msk [vmem:[#allocation3 + $0x110] sm:$0xff] %vm2868, %v3574
        %3611 = vst.msk [vmem:[#allocation3 + $0x128] sm:$0xff] %vm2868, %v3576
        %3612 = vst.msk [vmem:[#allocation3 + $0x140] sm:$0xff] %vm2868, %v3578
        %3613 = vst.msk [vmem:[#allocation3 + $0x158] sm:$0xff] %vm2868, %v3580
        %3614 = vst.msk [vmem:[#allocation3 + $0x170] sm:$0xff] %vm2868, %v3582
        %v3615 = vld [vmem:[#allocation2 + $0x10] sm:$0xf0]
        %v3616 = vld [vmem:[#allocation2 + $0x18] sm:$0xff]
        %v3617 = vld [vmem:[#allocation2 + $0x20] sm:$0xff]
        %v3618 = vld [vmem:[#allocation2 + $0x28] sm:$0xff]
        %v3619 = vld [vmem:[#allocation2 + $0x30] sm:$0xff]
        %v3620 = vld [vmem:[#allocation2 + $0x38] sm:$0xff]
        %v3621 = vld [vmem:[#allocation2 + $0x40] sm:$0xff]
        %v3622 = vld [vmem:[#allocation2 + $0x48] sm:$0xff]
        %v3623 = vld [vmem:[#allocation2 + $0x50] sm:$0xff]
        %v3624 = vld [vmem:[#allocation2 + $0x58] sm:$0xff]
        %v3625 = vld [vmem:[#allocation2 + $0x60] sm:$0xff]
        %v3626 = vld [vmem:[#allocation2 + $0x68] sm:$0xff]
        %v3627 = vld [vmem:[#allocation2 + $0x70] sm:$0xff]
        %v3628 = vld [vmem:[#allocation2 + $0x78] sm:$0xff]
        %v3629 = vld [vmem:[#allocation2 + $0x80] sm:$0xff]
        %v3630 = vld [vmem:[#allocation2 + $0x88] sm:$0xff]
        %v3631 = vld [vmem:[#allocation2 + $0x90] sm:$0x1f]
        %v3632 = vsel %vm2383, %v3615, 0
        %v3633 = vsel %vm2384, %v3616, 0
        %v3634 = vsel %vm2385, %v3617, 0
        %v3635 = vsel %vm2386, %v3618, 0
        %v3636 = vsel %vm2387, %v3619, 0
        %v3637 = vsel %vm2388, %v3620, 0
        %v3638 = vsel %vm2389, %v3621, 0
        %v3639 = vsel %vm2390, %v3622, 0
        %v3640 = vsel %vm2391, %v3623, 0
        %v3641 = vsel %vm2392, %v3624, 0
        %v3642 = vsel %vm2393, %v3625, 0
        %v3643 = vsel %vm2394, %v3626, 0
        %v3644 = vsel %vm2395, %v3627, 0
        %v3645 = vsel %vm2396, %v3628, 0
        %v3646 = vsel %vm2397, %v3629, 0
        %v3647 = vsel %vm2398, %v3630, 0
        %v3648 = vsel %vm2399, %v3631, 0
        %v3650 = vshrl.u32 %v3632, 16
        %v3652 = vrot.slane %v3650, 4
        %v3653 = vshll.u32 %v3632, 16
        %v3655 = vrot.slane %v3653, 5
        %v3656 = vor.u32 %v3652, %v3655
        %v3658 = vshrl.u32 %v3633, 16
        %v3660 = vrot.slane %v3658, 4
        %v3661 = vshll.u32 %v3633, 16
        %v3663 = vrot.slane %v3661, 5
        %v3664 = vor.u32 %v3660, %v3663
        %v3665 = vsel %vm1616, %v3656, %v3664
        %v3667 = vshrl.u32 %v3634, 16
        %v3669 = vrot.slane %v3667, 4
        %v3670 = vshll.u32 %v3634, 16
        %v3672 = vrot.slane %v3670, 5
        %v3673 = vor.u32 %v3669, %v3672
        %v3674 = vsel %vm1616, %v3664, %v3673
        %v3676 = vshrl.u32 %v3635, 16
        %v3678 = vrot.slane %v3676, 4
        %v3679 = vshll.u32 %v3635, 16
        %v3681 = vrot.slane %v3679, 5
        %v3682 = vor.u32 %v3678, %v3681
        %v3683 = vsel %vm1616, %v3673, %v3682
        %v3685 = vshrl.u32 %v3636, 16
        %v3687 = vrot.slane %v3685, 4
        %v3688 = vshll.u32 %v3636, 16
        %v3690 = vrot.slane %v3688, 5
        %v3691 = vor.u32 %v3687, %v3690
        %v3692 = vsel %vm1616, %v3682, %v3691
        %v3694 = vshrl.u32 %v3637, 16
        %v3696 = vrot.slane %v3694, 4
        %v3697 = vshll.u32 %v3637, 16
        %v3699 = vrot.slane %v3697, 5
        %v3700 = vor.u32 %v3696, %v3699
        %v3701 = vsel %vm1616, %v3691, %v3700
        %v3703 = vshrl.u32 %v3638, 16
        %v3705 = vrot.slane %v3703, 4
        %v3706 = vshll.u32 %v3638, 16
        %v3708 = vrot.slane %v3706, 5
        %v3709 = vor.u32 %v3705, %v3708
        %v3710 = vsel %vm1616, %v3700, %v3709
        %v3712 = vshrl.u32 %v3639, 16
        %v3714 = vrot.slane %v3712, 4
        %v3715 = vshll.u32 %v3639, 16
        %v3717 = vrot.slane %v3715, 5
        %v3718 = vor.u32 %v3714, %v3717
        %v3719 = vsel %vm1616, %v3709, %v3718
        %v3721 = vshrl.u32 %v3640, 16
        %v3723 = vrot.slane %v3721, 4
        %v3724 = vshll.u32 %v3640, 16
        %v3726 = vrot.slane %v3724, 5
        %v3727 = vor.u32 %v3723, %v3726
        %v3728 = vsel %vm1616, %v3718, %v3727
        %v3730 = vshrl.u32 %v3641, 16
        %v3732 = vrot.slane %v3730, 4
        %v3733 = vshll.u32 %v3641, 16
        %v3735 = vrot.slane %v3733, 5
        %v3736 = vor.u32 %v3732, %v3735
        %v3737 = vsel %vm1616, %v3727, %v3736
        %v3739 = vshrl.u32 %v3642, 16
        %v3741 = vrot.slane %v3739, 4
        %v3742 = vshll.u32 %v3642, 16
        %v3744 = vrot.slane %v3742, 5
        %v3745 = vor.u32 %v3741, %v3744
        %v3746 = vsel %vm1616, %v3736, %v3745
        %v3748 = vshrl.u32 %v3643, 16
        %v3750 = vrot.slane %v3748, 4
        %v3751 = vshll.u32 %v3643, 16
        %v3753 = vrot.slane %v3751, 5
        %v3754 = vor.u32 %v3750, %v3753
        %v3755 = vsel %vm1616, %v3745, %v3754
        %v3757 = vshrl.u32 %v3644, 16
        %v3759 = vrot.slane %v3757, 4
        %v3760 = vshll.u32 %v3644, 16
        %v3762 = vrot.slane %v3760, 5
        %v3763 = vor.u32 %v3759, %v3762
        %v3764 = vsel %vm1616, %v3754, %v3763
        %v3766 = vshrl.u32 %v3645, 16
        %v3768 = vrot.slane %v3766, 4
        %v3769 = vshll.u32 %v3645, 16
        %v3771 = vrot.slane %v3769, 5
        %v3772 = vor.u32 %v3768, %v3771
        %v3773 = vsel %vm1616, %v3763, %v3772
        %v3775 = vshrl.u32 %v3646, 16
        %v3777 = vrot.slane %v3775, 4
        %v3778 = vshll.u32 %v3646, 16
        %v3780 = vrot.slane %v3778, 5
        %v3781 = vor.u32 %v3777, %v3780
        %v3782 = vsel %vm1616, %v3772, %v3781
        %v3784 = vshrl.u32 %v3647, 16
        %v3786 = vrot.slane %v3784, 4
        %v3787 = vshll.u32 %v3647, 16
        %v3789 = vrot.slane %v3787, 5
        %v3790 = vor.u32 %v3786, %v3789
        %v3791 = vsel %vm1616, %v3781, %v3790
        %v3793 = vshrl.u32 %v3648, 16
        %v3795 = vrot.slane %v3793, 4
        %v3796 = vshll.u32 %v3648, 16
        %v3798 = vrot.slane %v3796, 5
        %v3799 = vor.u32 %v3795, %v3798
        %v3800 = vsel %vm1616, %v3790, %v3799
        %3817 = vst.msk [vmem:[#allocation3 + $0x10] sm:$0xff] %vm773, %v3665
        %3818 = vst.msk [vmem:[#allocation3 + $0x28] sm:$0xff] %vm773, %v3674
        %3819 = vst.msk [vmem:[#allocation3 + $0x40] sm:$0xff] %vm773, %v3683
        %3820 = vst.msk [vmem:[#allocation3 + $0x58] sm:$0xff] %vm773, %v3692
        %3821 = vst.msk [vmem:[#allocation3 + $0x70] sm:$0xff] %vm773, %v3701
        %3822 = vst.msk [vmem:[#allocation3 + $0x88] sm:$0xff] %vm773, %v3710
        %3823 = vst.msk [vmem:[#allocation3 + $0xa0] sm:$0xff] %vm773, %v3719
        %3824 = vst.msk [vmem:[#allocation3 + $0xb8] sm:$0xff] %vm773, %v3728
        %3825 = vst.msk [vmem:[#allocation3 + $0xd0] sm:$0xff] %vm773, %v3737
        %3826 = vst.msk [vmem:[#allocation3 + $0xe8] sm:$0xff] %vm773, %v3746
        %3827 = vst.msk [vmem:[#allocation3 + $0x100] sm:$0xff] %vm773, %v3755
        %3828 = vst.msk [vmem:[#allocation3 + $0x118] sm:$0xff] %vm773, %v3764
        %3829 = vst.msk [vmem:[#allocation3 + $0x130] sm:$0xff] %vm773, %v3773
        %3830 = vst.msk [vmem:[#allocation3 + $0x148] sm:$0xff] %vm773, %v3782
        %3831 = vst.msk [vmem:[#allocation3 + $0x160] sm:$0xff] %vm773, %v3791
        %3832 = vst.msk [vmem:[#allocation3 + $0x178] sm:$0xff] %vm773, %v3800
        %v3833 = vld [vmem:[#allocation3] sm:$0xff]
        %v3834 = vld [vmem:[#allocation3 + $0x8] sm:$0xff]
        %v3835 = vld [vmem:[#allocation3 + $0x10] sm:$0xff]
        %v3836 = vld [vmem:[#allocation3 + $0x18] sm:$0xff]
        %v3837 = vld [vmem:[#allocation3 + $0x20] sm:$0xff]
        %v3838 = vld [vmem:[#allocation3 + $0x28] sm:$0xff]
        %v3839 = vld [vmem:[#allocation3 + $0x30] sm:$0xff]
        %v3840 = vld [vmem:[#allocation3 + $0x38] sm:$0xff]
        %v3841 = vld [vmem:[#allocation3 + $0x40] sm:$0xff]
        %v3842 = vld [vmem:[#allocation3 + $0x48] sm:$0xff]
        %v3843 = vld [vmem:[#allocation3 + $0x50] sm:$0xff]
        %v3844 = vld [vmem:[#allocation3 + $0x58] sm:$0xff]
        %v3845 = vld [vmem:[#allocation3 + $0x60] sm:$0xff]
        %v3846 = vld [vmem:[#allocation3 + $0x68] sm:$0xff]
        %v3847 = vld [vmem:[#allocation3 + $0x70] sm:$0xff]
        %v3848 = vld [vmem:[#allocation3 + $0x78] sm:$0xff]
        %v3849 = vld [vmem:[#allocation3 + $0x80] sm:$0xff]
        %v3850 = vld [vmem:[#allocation3 + $0x88] sm:$0xff]
        %v3851 = vld [vmem:[#allocation3 + $0x90] sm:$0xff]
        %v3852 = vld [vmem:[#allocation3 + $0x98] sm:$0xff]
        %v3853 = vld [vmem:[#allocation3 + $0xa0] sm:$0xff]
        %v3854 = vld [vmem:[#allocation3 + $0xa8] sm:$0xff]
        %v3855 = vld [vmem:[#allocation3 + $0xb0] sm:$0xff]
        %v3856 = vld [vmem:[#allocation3 + $0xb8] sm:$0xff]
        %v3857 = vld [vmem:[#allocation3 + $0xc0] sm:$0xff]
        %v3858 = vld [vmem:[#allocation3 + $0xc8] sm:$0xff]
        %v3859 = vld [vmem:[#allocation3 + $0xd0] sm:$0xff]
        %v3860 = vld [vmem:[#allocation3 + $0xd8] sm:$0xff]
        %v3861 = vld [vmem:[#allocation3 + $0xe0] sm:$0xff]
        %v3862 = vld [vmem:[#allocation3 + $0xe8] sm:$0xff]
        %v3863 = vld [vmem:[#allocation3 + $0xf0] sm:$0xff]
        %v3864 = vld [vmem:[#allocation3 + $0xf8] sm:$0xff]
        %v3865 = vld [vmem:[#allocation3 + $0x100] sm:$0xff]
        %v3866 = vld [vmem:[#allocation3 + $0x108] sm:$0xff]
        %v3867 = vld [vmem:[#allocation3 + $0x110] sm:$0xff]
        %v3868 = vld [vmem:[#allocation3 + $0x118] sm:$0xff]
        %v3869 = vld [vmem:[#allocation3 + $0x120] sm:$0xff]
        %v3870 = vld [vmem:[#allocation3 + $0x128] sm:$0xff]
        %v3871 = vld [vmem:[#allocation3 + $0x130] sm:$0xff]
        %v3872 = vld [vmem:[#allocation3 + $0x138] sm:$0xff]
        %v3873 = vld [vmem:[#allocation3 + $0x140] sm:$0xff]
        %v3874 = vld [vmem:[#allocation3 + $0x148] sm:$0xff]
        %v3875 = vld [vmem:[#allocation3 + $0x150] sm:$0xff]
        %v3876 = vld [vmem:[#allocation3 + $0x158] sm:$0xff]
        %v3877 = vld [vmem:[#allocation3 + $0x160] sm:$0xff]
        %v3878 = vld [vmem:[#allocation3 + $0x168] sm:$0xff]
        %v3879 = vld [vmem:[#allocation3 + $0x170] sm:$0xff]
        %v3880 = vld [vmem:[#allocation3 + $0x178] sm:$0xff]
        %v3881 = vld [vmem:[#allocation10] sm:$0xf]
        %v3882 = vld [vmem:[#allocation10 + $0x4] sm:$0xf]
        %v3883 = vld [vmem:[#allocation10 + $0x8] sm:$0xf]
        %v3884 = vld [vmem:[#allocation10 + $0xc] sm:$0xf]
        %v3885 = vld [vmem:[#allocation10 + $0x10] sm:$0xf]
        %v3886 = vld [vmem:[#allocation10 + $0x14] sm:$0xf]
        %v3887 = vld [vmem:[#allocation10 + $0x18] sm:$0xf]
        %v3888 = vld [vmem:[#allocation10 + $0x1c] sm:$0xf]
        %v3889 = vld [vmem:[#allocation10 + $0x20] sm:$0xf]
        %v3890 = vld [vmem:[#allocation10 + $0x24] sm:$0xf]
        %v3891 = vld [vmem:[#allocation10 + $0x28] sm:$0xf]
        %v3892 = vld [vmem:[#allocation10 + $0x2c] sm:$0xf]
        %v3893 = vld [vmem:[#allocation10 + $0x30] sm:$0xf]
        %v3894 = vld [vmem:[#allocation10 + $0x34] sm:$0xf]
        %v3895 = vld [vmem:[#allocation10 + $0x38] sm:$0xf]
        %v3896 = vld [vmem:[#allocation10 + $0x3c] sm:$0xf]
        %v3897 = vld [vmem:[#allocation10 + $0x40] sm:$0xf]
        %v3898 = vld [vmem:[#allocation10 + $0x44] sm:$0xf]
        %v3899 = vld [vmem:[#allocation10 + $0x48] sm:$0xf]
        %v3900 = vld [vmem:[#allocation10 + $0x4c] sm:$0xf]
        %v3901 = vld [vmem:[#allocation10 + $0x50] sm:$0xf]
        %v3902 = vld [vmem:[#allocation10 + $0x54] sm:$0xf]
        %v3903 = vld [vmem:[#allocation10 + $0x58] sm:$0xf]
        %v3904 = vld [vmem:[#allocation10 + $0x5c] sm:$0xf]
        %v3905 = vld [vmem:[#allocation10 + $0x60] sm:$0xf]
        %v3906 = vld [vmem:[#allocation10 + $0x64] sm:$0xf]
        %v3907 = vld [vmem:[#allocation10 + $0x68] sm:$0xf]
        %v3908 = vld [vmem:[#allocation10 + $0x6c] sm:$0xf]
        %v3909 = vld [vmem:[#allocation10 + $0x70] sm:$0xf]
        %v3910 = vld [vmem:[#allocation10 + $0x74] sm:$0xf]
        %v3911 = vld [vmem:[#allocation10 + $0x78] sm:$0xf]
        %v3912 = vld [vmem:[#allocation10 + $0x7c] sm:$0xf]
        %v3913 = vld [vmem:[#allocation10 + $0x80] sm:$0xf]
        %v3914 = vld [vmem:[#allocation10 + $0x84] sm:$0xf]
        %v3915 = vld [vmem:[#allocation10 + $0x88] sm:$0xf]
        %v3916 = vld [vmem:[#allocation10 + $0x8c] sm:$0xf]
        %v3917 = vld [vmem:[#allocation12] sm:$0x1]
        %v3919 = vlaneseq
        %v3920 = vshrl.u32 %v3919, 7
        %v3921 = vsub.s32 0, %v3920
        %v3922 = vrot.slane %v3917, %v3921
        %v3960 = vunpack.c.l.b16 %v3881
        %v3961 = vunpack.c.l.b16 %v3882
        %v3962 = vunpack.c.l.b16 %v3883
        %v3963 = vunpack.c.l.b16 %v3884
        %v3964 = vunpack.c.l.b16 %v3885
        %v3965 = vunpack.c.l.b16 %v3886
        %v3966 = vunpack.c.l.b16 %v3887
        %v3967 = vunpack.c.l.b16 %v3888
        %v3968 = vunpack.c.l.b16 %v3889
        %v3969 = vunpack.c.l.b16 %v3890
        %v3970 = vunpack.c.l.b16 %v3891
        %v3971 = vunpack.c.l.b16 %v3892
        %v3972 = vunpack.c.l.b16 %v3893
        %v3973 = vunpack.c.l.b16 %v3894
        %v3974 = vunpack.c.l.b16 %v3895
        %v3975 = vunpack.c.l.b16 %v3896
        %v3976 = vunpack.c.l.b16 %v3897
        %v3977 = vunpack.c.l.b16 %v3898
        %v3978 = vunpack.c.l.b16 %v3899
        %v3979 = vunpack.c.l.b16 %v3900
        %v3980 = vunpack.c.l.b16 %v3901
        %v3981 = vunpack.c.l.b16 %v3902
        %v3982 = vunpack.c.l.b16 %v3903
        %v3983 = vunpack.c.l.b16 %v3904
        %v3984 = vunpack.c.l.b16 %v3905
        %v3985 = vunpack.c.l.b16 %v3906
        %v3986 = vunpack.c.l.b16 %v3907
        %v3987 = vunpack.c.l.b16 %v3908
        %v3988 = vunpack.c.l.b16 %v3909
        %v3989 = vunpack.c.l.b16 %v3910
        %v3990 = vunpack.c.l.b16 %v3911
        %v3991 = vunpack.c.l.b16 %v3912
        %v3992 = vunpack.c.l.b16 %v3913
        %v3993 = vunpack.c.l.b16 %v3914
        %v3994 = vunpack.c.l.b16 %v3915
        %v3995 = vunpack.c.l.b16 %v3916
        %v3996 = vpack.c.b16 %v3961, %v3960
        %v3997 = vpack.c.b16 %v3963, %v3962
        %v3998 = vpack.c.b16 %v3965, %v3964
        %v3999 = vpack.c.b16 %v3967, %v3966
        %v4000 = vpack.c.b16 %v3969, %v3968
        %v4001 = vpack.c.b16 %v3971, %v3970
        %v4002 = vpack.c.b16 %v3973, %v3972
        %v4003 = vpack.c.b16 %v3975, %v3974
        %v4004 = vpack.c.b16 %v3977, %v3976
        %v4005 = vpack.c.b16 %v3979, %v3978
        %v4006 = vpack.c.b16 %v3981, %v3980
        %v4007 = vpack.c.b16 %v3983, %v3982
        %v4008 = vpack.c.b16 %v3985, %v3984
        %v4009 = vpack.c.b16 %v3987, %v3986
        %v4010 = vpack.c.b16 %v3989, %v3988
        %v4011 = vpack.c.b16 %v3991, %v3990
        %v4012 = vpack.c.b16 %v3993, %v3992
        %v4013 = vpack.c.b16 %v3995, %v3994
        %v4033 = vsel %vm773, %v3835, 0
        %v4036 = vsel %vm773, %v3838, 0
        %v4039 = vsel %vm773, %v3841, 0
        %v4042 = vsel %vm773, %v3844, 0
        %v4045 = vsel %vm773, %v3847, 0
        %v4048 = vsel %vm773, %v3850, 0
        %v4051 = vsel %vm773, %v3853, 0
        %v4054 = vsel %vm773, %v3856, 0
        %v4057 = vsel %vm773, %v3859, 0
        %v4060 = vsel %vm773, %v3862, 0
        %v4063 = vsel %vm773, %v3865, 0
        %v4066 = vsel %vm773, %v3868, 0
        %v4069 = vsel %vm773, %v3871, 0
        %v4072 = vsel %vm773, %v3874, 0
        %v4075 = vsel %vm773, %v3877, 0
        %v4078 = vsel %vm773, %v3880, 0
        %4080 = vmatprep.subr.bf16.mxu0 0
        %4081 = vmatpush1.bf16.msra.mxu0 %v3996
        %4082 = vmatprep.subr.bf16.mxu0 0
        %4083 = vmatpush1.bf16.msra.mxu0 %v3997
        %4084 = vmatprep.subr.bf16.mxu0 0
        %4085 = vmatpush1.bf16.msra.mxu0 %v3998
        %4086 = vmatprep.subr.bf16.mxu0 0
        %4087 = vmatpush1.bf16.msra.mxu0 %v3999
        %4088 = vmatprep.subr.bf16.mxu0 0
        %4089 = vmatpush1.bf16.msra.mxu0 %v4000
        %4090 = vmatprep.subr.bf16.mxu0 0
        %4091 = vmatpush1.bf16.msra.mxu0 %v4001
        %4092 = vmatprep.subr.bf16.mxu0 0
        %4093 = vmatpush1.bf16.msra.mxu0 %v4002
        %4094 = vmatprep.subr.bf16.mxu0 0
        %4095 = vmatpush1.bf16.msra.mxu0 %v4003
        %4096 = vmatprep.subr.bf16.mxu0 0
        %4097 = vmatpush1.bf16.msra.mxu0 %v4004
        %4098 = vmatprep.subr.bf16.mxu0 0
        %4099 = vmatpush1.bf16.msra.mxu0 %v4005
        %4100 = vmatprep.subr.bf16.mxu0 0
        %4101 = vmatpush1.bf16.msra.mxu0 %v4006
        %4102 = vmatprep.subr.bf16.mxu0 0
        %4103 = vmatpush1.bf16.msra.mxu0 %v4007
        %4104 = vmatprep.subr.bf16.mxu0 0
        %4105 = vmatpush1.bf16.msra.mxu0 %v4008
        %4106 = vmatprep.subr.bf16.mxu0 0
        %4107 = vmatpush1.bf16.msra.mxu0 %v4009
        %4108 = vmatprep.subr.bf16.mxu0 0
        %4109 = vmatpush1.bf16.msra.mxu0 %v4010
        %4110 = vmatprep.subr.bf16.mxu0 0
        %4111 = vmatpush1.bf16.msra.mxu0 %v4011
        %4112 = vmatprep.mubr.bf16.mxu0 %v3834
        %4113 = vmatmul.mubr.bf16.gmra.mrb[0].mxu0 %v3833
        %v4114 = vpop.f32.mrb[0].mxu0
        %v4115 = vadd.f32 %v3922, %v4114
        %v4116 = vpop.f32.mrb[0].mxu0
        %v4117 = vpop.f32.mrb[0].mxu0
        %v4118 = vadd.f32 %v3922, %v4117
        %v4119 = vpop.f32.mrb[0].mxu0
        %4120 = vmatprep.mubr.bf16.mxu0 %v3837
        %4121 = vmatmul.mubr.bf16.gmra.mrb[0].mxu0 %v3836
        %v4122 = vpop.f32.mrb[0].mxu0
        %v4123 = vadd.f32 %v3922, %v4122
        %v4124 = vpop.f32.mrb[0].mxu0
        %v4125 = vpop.f32.mrb[0].mxu0
        %v4126 = vadd.f32 %v3922, %v4125
        %v4127 = vpop.f32.mrb[0].mxu0
        %4128 = vmatprep.mubr.bf16.mxu0 %v3840
        %4129 = vmatmul.mubr.bf16.gmra.mrb[0].mxu0 %v3839
        %v4130 = vpop.f32.mrb[0].mxu0
        %v4131 = vadd.f32 %v3922, %v4130
        %v4132 = vpop.f32.mrb[0].mxu0
        %v4133 = vpop.f32.mrb[0].mxu0
        %v4134 = vadd.f32 %v3922, %v4133
        %v4135 = vpop.f32.mrb[0].mxu0
        %4136 = vmatprep.mubr.bf16.mxu0 %v3843
        %4137 = vmatmul.mubr.bf16.gmra.mrb[0].mxu0 %v3842
        %v4138 = vpop.f32.mrb[0].mxu0
        %v4139 = vadd.f32 %v3922, %v4138
        %v4140 = vpop.f32.mrb[0].mxu0
        %v4141 = vpop.f32.mrb[0].mxu0
        %v4142 = vadd.f32 %v3922, %v4141
        %v4143 = vpop.f32.mrb[0].mxu0
        %4144 = vmatprep.mubr.bf16.mxu0 %v3846
        %4145 = vmatmul.mubr.bf16.gmra.mrb[0].mxu0 %v3845
        %v4146 = vpop.f32.mrb[0].mxu0
        %v4147 = vadd.f32 %v3922, %v4146
        %v4148 = vpop.f32.mrb[0].mxu0
        %v4149 = vpop.f32.mrb[0].mxu0
        %v4150 = vadd.f32 %v3922, %v4149
        %v4151 = vpop.f32.mrb[0].mxu0
        %4152 = vmatprep.mubr.bf16.mxu0 %v3849
        %4153 = vmatmul.mubr.bf16.gmra.mrb[0].mxu0 %v3848
        %v4154 = vpop.f32.mrb[0].mxu0
        %v4155 = vadd.f32 %v3922, %v4154
        %v4156 = vpop.f32.mrb[0].mxu0
        %v4157 = vpop.f32.mrb[0].mxu0
        %v4158 = vadd.f32 %v3922, %v4157
        %v4159 = vpop.f32.mrb[0].mxu0
        %4160 = vmatprep.mubr.bf16.mxu0 %v3852
        %4161 = vmatmul.mubr.bf16.gmra.mrb[0].mxu0 %v3851
        %v4162 = vpop.f32.mrb[0].mxu0
        %v4163 = vadd.f32 %v3922, %v4162
        %v4164 = vpop.f32.mrb[0].mxu0
        %v4165 = vpop.f32.mrb[0].mxu0
        %v4166 = vadd.f32 %v3922, %v4165
        %v4167 = vpop.f32.mrb[0].mxu0
        %4168 = vmatprep.mubr.bf16.mxu0 %v3855
        %4169 = vmatmul.mubr.bf16.gmra.mrb[0].mxu0 %v3854
        %v4170 = vpop.f32.mrb[0].mxu0
        %v4171 = vadd.f32 %v3922, %v4170
        %v4172 = vpop.f32.mrb[0].mxu0
        %v4173 = vpop.f32.mrb[0].mxu0
        %v4174 = vadd.f32 %v3922, %v4173
        %v4175 = vpop.f32.mrb[0].mxu0
        %4176 = vmatprep.mubr.bf16.mxu0 %v3858
        %4177 = vmatmul.mubr.bf16.gmra.mrb[0].mxu0 %v3857
        %v4178 = vpop.f32.mrb[0].mxu0
        %v4179 = vadd.f32 %v3922, %v4178
        %v4180 = vpop.f32.mrb[0].mxu0
        %v4181 = vpop.f32.mrb[0].mxu0
        %v4182 = vadd.f32 %v3922, %v4181
        %v4183 = vpop.f32.mrb[0].mxu0
        %4184 = vmatprep.mubr.bf16.mxu0 %v3861
        %4185 = vmatmul.mubr.bf16.gmra.mrb[0].mxu0 %v3860
        %v4186 = vpop.f32.mrb[0].mxu0
        %v4187 = vadd.f32 %v3922, %v4186
        %v4188 = vpop.f32.mrb[0].mxu0
        %v4189 = vpop.f32.mrb[0].mxu0
        %v4190 = vadd.f32 %v3922, %v4189
        %v4191 = vpop.f32.mrb[0].mxu0
        %4192 = vmatprep.mubr.bf16.mxu0 %v3864
        %4193 = vmatmul.mubr.bf16.gmra.mrb[0].mxu0 %v3863
        %v4194 = vpop.f32.mrb[0].mxu0
        %v4195 = vadd.f32 %v3922, %v4194
        %v4196 = vpop.f32.mrb[0].mxu0
        %v4197 = vpop.f32.mrb[0].mxu0
        %v4198 = vadd.f32 %v3922, %v4197
        %v4199 = vpop.f32.mrb[0].mxu0
        %4200 = vmatprep.mubr.bf16.mxu0 %v3867
        %4201 = vmatmul.mubr.bf16.gmra.mrb[0].mxu0 %v3866
        %v4202 = vpop.f32.mrb[0].mxu0
        %v4203 = vadd.f32 %v3922, %v4202
        %v4204 = vpop.f32.mrb[0].mxu0
        %v4205 = vpop.f32.mrb[0].mxu0
        %v4206 = vadd.f32 %v3922, %v4205
        %v4207 = vpop.f32.mrb[0].mxu0
        %4208 = vmatprep.mubr.bf16.mxu0 %v3870
        %4209 = vmatmul.mubr.bf16.gmra.mrb[0].mxu0 %v3869
        %v4210 = vpop.f32.mrb[0].mxu0
        %v4211 = vadd.f32 %v3922, %v4210
        %v4212 = vpop.f32.mrb[0].mxu0
        %v4213 = vpop.f32.mrb[0].mxu0
        %v4214 = vadd.f32 %v3922, %v4213
        %v4215 = vpop.f32.mrb[0].mxu0
        %4216 = vmatprep.mubr.bf16.mxu0 %v3873
        %4217 = vmatmul.mubr.bf16.gmra.mrb[0].mxu0 %v3872
        %v4218 = vpop.f32.mrb[0].mxu0
        %v4219 = vadd.f32 %v3922, %v4218
        %v4220 = vpop.f32.mrb[0].mxu0
        %v4221 = vpop.f32.mrb[0].mxu0
        %v4222 = vadd.f32 %v3922, %v4221
        %v4223 = vpop.f32.mrb[0].mxu0
        %4224 = vmatprep.mubr.bf16.mxu0 %v3876
        %4225 = vmatmul.mubr.bf16.gmra.mrb[0].mxu0 %v3875
        %v4226 = vpop.f32.mrb[0].mxu0
        %v4227 = vadd.f32 %v3922, %v4226
        %v4228 = vpop.f32.mrb[0].mxu0
        %v4229 = vpop.f32.mrb[0].mxu0
        %v4230 = vadd.f32 %v3922, %v4229
        %v4231 = vpop.f32.mrb[0].mxu0
        %4232 = vmatprep.mubr.bf16.mxu0 %v3879
        %4233 = vmatmul.mubr.bf16.gmra.mrb[0].mxu0 %v3878
        %v4234 = vpop.f32.mrb[0].mxu0
        %v4235 = vadd.f32 %v3922, %v4234
        %v4236 = vpop.f32.mrb[0].mxu0
        %v4237 = vpop.f32.mrb[0].mxu0
        %v4238 = vadd.f32 %v3922, %v4237
        %v4239 = vpop.f32.mrb[0].mxu0
        %4240 = vdwg.mxu0
        %4241 = vmatprep.subr.bf16.mxu0 0
        %4242 = vmatpush1.bf16.msra.mxu0 %v4012
        %4243 = vmatprep.subr.bf16.mxu0 0
        %4244 = vmatpush1.bf16.msra.mxu0 %v4013
        %4245 = vmatprep.subr.bf16.mxu0 0
        %4246 = vmatpush1.bf16.msra.mxu0 0
        %4247 = vmatprep.subr.bf16.mxu0 0
        %4248 = vmatpush1.bf16.msra.mxu0 0
        %4249 = vmatprep.subr.bf16.mxu0 0
        %4250 = vmatpush1.bf16.msra.mxu0 0
        %4251 = vmatprep.subr.bf16.mxu0 0
        %4252 = vmatpush1.bf16.msra.mxu0 0
        %4253 = vmatprep.subr.bf16.mxu0 0
        %4254 = vmatpush1.bf16.msra.mxu0 0
        %4255 = vmatprep.subr.bf16.mxu0 0
        %4256 = vmatpush1.bf16.msra.mxu0 0
        %4257 = vmatprep.subr.bf16.mxu0 0
        %4258 = vmatpush1.bf16.msra.mxu0 0
        %4259 = vmatprep.subr.bf16.mxu0 0
        %4260 = vmatpush1.bf16.msra.mxu0 0
        %4261 = vmatprep.subr.bf16.mxu0 0
        %4262 = vmatpush1.bf16.msra.mxu0 0
        %4263 = vmatprep.subr.bf16.mxu0 0
        %4264 = vmatpush1.bf16.msra.mxu0 0
        %4265 = vmatprep.subr.bf16.mxu0 0
        %4266 = vmatpush1.bf16.msra.mxu0 0
        %4267 = vmatprep.subr.bf16.mxu0 0
        %4268 = vmatpush1.bf16.msra.mxu0 0
        %4269 = vmatprep.subr.bf16.mxu0 0
        %4270 = vmatpush1.bf16.msra.mxu0 0
        %4271 = vmatprep.subr.bf16.mxu0 0
        %4272 = vmatpush1.bf16.msra.mxu0 0
        %4273 = vmatprep.mubr.bf16.mxu0 0
        %4274 = vmatmul.mubr.bf16.gmra.mrb[0].mxu0 %v4033
        %v4275 = vpop.f32.mrb[0].mxu0
        %v4276 = vadd.f32 %v4115, %v4275
        %v4277 = vpop.f32.mrb[0].mxu0
        %v4278 = vpop.f32.mrb[0].mxu0
        %v4279 = vadd.f32 %v4118, %v4278
        %v4280 = vpop.f32.mrb[0].mxu0
        %4281 = vmatprep.mubr.bf16.mxu0 0
        %4282 = vmatmul.mubr.bf16.gmra.mrb[0].mxu0 %v4036
        %v4283 = vpop.f32.mrb[0].mxu0
        %v4284 = vadd.f32 %v4123, %v4283
        %v4285 = vpop.f32.mrb[0].mxu0
        %v4286 = vpop.f32.mrb[0].mxu0
        %v4287 = vadd.f32 %v4126, %v4286
        %v4288 = vpop.f32.mrb[0].mxu0
        %4289 = vmatprep.mubr.bf16.mxu0 0
        %4290 = vmatmul.mubr.bf16.gmra.mrb[0].mxu0 %v4039
        %v4291 = vpop.f32.mrb[0].mxu0
        %v4292 = vadd.f32 %v4131, %v4291
        %v4293 = vpop.f32.mrb[0].mxu0
        %v4294 = vpop.f32.mrb[0].mxu0
        %v4295 = vadd.f32 %v4134, %v4294
        %v4296 = vpop.f32.mrb[0].mxu0
        %4297 = vmatprep.mubr.bf16.mxu0 0
        %4298 = vmatmul.mubr.bf16.gmra.mrb[0].mxu0 %v4042
        %v4299 = vpop.f32.mrb[0].mxu0
        %v4300 = vadd.f32 %v4139, %v4299
        %v4301 = vpop.f32.mrb[0].mxu0
        %v4302 = vpop.f32.mrb[0].mxu0
        %v4303 = vadd.f32 %v4142, %v4302
        %v4304 = vpop.f32.mrb[0].mxu0
        %4305 = vmatprep.mubr.bf16.mxu0 0
        %4306 = vmatmul.mubr.bf16.gmra.mrb[0].mxu0 %v4045
        %v4307 = vpop.f32.mrb[0].mxu0
        %v4308 = vadd.f32 %v4147, %v4307
        %v4309 = vpop.f32.mrb[0].mxu0
        %v4310 = vpop.f32.mrb[0].mxu0
        %v4311 = vadd.f32 %v4150, %v4310
        %v4312 = vpop.f32.mrb[0].mxu0
        %4313 = vmatprep.mubr.bf16.mxu0 0
        %4314 = vmatmul.mubr.bf16.gmra.mrb[0].mxu0 %v4048
        %v4315 = vpop.f32.mrb[0].mxu0
        %v4316 = vadd.f32 %v4155, %v4315
        %v4317 = vpop.f32.mrb[0].mxu0
        %v4318 = vpop.f32.mrb[0].mxu0
        %v4319 = vadd.f32 %v4158, %v4318
        %v4320 = vpop.f32.mrb[0].mxu0
        %4321 = vmatprep.mubr.bf16.mxu0 0
        %4322 = vmatmul.mubr.bf16.gmra.mrb[0].mxu0 %v4051
        %v4323 = vpop.f32.mrb[0].mxu0
        %v4324 = vadd.f32 %v4163, %v4323
        %v4325 = vpop.f32.mrb[0].mxu0
        %v4326 = vpop.f32.mrb[0].mxu0
        %v4327 = vadd.f32 %v4166, %v4326
        %v4328 = vpop.f32.mrb[0].mxu0
        %4329 = vmatprep.mubr.bf16.mxu0 0
        %4330 = vmatmul.mubr.bf16.gmra.mrb[0].mxu0 %v4054
        %v4331 = vpop.f32.mrb[0].mxu0
        %v4332 = vadd.f32 %v4171, %v4331
        %v4333 = vpop.f32.mrb[0].mxu0
        %v4334 = vpop.f32.mrb[0].mxu0
        %v4335 = vadd.f32 %v4174, %v4334
        %v4336 = vpop.f32.mrb[0].mxu0
        %4337 = vmatprep.mubr.bf16.mxu0 0
        %4338 = vmatmul.mubr.bf16.gmra.mrb[0].mxu0 %v4057
        %v4339 = vpop.f32.mrb[0].mxu0
        %v4340 = vadd.f32 %v4179, %v4339
        %v4341 = vpop.f32.mrb[0].mxu0
        %v4342 = vpop.f32.mrb[0].mxu0
        %v4343 = vadd.f32 %v4182, %v4342
        %v4344 = vpop.f32.mrb[0].mxu0
        %4345 = vmatprep.mubr.bf16.mxu0 0
        %4346 = vmatmul.mubr.bf16.gmra.mrb[0].mxu0 %v4060
        %v4347 = vpop.f32.mrb[0].mxu0
        %v4348 = vadd.f32 %v4187, %v4347
        %v4349 = vpop.f32.mrb[0].mxu0
        %v4350 = vpop.f32.mrb[0].mxu0
        %v4351 = vadd.f32 %v4190, %v4350
        %v4352 = vpop.f32.mrb[0].mxu0
        %4353 = vmatprep.mubr.bf16.mxu0 0
        %4354 = vmatmul.mubr.bf16.gmra.mrb[0].mxu0 %v4063
        %v4355 = vpop.f32.mrb[0].mxu0
        %v4356 = vadd.f32 %v4195, %v4355
        %v4357 = vpop.f32.mrb[0].mxu0
        %v4358 = vpop.f32.mrb[0].mxu0
        %v4359 = vadd.f32 %v4198, %v4358
        %v4360 = vpop.f32.mrb[0].mxu0
        %4361 = vmatprep.mubr.bf16.mxu0 0
        %4362 = vmatmul.mubr.bf16.gmra.mrb[0].mxu0 %v4066
        %v4363 = vpop.f32.mrb[0].mxu0
        %v4364 = vadd.f32 %v4203, %v4363
        %v4365 = vpop.f32.mrb[0].mxu0
        %v4366 = vpop.f32.mrb[0].mxu0
        %v4367 = vadd.f32 %v4206, %v4366
        %v4368 = vpop.f32.mrb[0].mxu0
        %4369 = vmatprep.mubr.bf16.mxu0 0
        %4370 = vmatmul.mubr.bf16.gmra.mrb[0].mxu0 %v4069
        %v4371 = vpop.f32.mrb[0].mxu0
        %v4372 = vadd.f32 %v4211, %v4371
        %v4373 = vpop.f32.mrb[0].mxu0
        %v4374 = vpop.f32.mrb[0].mxu0
        %v4375 = vadd.f32 %v4214, %v4374
        %v4376 = vpop.f32.mrb[0].mxu0
        %4377 = vmatprep.mubr.bf16.mxu0 0
        %4378 = vmatmul.mubr.bf16.gmra.mrb[0].mxu0 %v4072
        %v4379 = vpop.f32.mrb[0].mxu0
        %v4380 = vadd.f32 %v4219, %v4379
        %v4381 = vpop.f32.mrb[0].mxu0
        %v4382 = vpop.f32.mrb[0].mxu0
        %v4383 = vadd.f32 %v4222, %v4382
        %v4384 = vpop.f32.mrb[0].mxu0
        %4385 = vmatprep.mubr.bf16.mxu0 0
        %4386 = vmatmul.mubr.bf16.gmra.mrb[0].mxu0 %v4075
        %v4387 = vpop.f32.mrb[0].mxu0
        %v4388 = vadd.f32 %v4227, %v4387
        %v4389 = vpop.f32.mrb[0].mxu0
        %v4390 = vpop.f32.mrb[0].mxu0
        %v4391 = vadd.f32 %v4230, %v4390
        %v4392 = vpop.f32.mrb[0].mxu0
        %4393 = vmatprep.mubr.bf16.mxu0 0
        %4394 = vmatmul.mubr.bf16.gmra.mrb[0].mxu0 %v4078
        %v4395 = vpop.f32.mrb[0].mxu0
        %v4396 = vadd.f32 %v4235, %v4395
        %v4397 = vpop.f32.mrb[0].mxu0
        %v4398 = vpop.f32.mrb[0].mxu0
        %v4399 = vadd.f32 %v4238, %v4398
        %v4400 = vpop.f32.mrb[0].mxu0
        %4401 = vdwg.mxu0
        %v4402 = vmax.f32 %v4276, 0.0
        %v4403 = vmax.f32 %v4279, 0.0
        %v4404 = vmax.f32 %v4284, 0.0
        %v4405 = vmax.f32 %v4287, 0.0
        %v4406 = vmax.f32 %v4292, 0.0
        %v4407 = vmax.f32 %v4295, 0.0
        %v4408 = vmax.f32 %v4300, 0.0
        %v4409 = vmax.f32 %v4303, 0.0
        %v4410 = vmax.f32 %v4308, 0.0
        %v4411 = vmax.f32 %v4311, 0.0
        %v4412 = vmax.f32 %v4316, 0.0
        %v4413 = vmax.f32 %v4319, 0.0
        %v4414 = vmax.f32 %v4324, 0.0
        %v4415 = vmax.f32 %v4327, 0.0
        %v4416 = vmax.f32 %v4332, 0.0
        %v4417 = vmax.f32 %v4335, 0.0
        %v4418 = vmax.f32 %v4340, 0.0
        %v4419 = vmax.f32 %v4343, 0.0
        %v4420 = vmax.f32 %v4348, 0.0
        %v4421 = vmax.f32 %v4351, 0.0
        %v4422 = vmax.f32 %v4356, 0.0
        %v4423 = vmax.f32 %v4359, 0.0
        %v4424 = vmax.f32 %v4364, 0.0
        %v4425 = vmax.f32 %v4367, 0.0
        %v4426 = vmax.f32 %v4372, 0.0
        %v4427 = vmax.f32 %v4375, 0.0
        %v4428 = vmax.f32 %v4380, 0.0
        %v4429 = vmax.f32 %v4383, 0.0
        %v4430 = vmax.f32 %v4388, 0.0
        %v4431 = vmax.f32 %v4391, 0.0
        %v4432 = vmax.f32 %v4396, 0.0
        %v4433 = vmax.f32 %v4399, 0.0
        %v4434 = vpack.c.bf16 %v4403, %v4402
        %v4435 = vpack.c.bf16 %v4405, %v4404
        %v4436 = vpack.c.bf16 %v4407, %v4406
        %v4437 = vpack.c.bf16 %v4409, %v4408
        %v4438 = vpack.c.bf16 %v4411, %v4410
        %v4439 = vpack.c.bf16 %v4413, %v4412
        %v4440 = vpack.c.bf16 %v4415, %v4414
        %v4441 = vpack.c.bf16 %v4417, %v4416
        %v4442 = vpack.c.bf16 %v4419, %v4418
        %v4443 = vpack.c.bf16 %v4421, %v4420
        %v4444 = vpack.c.bf16 %v4423, %v4422
        %v4445 = vpack.c.bf16 %v4425, %v4424
        %v4446 = vpack.c.bf16 %v4427, %v4426
        %v4447 = vpack.c.bf16 %v4429, %v4428
        %v4448 = vpack.c.bf16 %v4431, %v4430
        %v4449 = vpack.c.bf16 %v4433, %v4432
        %v4450 = vld [vmem:[#allocation13] sm:$0xf]
        %v4451 = vld [vmem:[#allocation13 + $0x4] sm:$0xf]
        %v4452 = vld [vmem:[#allocation13 + $0x8] sm:$0xf]
        %v4453 = vld [vmem:[#allocation13 + $0xc] sm:$0xf]
        %v4454 = vld [vmem:[#allocation15] sm:$0x1]
        %v4456 = vlaneseq
        %v4457 = vshrl.u32 %v4456, 7
        %v4458 = vsub.s32 0, %v4457
        %v4459 = vrot.slane %v4454, %v4458
        %v4465 = vunpack.c.l.b16 %v4450
        %v4466 = vunpack.c.l.b16 %v4451
        %v4467 = vunpack.c.l.b16 %v4452
        %v4468 = vunpack.c.l.b16 %v4453
        %v4469 = vpack.c.b16 %v4466, %v4465
        %v4470 = vpack.c.b16 %v4468, %v4467
        %v4474 = vsel %vm773, %v4434, 0
        %v4477 = vsel %vm773, %v4435, 0
        %v4480 = vsel %vm773, %v4436, 0
        %v4483 = vsel %vm773, %v4437, 0
        %v4486 = vsel %vm773, %v4438, 0
        %v4489 = vsel %vm773, %v4439, 0
        %v4492 = vsel %vm773, %v4440, 0
        %v4495 = vsel %vm773, %v4441, 0
        %v4498 = vsel %vm773, %v4442, 0
        %v4501 = vsel %vm773, %v4443, 0
        %v4504 = vsel %vm773, %v4444, 0
        %v4507 = vsel %vm773, %v4445, 0
        %v4510 = vsel %vm773, %v4446, 0
        %v4513 = vsel %vm773, %v4447, 0
        %v4516 = vsel %vm773, %v4448, 0
        %v4519 = vsel %vm773, %v4449, 0
        %4521 = vmatprep.subr.bf16.mxu0 0
        %4522 = vmatpush1.bf16.msra.mxu0 %v4469
        %4523 = vmatprep.subr.bf16.mxu0 0
        %4524 = vmatpush1.bf16.msra.mxu0 %v4470
        %4525 = vmatprep.subr.bf16.mxu0 0
        %4526 = vmatpush1.bf16.msra.mxu0 0
        %4527 = vmatprep.subr.bf16.mxu0 0
        %4528 = vmatpush1.bf16.msra.mxu0 0
        %4529 = vmatprep.subr.bf16.mxu0 0
        %4530 = vmatpush1.bf16.msra.mxu0 0
        %4531 = vmatprep.subr.bf16.mxu0 0
        %4532 = vmatpush1.bf16.msra.mxu0 0
        %4533 = vmatprep.subr.bf16.mxu0 0
        %4534 = vmatpush1.bf16.msra.mxu0 0
        %4535 = vmatprep.subr.bf16.mxu0 0
        %4536 = vmatpush1.bf16.msra.mxu0 0
        %4537 = vmatprep.subr.bf16.mxu0 0
        %4538 = vmatpush1.bf16.msra.mxu0 0
        %4539 = vmatprep.subr.bf16.mxu0 0
        %4540 = vmatpush1.bf16.msra.mxu0 0
        %4541 = vmatprep.subr.bf16.mxu0 0
        %4542 = vmatpush1.bf16.msra.mxu0 0
        %4543 = vmatprep.subr.bf16.mxu0 0
        %4544 = vmatpush1.bf16.msra.mxu0 0
        %4545 = vmatprep.subr.bf16.mxu0 0
        %4546 = vmatpush1.bf16.msra.mxu0 0
        %4547 = vmatprep.subr.bf16.mxu0 0
        %4548 = vmatpush1.bf16.msra.mxu0 0
        %4549 = vmatprep.subr.bf16.mxu0 0
        %4550 = vmatpush1.bf16.msra.mxu0 0
        %4551 = vmatprep.subr.bf16.mxu0 0
        %4552 = vmatpush1.bf16.msra.mxu0 0
        %4553 = vmatprep.mubr.bf16.mxu0 0
        %4554 = vmatmul.mubr.bf16.gmra.mrb[0].mxu0 %v4474
        %v4555 = vpop.f32.mrb[0].mxu0
        %v4556 = vadd.f32 %v4459, %v4555
        %v4557 = vpop.f32.mrb[0].mxu0
        %v4558 = vpop.f32.mrb[0].mxu0
        %v4559 = vadd.f32 %v4459, %v4558
        %v4560 = vpop.f32.mrb[0].mxu0
        %4561 = vmatprep.mubr.bf16.mxu0 0
        %4562 = vmatmul.mubr.bf16.gmra.mrb[0].mxu0 %v4477
        %v4563 = vpop.f32.mrb[0].mxu0
        %v4564 = vadd.f32 %v4459, %v4563
        %v4565 = vpop.f32.mrb[0].mxu0
        %v4566 = vpop.f32.mrb[0].mxu0
        %v4567 = vadd.f32 %v4459, %v4566
        %v4568 = vpop.f32.mrb[0].mxu0
        %4569 = vmatprep.mubr.bf16.mxu0 0
        %4570 = vmatmul.mubr.bf16.gmra.mrb[0].mxu0 %v4480
        %v4571 = vpop.f32.mrb[0].mxu0
        %v4572 = vadd.f32 %v4459, %v4571
        %v4573 = vpop.f32.mrb[0].mxu0
        %v4574 = vpop.f32.mrb[0].mxu0
        %v4575 = vadd.f32 %v4459, %v4574
        %v4576 = vpop.f32.mrb[0].mxu0
        %4577 = vmatprep.mubr.bf16.mxu0 0
        %4578 = vmatmul.mubr.bf16.gmra.mrb[0].mxu0 %v4483
        %v4579 = vpop.f32.mrb[0].mxu0
        %v4580 = vadd.f32 %v4459, %v4579
        %v4581 = vpop.f32.mrb[0].mxu0
        %v4582 = vpop.f32.mrb[0].mxu0
        %v4583 = vadd.f32 %v4459, %v4582
        %v4584 = vpop.f32.mrb[0].mxu0
        %4585 = vmatprep.mubr.bf16.mxu0 0
        %4586 = vmatmul.mubr.bf16.gmra.mrb[0].mxu0 %v4486
        %v4587 = vpop.f32.mrb[0].mxu0
        %v4588 = vadd.f32 %v4459, %v4587
        %v4589 = vpop.f32.mrb[0].mxu0
        %v4590 = vpop.f32.mrb[0].mxu0
        %v4591 = vadd.f32 %v4459, %v4590
        %v4592 = vpop.f32.mrb[0].mxu0
        %4593 = vmatprep.mubr.bf16.mxu0 0
        %4594 = vmatmul.mubr.bf16.gmra.mrb[0].mxu0 %v4489
        %v4595 = vpop.f32.mrb[0].mxu0
        %v4596 = vadd.f32 %v4459, %v4595
        %v4597 = vpop.f32.mrb[0].mxu0
        %v4598 = vpop.f32.mrb[0].mxu0
        %v4599 = vadd.f32 %v4459, %v4598
        %v4600 = vpop.f32.mrb[0].mxu0
        %4601 = vmatprep.mubr.bf16.mxu0 0
        %4602 = vmatmul.mubr.bf16.gmra.mrb[0].mxu0 %v4492
        %v4603 = vpop.f32.mrb[0].mxu0
        %v4604 = vadd.f32 %v4459, %v4603
        %v4605 = vpop.f32.mrb[0].mxu0
        %v4606 = vpop.f32.mrb[0].mxu0
        %v4607 = vadd.f32 %v4459, %v4606
        %v4608 = vpop.f32.mrb[0].mxu0
        %4609 = vmatprep.mubr.bf16.mxu0 0
        %4610 = vmatmul.mubr.bf16.gmra.mrb[0].mxu0 %v4495
        %v4611 = vpop.f32.mrb[0].mxu0
        %v4612 = vadd.f32 %v4459, %v4611
        %v4613 = vpop.f32.mrb[0].mxu0
        %v4614 = vpop.f32.mrb[0].mxu0
        %v4615 = vadd.f32 %v4459, %v4614
        %v4616 = vpop.f32.mrb[0].mxu0
        %4617 = vmatprep.mubr.bf16.mxu0 0
        %4618 = vmatmul.mubr.bf16.gmra.mrb[0].mxu0 %v4498
        %v4619 = vpop.f32.mrb[0].mxu0
        %v4620 = vadd.f32 %v4459, %v4619
        %v4621 = vpop.f32.mrb[0].mxu0
        %v4622 = vpop.f32.mrb[0].mxu0
        %v4623 = vadd.f32 %v4459, %v4622
        %v4624 = vpop.f32.mrb[0].mxu0
        %4625 = vmatprep.mubr.bf16.mxu0 0
        %4626 = vmatmul.mubr.bf16.gmra.mrb[0].mxu0 %v4501
        %v4627 = vpop.f32.mrb[0].mxu0
        %v4628 = vadd.f32 %v4459, %v4627
        %v4629 = vpop.f32.mrb[0].mxu0
        %v4630 = vpop.f32.mrb[0].mxu0
        %v4631 = vadd.f32 %v4459, %v4630
        %v4632 = vpop.f32.mrb[0].mxu0
        %4633 = vmatprep.mubr.bf16.mxu0 0
        %4634 = vmatmul.mubr.bf16.gmra.mrb[0].mxu0 %v4504
        %v4635 = vpop.f32.mrb[0].mxu0
        %v4636 = vadd.f32 %v4459, %v4635
        %v4637 = vpop.f32.mrb[0].mxu0
        %v4638 = vpop.f32.mrb[0].mxu0
        %v4639 = vadd.f32 %v4459, %v4638
        %v4640 = vpop.f32.mrb[0].mxu0
        %4641 = vmatprep.mubr.bf16.mxu0 0
        %4642 = vmatmul.mubr.bf16.gmra.mrb[0].mxu0 %v4507
        %v4643 = vpop.f32.mrb[0].mxu0
        %v4644 = vadd.f32 %v4459, %v4643
        %v4645 = vpop.f32.mrb[0].mxu0
        %v4646 = vpop.f32.mrb[0].mxu0
        %v4647 = vadd.f32 %v4459, %v4646
        %v4648 = vpop.f32.mrb[0].mxu0
        %4649 = vmatprep.mubr.bf16.mxu0 0
        %4650 = vmatmul.mubr.bf16.gmra.mrb[0].mxu0 %v4510
        %v4651 = vpop.f32.mrb[0].mxu0
        %v4652 = vadd.f32 %v4459, %v4651
        %v4653 = vpop.f32.mrb[0].mxu0
        %v4654 = vpop.f32.mrb[0].mxu0
        %v4655 = vadd.f32 %v4459, %v4654
        %v4656 = vpop.f32.mrb[0].mxu0
        %4657 = vmatprep.mubr.bf16.mxu0 0
        %4658 = vmatmul.mubr.bf16.gmra.mrb[0].mxu0 %v4513
        %v4659 = vpop.f32.mrb[0].mxu0
        %v4660 = vadd.f32 %v4459, %v4659
        %v4661 = vpop.f32.mrb[0].mxu0
        %v4662 = vpop.f32.mrb[0].mxu0
        %v4663 = vadd.f32 %v4459, %v4662
        %v4664 = vpop.f32.mrb[0].mxu0
        %4665 = vmatprep.mubr.bf16.mxu0 0
        %4666 = vmatmul.mubr.bf16.gmra.mrb[0].mxu0 %v4516
        %v4667 = vpop.f32.mrb[0].mxu0
        %v4668 = vadd.f32 %v4459, %v4667
        %v4669 = vpop.f32.mrb[0].mxu0
        %v4670 = vpop.f32.mrb[0].mxu0
        %v4671 = vadd.f32 %v4459, %v4670
        %v4672 = vpop.f32.mrb[0].mxu0
        %4673 = vmatprep.mubr.bf16.mxu0 0
        %4674 = vmatmul.mubr.bf16.gmra.mrb[0].mxu0 %v4519
        %v4675 = vpop.f32.mrb[0].mxu0
        %v4676 = vadd.f32 %v4459, %v4675
        %v4677 = vpop.f32.mrb[0].mxu0
        %v4678 = vpop.f32.mrb[0].mxu0
        %v4679 = vadd.f32 %v4459, %v4678
        %v4680 = vpop.f32.mrb[0].mxu0
        %4681 = vdwg.mxu0
        %v4682 = vld [vmem:[%s323] sm:$0xf]
        %v4683 = vld [vmem:[%s323 + $0x4] sm:$0xf]
        %v4684 = vld [vmem:[%s323 + $0x8] sm:$0xf]
        %v4685 = vld [vmem:[%s323 + $0xc] sm:$0xf]
        %v4686 = vld [vmem:[%s323 + $0x10] sm:$0xf]
        %v4687 = vld [vmem:[%s323 + $0x14] sm:$0xf]
        %v4688 = vld [vmem:[%s323 + $0x18] sm:$0xf]
        %v4689 = vld [vmem:[%s323 + $0x1c] sm:$0xf]
        %v4690 = vld [vmem:[%s323 + $0x20] sm:$0xf]
        %v4691 = vld [vmem:[%s323 + $0x24] sm:$0xf]
        %v4692 = vld [vmem:[%s323 + $0x28] sm:$0xf]
        %v4693 = vld [vmem:[%s323 + $0x2c] sm:$0xf]
        %v4694 = vld [vmem:[%s323 + $0x30] sm:$0xf]
        %v4695 = vld [vmem:[%s323 + $0x34] sm:$0xf]
        %v4696 = vld [vmem:[%s323 + $0x38] sm:$0xf]
        %v4697 = vld [vmem:[%s323 + $0x3c] sm:$0xf]
        %v4698 = vld [vmem:[%s323 + $0x40] sm:$0xf]
        %v4699 = vld [vmem:[%s323 + $0x44] sm:$0xf]
        %v4700 = vld [vmem:[%s323 + $0x48] sm:$0xf]
        %v4701 = vld [vmem:[%s323 + $0x4c] sm:$0xf]
        %v4702 = vld [vmem:[%s323 + $0x50] sm:$0xf]
        %v4703 = vld [vmem:[%s323 + $0x54] sm:$0xf]
        %v4704 = vld [vmem:[%s323 + $0x58] sm:$0xf]
        %v4705 = vld [vmem:[%s323 + $0x5c] sm:$0xf]
        %v4706 = vld [vmem:[%s323 + $0x60] sm:$0xf]
        %v4707 = vld [vmem:[%s323 + $0x64] sm:$0xf]
        %v4708 = vld [vmem:[%s323 + $0x68] sm:$0xf]
        %v4709 = vld [vmem:[%s323 + $0x6c] sm:$0xf]
        %v4710 = vld [vmem:[%s323 + $0x70] sm:$0xf]
        %v4711 = vld [vmem:[%s323 + $0x74] sm:$0xf]
        %v4712 = vld [vmem:[%s323 + $0x78] sm:$0xf]
        %v4713 = vld [vmem:[%s323 + $0x7c] sm:$0xf]
        %v4714 = vunpack.c.l.bf16 %v4682
        %v4715 = vunpack.c.l.bf16 %v4683
        %v4716 = vunpack.c.l.bf16 %v4684
        %v4717 = vunpack.c.l.bf16 %v4685
        %v4718 = vunpack.c.l.bf16 %v4686
        %v4719 = vunpack.c.l.bf16 %v4687
        %v4720 = vunpack.c.l.bf16 %v4688
        %v4721 = vunpack.c.l.bf16 %v4689
        %v4722 = vunpack.c.l.bf16 %v4690
        %v4723 = vunpack.c.l.bf16 %v4691
        %v4724 = vunpack.c.l.bf16 %v4692
        %v4725 = vunpack.c.l.bf16 %v4693
        %v4726 = vunpack.c.l.bf16 %v4694
        %v4727 = vunpack.c.l.bf16 %v4695
        %v4728 = vunpack.c.l.bf16 %v4696
        %v4729 = vunpack.c.l.bf16 %v4697
        %v4730 = vunpack.c.l.bf16 %v4698
        %v4731 = vunpack.c.l.bf16 %v4699
        %v4732 = vunpack.c.l.bf16 %v4700
        %v4733 = vunpack.c.l.bf16 %v4701
        %v4734 = vunpack.c.l.bf16 %v4702
        %v4735 = vunpack.c.l.bf16 %v4703
        %v4736 = vunpack.c.l.bf16 %v4704
        %v4737 = vunpack.c.l.bf16 %v4705
        %v4738 = vunpack.c.l.bf16 %v4706
        %v4739 = vunpack.c.l.bf16 %v4707
        %v4740 = vunpack.c.l.bf16 %v4708
        %v4741 = vunpack.c.l.bf16 %v4709
        %v4742 = vunpack.c.l.bf16 %v4710
        %v4743 = vunpack.c.l.bf16 %v4711
        %v4744 = vunpack.c.l.bf16 %v4712
        %v4745 = vunpack.c.l.bf16 %v4713
        %v4746 = vadd.f32 %v4556, %v4714
        %v4747 = vadd.f32 %v4559, %v4715
        %v4748 = vadd.f32 %v4564, %v4716
        %v4749 = vadd.f32 %v4567, %v4717
        %v4750 = vadd.f32 %v4572, %v4718
        %v4751 = vadd.f32 %v4575, %v4719
        %v4752 = vadd.f32 %v4580, %v4720
        %v4753 = vadd.f32 %v4583, %v4721
        %v4754 = vadd.f32 %v4588, %v4722
        %v4755 = vadd.f32 %v4591, %v4723
        %v4756 = vadd.f32 %v4596, %v4724
        %v4757 = vadd.f32 %v4599, %v4725
        %v4758 = vadd.f32 %v4604, %v4726
        %v4759 = vadd.f32 %v4607, %v4727
        %v4760 = vadd.f32 %v4612, %v4728
        %v4761 = vadd.f32 %v4615, %v4729
        %v4762 = vadd.f32 %v4620, %v4730
        %v4763 = vadd.f32 %v4623, %v4731
        %v4764 = vadd.f32 %v4628, %v4732
        %v4765 = vadd.f32 %v4631, %v4733
        %v4766 = vadd.f32 %v4636, %v4734
        %v4767 = vadd.f32 %v4639, %v4735
        %v4768 = vadd.f32 %v4644, %v4736
        %v4769 = vadd.f32 %v4647, %v4737
        %v4770 = vadd.f32 %v4652, %v4738
        %v4771 = vadd.f32 %v4655, %v4739
        %v4772 = vadd.f32 %v4660, %v4740
        %v4773 = vadd.f32 %v4663, %v4741
        %v4774 = vadd.f32 %v4668, %v4742
        %v4775 = vadd.f32 %v4671, %v4743
        %v4776 = vadd.f32 %v4676, %v4744
        %v4777 = vadd.f32 %v4679, %v4745
        %v4778 = vmax.f32 %v4746, 0.0
        %v4779 = vmax.f32 %v4747, 0.0
        %v4780 = vmax.f32 %v4748, 0.0
        %v4781 = vmax.f32 %v4749, 0.0
        %v4782 = vmax.f32 %v4750, 0.0
        %v4783 = vmax.f32 %v4751, 0.0
        %v4784 = vmax.f32 %v4752, 0.0
        %v4785 = vmax.f32 %v4753, 0.0
        %v4786 = vmax.f32 %v4754, 0.0
        %v4787 = vmax.f32 %v4755, 0.0
        %v4788 = vmax.f32 %v4756, 0.0
        %v4789 = vmax.f32 %v4757, 0.0
        %v4790 = vmax.f32 %v4758, 0.0
        %v4791 = vmax.f32 %v4759, 0.0
        %v4792 = vmax.f32 %v4760, 0.0
        %v4793 = vmax.f32 %v4761, 0.0
        %v4794 = vmax.f32 %v4762, 0.0
        %v4795 = vmax.f32 %v4763, 0.0
        %v4796 = vmax.f32 %v4764, 0.0
        %v4797 = vmax.f32 %v4765, 0.0
        %v4798 = vmax.f32 %v4766, 0.0
        %v4799 = vmax.f32 %v4767, 0.0
        %v4800 = vmax.f32 %v4768, 0.0
        %v4801 = vmax.f32 %v4769, 0.0
        %v4802 = vmax.f32 %v4770, 0.0
        %v4803 = vmax.f32 %v4771, 0.0
        %v4804 = vmax.f32 %v4772, 0.0
        %v4805 = vmax.f32 %v4773, 0.0
        %v4806 = vmax.f32 %v4774, 0.0
        %v4807 = vmax.f32 %v4775, 0.0
        %v4808 = vmax.f32 %v4776, 0.0
        %v4809 = vmax.f32 %v4777, 0.0
        %v4810 = vpack.c.bf16 %v4779, %v4778
        %v4811 = vpack.c.bf16 %v4781, %v4780
        %v4812 = vpack.c.bf16 %v4783, %v4782
        %v4813 = vpack.c.bf16 %v4785, %v4784
        %v4814 = vpack.c.bf16 %v4787, %v4786
        %v4815 = vpack.c.bf16 %v4789, %v4788
        %v4816 = vpack.c.bf16 %v4791, %v4790
        %v4817 = vpack.c.bf16 %v4793, %v4792
        %v4818 = vpack.c.bf16 %v4795, %v4794
        %v4819 = vpack.c.bf16 %v4797, %v4796
        %v4820 = vpack.c.bf16 %v4799, %v4798
        %v4821 = vpack.c.bf16 %v4801, %v4800
        %v4822 = vpack.c.bf16 %v4803, %v4802
        %v4823 = vpack.c.bf16 %v4805, %v4804
        %v4824 = vpack.c.bf16 %v4807, %v4806
        %v4825 = vpack.c.bf16 %v4809, %v4808
        %v4842 = vunpack.c.l.b16 %v4810
        %v4843 = vunpack.c.h.b16 %v4810
        %v4844 = vunpack.c.l.b16 %v4811
        %v4845 = vunpack.c.h.b16 %v4811
        %v4846 = vunpack.c.l.b16 %v4812
        %v4847 = vunpack.c.h.b16 %v4812
        %v4848 = vunpack.c.l.b16 %v4813
        %v4849 = vunpack.c.h.b16 %v4813
        %v4850 = vunpack.c.l.b16 %v4814
        %v4851 = vunpack.c.h.b16 %v4814
        %v4852 = vunpack.c.l.b16 %v4815
        %v4853 = vunpack.c.h.b16 %v4815
        %v4854 = vunpack.c.l.b16 %v4816
        %v4855 = vunpack.c.h.b16 %v4816
        %v4856 = vunpack.c.l.b16 %v4817
        %v4857 = vunpack.c.h.b16 %v4817
        %v4858 = vunpack.c.l.b16 %v4818
        %v4859 = vunpack.c.h.b16 %v4818
        %v4860 = vunpack.c.l.b16 %v4819
        %v4861 = vunpack.c.h.b16 %v4819
        %v4862 = vunpack.c.l.b16 %v4820
        %v4863 = vunpack.c.h.b16 %v4820
        %v4864 = vunpack.c.l.b16 %v4821
        %v4865 = vunpack.c.h.b16 %v4821
        %v4866 = vunpack.c.l.b16 %v4822
        %v4867 = vunpack.c.h.b16 %v4822
        %v4868 = vunpack.c.l.b16 %v4823
        %v4869 = vunpack.c.h.b16 %v4823
        %v4870 = vunpack.c.l.b16 %v4824
        %v4871 = vunpack.c.h.b16 %v4824
        %v4872 = vunpack.c.l.b16 %v4825
        %v4873 = vunpack.c.h.b16 %v4825
        %v4874 = vpack.c.b16 %v4842, %v4842
        %v4875 = vpack.c.b16 %v4843, %v4843
        %v4876 = vpack.c.b16 %v4844, %v4844
        %v4877 = vpack.c.b16 %v4845, %v4845
        %v4878 = vpack.c.b16 %v4846, %v4846
        %v4879 = vpack.c.b16 %v4847, %v4847
        %v4880 = vpack.c.b16 %v4848, %v4848
        %v4881 = vpack.c.b16 %v4849, %v4849
        %v4882 = vpack.c.b16 %v4850, %v4850
        %v4883 = vpack.c.b16 %v4851, %v4851
        %v4884 = vpack.c.b16 %v4852, %v4852
        %v4885 = vpack.c.b16 %v4853, %v4853
        %v4886 = vpack.c.b16 %v4854, %v4854
        %v4887 = vpack.c.b16 %v4855, %v4855
        %v4888 = vpack.c.b16 %v4856, %v4856
        %v4889 = vpack.c.b16 %v4857, %v4857
        %v4890 = vpack.c.b16 %v4858, %v4858
        %v4891 = vpack.c.b16 %v4859, %v4859
        %v4892 = vpack.c.b16 %v4860, %v4860
        %v4893 = vpack.c.b16 %v4861, %v4861
        %v4894 = vpack.c.b16 %v4862, %v4862
        %v4895 = vpack.c.b16 %v4863, %v4863
        %v4896 = vpack.c.b16 %v4864, %v4864
        %v4897 = vpack.c.b16 %v4865, %v4865
        %v4898 = vpack.c.b16 %v4866, %v4866
        %v4899 = vpack.c.b16 %v4867, %v4867
        %v4900 = vpack.c.b16 %v4868, %v4868
        %v4901 = vpack.c.b16 %v4869, %v4869
        %v4902 = vpack.c.b16 %v4870, %v4870
        %v4903 = vpack.c.b16 %v4871, %v4871
        %v4904 = vpack.c.b16 %v4872, %v4872
        %v4905 = vpack.c.b16 %v4873, %v4873
        %4938 = vst [vmem:[%s377] sm:$0xf] %v4874
        %4939 = vst [vmem:[%s377 + $0x4] sm:$0xf] %v4875
        %4940 = vst [vmem:[%s377 + $0x8] sm:$0xf] %v4876
        %4941 = vst [vmem:[%s377 + $0xc] sm:$0xf] %v4877
        %4942 = vst [vmem:[%s377 + $0x10] sm:$0xf] %v4878
        %4943 = vst [vmem:[%s377 + $0x14] sm:$0xf] %v4879
        %4944 = vst [vmem:[%s377 + $0x18] sm:$0xf] %v4880
        %4945 = vst [vmem:[%s377 + $0x1c] sm:$0xf] %v4881
        %4946 = vst [vmem:[%s377 + $0x20] sm:$0xf] %v4882
        %4947 = vst [vmem:[%s377 + $0x24] sm:$0xf] %v4883
        %4948 = vst [vmem:[%s377 + $0x28] sm:$0xf] %v4884
        %4949 = vst [vmem:[%s377 + $0x2c] sm:$0xf] %v4885
        %4950 = vst [vmem:[%s377 + $0x30] sm:$0xf] %v4886
        %4951 = vst [vmem:[%s377 + $0x34] sm:$0xf] %v4887
        %4952 = vst [vmem:[%s377 + $0x38] sm:$0xf] %v4888
        %4953 = vst [vmem:[%s377 + $0x3c] sm:$0xf] %v4889
        %4954 = vst [vmem:[%s377 + $0x40] sm:$0xf] %v4890
        %4955 = vst [vmem:[%s377 + $0x44] sm:$0xf] %v4891
        %4956 = vst [vmem:[%s377 + $0x48] sm:$0xf] %v4892
        %4957 = vst [vmem:[%s377 + $0x4c] sm:$0xf] %v4893
        %4958 = vst [vmem:[%s377 + $0x50] sm:$0xf] %v4894
        %4959 = vst [vmem:[%s377 + $0x54] sm:$0xf] %v4895
        %4960 = vst [vmem:[%s377 + $0x58] sm:$0xf] %v4896
        %4961 = vst [vmem:[%s377 + $0x5c] sm:$0xf] %v4897
        %4962 = vst [vmem:[%s377 + $0x60] sm:$0xf] %v4898
        %4963 = vst [vmem:[%s377 + $0x64] sm:$0xf] %v4899
        %4964 = vst [vmem:[%s377 + $0x68] sm:$0xf] %v4900
        %4965 = vst [vmem:[%s377 + $0x6c] sm:$0xf] %v4901
        %4966 = vst [vmem:[%s377 + $0x70] sm:$0xf] %v4902
        %4967 = vst [vmem:[%s377 + $0x74] sm:$0xf] %v4903
        %4968 = vst [vmem:[%s377 + $0x78] sm:$0xf] %v4904
        %4969 = vst [vmem:[%s377 + $0x7c] sm:$0xf] %v4905
        %s4970 = sand.u32 %s187, 1
        %s4971 = scalar_lea.sflag [#allocation6], %s4970
        %s4972 = sand.u32 %s187, 1
        %s4973 = smul.addr %s4972, 128
        %s4974 = scalar_lea.vmem [#allocation16], %s4973
        // Predicated region
        $region77: #{bottleneck_forward.1} parent=47 // pred_check
          %p4975 = pneg %p197
        $region78: #{bottleneck_forward.1} parent=47 // pred_check_branch
          %4977 = sbr.rel (%p4975) target = $region80
        $region79: #{bottleneck_forward.1} parent=47 // pred_region
          %s4979 = ssub.s32 2048, 2048
          %4980 = vsyncadd %s4971, %s4979
          %s4981 = smul.addr %s27, 32
          %s4982 = smul.addr %s4981, 64
          %s4983 = scalar_lea.hbm %s7, %s4982
          %s4984 = sshll.u32 %s4974, 4
          %s4985 = int_to_ptr.vmem [resolvable:$true] %s4984
          %4990 = dma.vmem_to_hbm [thread:$0]  %s4985, 2048, %s4983, %s4971, 64, 64, 4
        $region80: #{bottleneck_forward.1} parent=47 // pred_fallthru
          _
      $region48: #{bottleneck_forward.1} parent=5 // pred_fallthru
        _
      %p4991 = scmp.le.s32.totalorder 2, %s22
      // Predicated region
      $region81: #{bottleneck_forward.1} parent=5 // pred_check
        %p4992 = pneg %p4991
      $region82: #{bottleneck_forward.1} parent=5 // pred_check_branch
        %4994 = sbr.rel (%p4992) target = $region84
      $region83: #{bottleneck_forward.1} parent=5 // pred_region
        %s4995 = ssub.s32 %s22, 2
        // Predicated region
        $region85: #{bottleneck_forward.1} parent=83 // pred_check
          %p4996 = pneg %p203
        $region86: #{bottleneck_forward.1} parent=83 // pred_check_branch
          %4998 = sbr.rel (%p4996) target = $region88
        $region87: #{bottleneck_forward.1} parent=83 // pred_region
          %s4999 = sand.u32 %s188, 1
          %s5000 = scalar_lea.sflag [#allocation6], %s4999
          %s5001 = sand.u32 %s188, 1
          %s5002 = smul.addr %s5001, 128
          %s5003 = scalar_lea.vmem [#allocation16], %s5002
          %5004 = dma.done %s5000, 2048
        $region88: #{bottleneck_forward.1} parent=83 // pred_fallthru
          _
      $region84: #{bottleneck_forward.1} parent=5 // pred_fallthru
        _
    $region6: #{bottleneck_forward.1} parent=1 // loop_footer
      %s26 = sadd.s32 1, %s22
    $region7: #{bottleneck_forward.1} parent=1 // loop_footer_branch
      %21 = sbr.rel target = $region3
    $region8: #{bottleneck_forward.1} parent=1 // loop_exit
      _
    %5005 = vsyncpa [#allocation5], 1
    %s5006 = scalar_lea.sflag [#allocation5], 1
    %5007 = vsyncpa %s5006, 1
    %5008 = vsyncpa [#allocation8], 1
    %5009 = vsyncpa [#allocation11], 1
    %5010 = vsyncpa [#allocation14], 1
    %5011 = vsyncpa [#allocation6], 1
    %s5012 = scalar_lea.sflag [#allocation6], 1
    %5013 = vsyncpa %s5012, 1

</llo_original>
